<compile_context>
chip_gen: v7x
topology: tpu7x:2x2x1
jax: 0.10.0
libtpu: 0.0.40
codegen_flags: <defaults>
</compile_context>

<pallas_src>
import jax
import jax.numpy as jnp
from jax.experimental import pallas as pl
from jax.experimental.pallas import tpu as pltpu

EPS = 1e-5
LANE = 128


def _round_up(x, m):
    return (x + m - 1) // m * m


# ------------------------------ fused kernel --------------------------------

def _make_kernel(stride, b_tile, h, w, ho, wo, lanes, varying):
    """Build the fused ResidualBlock kernel, specialised at trace time for the
    conv1 stride, images-per-step, spatial sizes, lane-padded channel count and
    residual type.  All slice bounds below are static Python ints."""
    m1 = ho * wo
    mm = b_tile * m1        # matmul M (all images of the step flattened)

    taps = [(dy, dx) for dy in range(3) for dx in range(3)]

    def kernel(x_ref, w1_ref, w2_ref, sh1_ref, sh2_ref, o_ref,
               col_ref, hp_ref, *maybe_xp):
        # ------------- source of conv1 / residual windows --------------------
        if stride == 1:
            xp_ref = maybe_xp[0]
            # Zero only the 1-pixel halo; the interior is fully overwritten.
            zr = jnp.zeros((b_tile, w + 2, lanes), x_ref.dtype)
            zc = jnp.zeros((b_tile, h, lanes), x_ref.dtype)
            xp_ref[:, 0, :, :] = zr
            xp_ref[:, h + 1, :, :] = zr
            xp_ref[:, pl.ds(1, h), 0, :] = zc
            xp_ref[:, pl.ds(1, h), w + 1, :] = zc
            xp_ref[:, pl.ds(1, h), pl.ds(1, w), :] = x_ref[...]

            def window(dy, dx):
                return xp_ref[:, pl.ds(dy, ho), pl.ds(dx, wo), :]
        else:
            # Host-side phase-split (space-to-depth by the stride) of the
            # zero-padded input; every stride-2 window is a contiguous slice:
            #   phases[b, p, i, j, :] == x_pad[b, s*i + p//s, s*j + p%s, :]
            def window(dy, dx):
                p = (dy % stride) * stride + (dx % stride)
                return x_ref[:, p, pl.ds(dy // stride, ho),
                             pl.ds(dx // stride, wo), :]

        # ------------- conv1: lane-aligned im2col + ONE matmul ---------------
        for t, (dy, dx) in enumerate(taps):
            col_ref[:, pl.ds(t * lanes, lanes)] = (
                window(dy, dx).reshape(mm, lanes))
        h1 = jnp.dot(col_ref[...], w1_ref[...],
                     preferred_element_type=jnp.float32)
        h1 = jnp.maximum(h1 + sh1_ref[...], 0.0).astype(hp_ref.dtype)

        # Padded h lives entirely in VMEM scratch; zero only its halo strips.
        zr = jnp.zeros((b_tile, wo + 2, lanes), hp_ref.dtype)
        zc = jnp.zeros((b_tile, ho, lanes), hp_ref.dtype)
        hp_ref[:, 0, :, :] = zr
        hp_ref[:, ho + 1, :, :] = zr
        hp_ref[:, pl.ds(1, ho), 0, :] = zc
        hp_ref[:, pl.ds(1, ho), wo + 1, :] = zc
        hp_ref[:, pl.ds(1, ho), pl.ds(1, wo), :] = (
            h1.reshape(b_tile, ho, wo, lanes))

        # ------------- conv2 (stride 1): im2col + ONE matmul -----------------
        for t, (dy, dx) in enumerate(taps):
            col_ref[:, pl.ds(t * lanes, lanes)] = (
                hp_ref[:, pl.ds(dy, ho), pl.ds(dx, wo), :].reshape(mm, lanes))
        y = jnp.dot(col_ref[...], w2_ref[...],
                    preferred_element_type=jnp.float32)
        y = (y + sh2_ref[...]).reshape(b_tile, ho, wo, lanes)

        # ------------- residual branch + final ReLU ---------------------------
        if varying:
            # ZeroPad2d(1) -> MaxPool2d(3, stride 2); the channel zero-pad of
            # the side block is free because the padded lanes are exactly 0.
            # Max is done in bf16 (v6e/v7x bf16 VALU), cast to f32 once.
            r = None
            for dy, dx in taps:
                wv = window(dy, dx)
                r = wv if r is None else jnp.maximum(r, wv)
            r = r.astype(jnp.float32)
        else:
            r = x_ref[...].astype(jnp.float32)          # identity residual

        o_ref[...] = jnp.maximum(y + r, 0.0).astype(o_ref.dtype)

    return kernel


# ------------------------------- host helpers --------------------------------

def _fold_bn(gamma, beta, running_mean, running_var):
    scale = gamma / jnp.sqrt(running_var + EPS)
    shift = beta - running_mean * scale
    return scale, shift


def _prep_weight(w_oihw, scale, lanes):
    # [Cout, Cin, 3, 3] (OIHW) -> (9*lanes, lanes) bf16 with the BN scale
    # folded in, row order matching the im2col K axis: k = tap*lanes + cin.
    cout, cin = w_oihw.shape[0], w_oihw.shape[1]
    wt = jnp.transpose(w_oihw, (2, 3, 1, 0)) * scale[None, None, None, :]
    wt = jnp.pad(wt, ((0, 0), (0, 0), (0, lanes - cin), (0, lanes - cout)))
    return wt.reshape(9 * lanes, lanes).astype(jnp.bfloat16)


def _phase_split(xp, stride):
    # [N, Hp, Wp, L] -> [N, stride*stride, ceil(Hp/s), ceil(Wp/s), L]
    n, hp_, wp_, l = xp.shape
    hq = -(-hp_ // stride)
    wq = -(-wp_ // stride)
    xq = jnp.pad(xp, ((0, 0), (0, hq * stride - hp_), (0, wq * stride - wp_),
                      (0, 0)))
    xq = xq.reshape(n, hq, stride, wq, stride, l)
    xq = jnp.transpose(xq, (0, 2, 4, 1, 3, 5))
    return xq.reshape(n, stride * stride, hq, wq, l)


# ------------------------------ module forward --------------------------------

def residual_block_nhwc(x, params, first_conv_stride):
    """x: (N, H, W, lanes) bf16 NHWC with channels zero-padded to `lanes`.
    Returns (N, ho, wo, lanes) bf16 in the same layout (directly consumable by
    the next ResidualBlock)."""
    n, h, w, lanes = x.shape
    assert lanes % LANE == 0
    cin = params["w1"].shape[1]
    cout = params["w1"].shape[0]
    varying = cin != cout
    s = int(first_conv_stride)
    if varying:
        # MaxPool2d in the side block is hard-wired to stride 2.
        assert s == 2, "varying-size ResidualBlock requires first_conv_stride=2"
    else:
        assert s == 1, "identity ResidualBlock requires first_conv_stride=1"

    ho = (h + 2 - 3) // s + 1
    wo = (w + 2 - 3) // s + 1
    m1 = ho * wo

    # Images per grid step: aim for M = b_tile*ho*wo ~ 512 rows per matmul,
    # while keeping b_tile a divisor of N (no ragged last block).
    cap = min(n, max(1, 512 // m1), 8)
    b_tile = max(d for d in range(1, cap + 1) if n % d == 0)
    mm = b_tile * m1
    kdim = 9 * lanes

    s1, b1 = _fold_bn(params["g1"], params["beta1"], params["rm1"], params["rv1"])
    s2, b2 = _fold_bn(params["g2"], params["beta2"], params["rm2"], params["rv2"])
    w1 = _prep_weight(params["w1"], s1, lanes)
    w2 = _prep_weight(params["w2"], s2, lanes)
    sh1 = jnp.pad(b1, (0, lanes - cout)).reshape(1, lanes).astype(jnp.float32)
    sh2 = jnp.pad(b2, (0, lanes - cout)).reshape(1, lanes).astype(jnp.float32)

    kernel = _make_kernel(s, b_tile, h, w, ho, wo, lanes, varying)

    scratch = [
        pltpu.VMEM((mm, kdim), jnp.bfloat16),                       # im2col slab
        pltpu.VMEM((b_tile, ho + 2, wo + 2, lanes), jnp.bfloat16),  # padded h
    ]
    if s == 1:
        x_in = x
        x_spec = pl.BlockSpec((b_tile, h, w, lanes), lambda i: (i, 0, 0, 0))
        # padded x built in-kernel (no host-side spatial pad).
        scratch.append(pltpu.VMEM((b_tile, h + 2, w + 2, lanes), jnp.bfloat16))
    else:
        # TODO(synk): small host-side pad + space-to-depth retained for s=2.
        xp = jnp.pad(x, ((0, 0), (1, 1), (1, 1), (0, 0)))
        x_in = _phase_split(xp, s)
        _, nph, hq, wq, _ = x_in.shape
        x_spec = pl.BlockSpec((b_tile, nph, hq, wq, lanes),
                              lambda i: (i, 0, 0, 0, 0))

    return pl.pallas_call(
        kernel,
        grid=(n // b_tile,),
        in_specs=[
            x_spec,
            # weights / shifts: constant index_map -> stay resident in VMEM
            pl.BlockSpec((kdim, lanes), lambda i: (0, 0)),
            pl.BlockSpec((kdim, lanes), lambda i: (0, 0)),
            pl.BlockSpec((1, lanes), lambda i: (0, 0)),
            pl.BlockSpec((1, lanes), lambda i: (0, 0)),
        ],
        out_specs=pl.BlockSpec((b_tile, ho, wo, lanes), lambda i: (i, 0, 0, 0)),
        out_shape=jax.ShapeDtypeStruct((n, ho, wo, lanes), jnp.bfloat16),
        scratch_shapes=scratch,
        compiler_params=pltpu.CompilerParams(
            dimension_semantics=("parallel",)),
    )(x_in, w1, w2, sh1, sh2)


def residual_block_forward(x_nchw, params, first_conv_stride):
    """PyTorch-compatible NCHW f32 entry point.  The NCHW <-> lane-padded NHWC
    conversion below is an API-boundary cost only: inside a network, blocks
    chain directly through residual_block_nhwc's bf16 padded-NHWC layout."""
    n, cin, h, w = x_nchw.shape
    cout = params["w1"].shape[0]
    lanes = _round_up(max(cin, cout), LANE)

    x = jnp.transpose(x_nchw, (0, 2, 3, 1)).astype(jnp.bfloat16)
    x = jnp.pad(x, ((0, 0), (0, 0), (0, 0), (0, lanes - cin)))

    out = residual_block_nhwc(x, params, first_conv_stride)

    out = out[..., :cout].astype(jnp.float32)            # drop lane padding
    return jnp.transpose(out, (0, 3, 1, 2))              # NHWC -> NCHW


# ------------------------------- param init ----------------------------------

def init_params(key, input_ch, output_ch):
    ks = jax.random.split(key, 10)
    return {
        "w1": jax.random.normal(ks[0], (output_ch, input_ch, 3, 3), jnp.float32) * 0.2,
        "w2": jax.random.normal(ks[1], (output_ch, output_ch, 3, 3), jnp.float32) * 0.2,
        "g1": jax.random.uniform(ks[2], (output_ch,), jnp.float32, 0.5, 1.5),
        "beta1": jax.random.normal(ks[3], (output_ch,), jnp.float32) * 0.1,
        "rm1": jax.random.normal(ks[4], (output_ch,), jnp.float32) * 0.1,
        "rv1": jax.random.uniform(ks[5], (output_ch,), jnp.float32, 0.5, 1.5),
        "g2": jax.random.uniform(ks[6], (output_ch,), jnp.float32, 0.5, 1.5),
        "beta2": jax.random.normal(ks[7], (output_ch,), jnp.float32) * 0.1,
        "rm2": jax.random.normal(ks[8], (output_ch,), jnp.float32) * 0.1,
        "rv2": jax.random.uniform(ks[9], (output_ch,), jnp.float32, 0.5, 1.5),
    }


# --------------------------- pure-JAX f32 reference ---------------------------

def reference_forward(x_nchw, params, first_conv_stride):
    def conv(x, w, s):
        xp = jnp.pad(x, ((0, 0), (0, 0), (1, 1), (1, 1)))
        return jax.lax.conv_general_dilated(
            xp, w, (s, s), "VALID",
            dimension_numbers=("NCHW", "OIHW", "NCHW"))

    def bn(x, g, b, rm, rv):
        scale = g / jnp.sqrt(rv + EPS)
        shift = b - rm * scale
        return x * scale[None, :, None, None] + shift[None, :, None, None]

    x = x_nchw.astype(jnp.float32)
    input_ch = x.shape[1]
    output_ch = params["w1"].shape[0]

    h = jax.nn.relu(bn(conv(x, params["w1"], first_conv_stride),
                       params["g1"], params["beta1"], params["rm1"], params["rv1"]))
    h = bn(conv(h, params["w2"], 1),
           params["g2"], params["beta2"], params["rm2"], params["rv2"])

    if input_ch != output_ch:
        xp = jnp.pad(x, ((0, 0), (0, 0), (1, 1), (1, 1)))
        mp = jax.lax.reduce_window(xp, -jnp.inf, jax.lax.max,
                                   (1, 1, 3, 3), (1, 1, 2, 2), "VALID")
        side = jnp.pad(mp, ((0, 0), (0, output_ch - input_ch), (0, 0), (0, 0)))
        return jax.nn.relu(side + h)
    return jax.nn.relu(x + h)


# ---------------------------------- main --------------------------------------

if __name__ == "__main__":
    key = jax.random.PRNGKey(0)
    kx, kp1, kp2 = jax.random.split(key, 3)

    # Kernel feeds the MXU bf16 operands (f32 accumulation) and emits bf16
    # activations; the reference is pure f32 -> compare at bf16-level accuracy.
    ATOL = RTOL = 6e-2

    # Case 1: varying size (input_ch=4 -> output_ch=8, first_conv_stride=2)
    x = jax.random.normal(kx, (2, 4, 16, 16), jnp.float32)
    params = init_params(kp1, 4, 8)
    out = jax.block_until_ready(residual_block_forward(x, params, 2))
    assert out.shape == (2, 8, 8, 8), out.shape
    ref = reference_forward(x, params, 2)
    assert jnp.allclose(out, ref, atol=ATOL, rtol=RTOL), \
        float(jnp.max(jnp.abs(out - ref)))

    # Case 2: identity residual (input_ch == output_ch == 8, stride 1)
    x2 = jax.random.normal(kx, (2, 8, 16, 16), jnp.float32)
    params2 = init_params(kp2, 8, 8)
    out2 = jax.block_until_ready(residual_block_forward(x2, params2, 1))
    assert out2.shape == (2, 8, 16, 16), out2.shape
    ref2 = reference_forward(x2, params2, 1)
    assert jnp.allclose(out2, ref2, atol=ATOL, rtol=RTOL), \
        float(jnp.max(jnp.abs(out2 - ref2)))

    print("KERNEL_OK")
</pallas_src>

<mosaic_0001>
module attributes {stable_mosaic.version = 11 : i64} {
  func.func @kernel(%arg0: i32, %arg1: memref<2x4x9x9x128xbf16, #tpu.memory_space<vmem>>, %arg2: memref<1152x128xbf16, #tpu.memory_space<vmem>>, %arg3: memref<1152x128xbf16, #tpu.memory_space<vmem>>, %arg4: memref<1x128xf32, #tpu.memory_space<vmem>>, %arg5: memref<1x128xf32, #tpu.memory_space<vmem>>, %arg6: memref<2x8x8x128xbf16, #tpu.memory_space<vmem>>, %arg7: memref<128x1152xbf16, #tpu.memory_space<vmem>>, %arg8: memref<2x10x10x128xbf16, #tpu.memory_space<vmem>>) attributes {dimension_semantics = [#tpu.dimension_semantics<parallel>], iteration_bounds = array<i64: 1>, scalar_prefetch = 0 : i64, scratch_operands = 2 : i64, tpu.core_type = #tpu.core_type<tc>, window_params = [{transform_indices = @transform_0, window_bounds = array<i64: 2, 4, 9, 9, 128>}, {pipeline_mode = #tpu.pipeline_mode<synchronous>, transform_indices = @transform_1, window_bounds = array<i64: 1152, 128>}, {pipeline_mode = #tpu.pipeline_mode<synchronous>, transform_indices = @transform_2, window_bounds = array<i64: 1152, 128>}, {pipeline_mode = #tpu.pipeline_mode<synchronous>, transform_indices = @transform_3, window_bounds = array<i64: 1, 128>}, {pipeline_mode = #tpu.pipeline_mode<synchronous>, transform_indices = @transform_4, window_bounds = array<i64: 1, 128>}, {transform_indices = @transform_5, window_bounds = array<i64: 2, 8, 8, 128>}]} {
    %c0 = arith.constant 0 : index
    %c0_0 = arith.constant 0 : index
    %c0_1 = arith.constant 0 : index
    %c0_2 = arith.constant 0 : index
    %c0_3 = arith.constant 0 : index
    %0 = vector.load %arg1[%c0, %c0_0, %c0_1, %c0_2, %c0_3] : memref<2x4x9x9x128xbf16, #tpu.memory_space<vmem>>, vector<2x1x8x8x128xbf16>
    %1 = vector.shape_cast %0 : vector<2x1x8x8x128xbf16> to vector<2x8x8x128xbf16>
    %2 = vector.shape_cast %1 : vector<2x8x8x128xbf16> to vector<128x128xbf16>
    %c0_4 = arith.constant 0 : index
    %c0_5 = arith.constant 0 : index
    %3 = vector.load %arg7[%c0_4, %c0_5] : memref<128x1152xbf16, #tpu.memory_space<vmem>>, vector<128x128xbf16>
    tpu.vector_store %arg7[%c0_4, %c0_5], %2 {strides = array<i32>} : memref<128x1152xbf16, #tpu.memory_space<vmem>>, vector<128x128xbf16>,
    %c0_6 = arith.constant 0 : index
    %c1 = arith.constant 1 : index
    %c0_7 = arith.constant 0 : index
    %c0_8 = arith.constant 0 : index
    %c0_9 = arith.constant 0 : index
    %4 = vector.load %arg1[%c0_6, %c1, %c0_7, %c0_8, %c0_9] : memref<2x4x9x9x128xbf16, #tpu.memory_space<vmem>>, vector<2x1x8x8x128xbf16>
    %5 = vector.shape_cast %4 : vector<2x1x8x8x128xbf16> to vector<2x8x8x128xbf16>
    %6 = vector.shape_cast %5 : vector<2x8x8x128xbf16> to vector<128x128xbf16>
    %c0_10 = arith.constant 0 : index
    %c128 = arith.constant 128 : index
    %7 = vector.load %arg7[%c0_10, %c128] : memref<128x1152xbf16, #tpu.memory_space<vmem>>, vector<128x128xbf16>
    tpu.vector_store %arg7[%c0_10, %c128], %6 {strides = array<i32>} : memref<128x1152xbf16, #tpu.memory_space<vmem>>, vector<128x128xbf16>,
    %c0_11 = arith.constant 0 : index
    %c0_12 = arith.constant 0 : index
    %c0_13 = arith.constant 0 : index
    %c1_14 = arith.constant 1 : index
    %c0_15 = arith.constant 0 : index
    %8 = vector.load %arg1[%c0_11, %c0_12, %c0_13, %c1_14, %c0_15] : memref<2x4x9x9x128xbf16, #tpu.memory_space<vmem>>, vector<2x1x8x8x128xbf16>
    %9 = vector.shape_cast %8 : vector<2x1x8x8x128xbf16> to vector<2x8x8x128xbf16>
    %10 = vector.shape_cast %9 : vector<2x8x8x128xbf16> to vector<128x128xbf16>
    %c0_16 = arith.constant 0 : index
    %c256 = arith.constant 256 : index
    %11 = vector.load %arg7[%c0_16, %c256] : memref<128x1152xbf16, #tpu.memory_space<vmem>>, vector<128x128xbf16>
    tpu.vector_store %arg7[%c0_16, %c256], %10 {strides = array<i32>} : memref<128x1152xbf16, #tpu.memory_space<vmem>>, vector<128x128xbf16>,
    %c0_17 = arith.constant 0 : index
    %c2 = arith.constant 2 : index
    %c0_18 = arith.constant 0 : index
    %c0_19 = arith.constant 0 : index
    %c0_20 = arith.constant 0 : index
    %12 = vector.load %arg1[%c0_17, %c2, %c0_18, %c0_19, %c0_20] : memref<2x4x9x9x128xbf16, #tpu.memory_space<vmem>>, vector<2x1x8x8x128xbf16>
    %13 = vector.shape_cast %12 : vector<2x1x8x8x128xbf16> to vector<2x8x8x128xbf16>
    %14 = vector.shape_cast %13 : vector<2x8x8x128xbf16> to vector<128x128xbf16>
    %c0_21 = arith.constant 0 : index
    %c384 = arith.constant 384 : index
    %15 = vector.load %arg7[%c0_21, %c384] : memref<128x1152xbf16, #tpu.memory_space<vmem>>, vector<128x128xbf16>
    tpu.vector_store %arg7[%c0_21, %c384], %14 {strides = array<i32>} : memref<128x1152xbf16, #tpu.memory_space<vmem>>, vector<128x128xbf16>,
    %c0_22 = arith.constant 0 : index
    %c3 = arith.constant 3 : index
    %c0_23 = arith.constant 0 : index
    %c0_24 = arith.constant 0 : index
    %c0_25 = arith.constant 0 : index
    %16 = vector.load %arg1[%c0_22, %c3, %c0_23, %c0_24, %c0_25] : memref<2x4x9x9x128xbf16, #tpu.memory_space<vmem>>, vector<2x1x8x8x128xbf16>
    %17 = vector.shape_cast %16 : vector<2x1x8x8x128xbf16> to vector<2x8x8x128xbf16>
    %18 = vector.shape_cast %17 : vector<2x8x8x128xbf16> to vector<128x128xbf16>
    %c0_26 = arith.constant 0 : index
    %c512 = arith.constant 512 : index
    %19 = vector.load %arg7[%c0_26, %c512] : memref<128x1152xbf16, #tpu.memory_space<vmem>>, vector<128x128xbf16>
    tpu.vector_store %arg7[%c0_26, %c512], %18 {strides = array<i32>} : memref<128x1152xbf16, #tpu.memory_space<vmem>>, vector<128x128xbf16>,
    %c0_27 = arith.constant 0 : index
    %c2_28 = arith.constant 2 : index
    %c0_29 = arith.constant 0 : index
    %c1_30 = arith.constant 1 : index
    %c0_31 = arith.constant 0 : index
    %20 = vector.load %arg1[%c0_27, %c2_28, %c0_29, %c1_30, %c0_31] : memref<2x4x9x9x128xbf16, #tpu.memory_space<vmem>>, vector<2x1x8x8x128xbf16>
    %21 = vector.shape_cast %20 : vector<2x1x8x8x128xbf16> to vector<2x8x8x128xbf16>
    %22 = vector.shape_cast %21 : vector<2x8x8x128xbf16> to vector<128x128xbf16>
    %c0_32 = arith.constant 0 : index
    %c640 = arith.constant 640 : index
    %23 = vector.load %arg7[%c0_32, %c640] : memref<128x1152xbf16, #tpu.memory_space<vmem>>, vector<128x128xbf16>
    tpu.vector_store %arg7[%c0_32, %c640], %22 {strides = array<i32>} : memref<128x1152xbf16, #tpu.memory_space<vmem>>, vector<128x128xbf16>,
    %c0_33 = arith.constant 0 : index
    %c0_34 = arith.constant 0 : index
    %c1_35 = arith.constant 1 : index
    %c0_36 = arith.constant 0 : index
    %c0_37 = arith.constant 0 : index
    %24 = vector.load %arg1[%c0_33, %c0_34, %c1_35, %c0_36, %c0_37] : memref<2x4x9x9x128xbf16, #tpu.memory_space<vmem>>, vector<2x1x8x8x128xbf16>
    %25 = vector.shape_cast %24 : vector<2x1x8x8x128xbf16> to vector<2x8x8x128xbf16>
    %26 = vector.shape_cast %25 : vector<2x8x8x128xbf16> to vector<128x128xbf16>
    %c0_38 = arith.constant 0 : index
    %c768 = arith.constant 768 : index
    %27 = vector.load %arg7[%c0_38, %c768] : memref<128x1152xbf16, #tpu.memory_space<vmem>>, vector<128x128xbf16>
    tpu.vector_store %arg7[%c0_38, %c768], %26 {strides = array<i32>} : memref<128x1152xbf16, #tpu.memory_space<vmem>>, vector<128x128xbf16>,
    %c0_39 = arith.constant 0 : index
    %c1_40 = arith.constant 1 : index
    %c1_41 = arith.constant 1 : index
    %c0_42 = arith.constant 0 : index
    %c0_43 = arith.constant 0 : index
    %28 = vector.load %arg1[%c0_39, %c1_40, %c1_41, %c0_42, %c0_43] : memref<2x4x9x9x128xbf16, #tpu.memory_space<vmem>>, vector<2x1x8x8x128xbf16>
    %29 = vector.shape_cast %28 : vector<2x1x8x8x128xbf16> to vector<2x8x8x128xbf16>
    %30 = vector.shape_cast %29 : vector<2x8x8x128xbf16> to vector<128x128xbf16>
    %c0_44 = arith.constant 0 : index
    %c896 = arith.constant 896 : index
    %31 = vector.load %arg7[%c0_44, %c896] : memref<128x1152xbf16, #tpu.memory_space<vmem>>, vector<128x128xbf16>
    tpu.vector_store %arg7[%c0_44, %c896], %30 {strides = array<i32>} : memref<128x1152xbf16, #tpu.memory_space<vmem>>, vector<128x128xbf16>,
    %c0_45 = arith.constant 0 : index
    %c0_46 = arith.constant 0 : index
    %c1_47 = arith.constant 1 : index
    %c1_48 = arith.constant 1 : index
    %c0_49 = arith.constant 0 : index
    %32 = vector.load %arg1[%c0_45, %c0_46, %c1_47, %c1_48, %c0_49] : memref<2x4x9x9x128xbf16, #tpu.memory_space<vmem>>, vector<2x1x8x8x128xbf16>
    %33 = vector.shape_cast %32 : vector<2x1x8x8x128xbf16> to vector<2x8x8x128xbf16>
    %34 = vector.shape_cast %33 : vector<2x8x8x128xbf16> to vector<128x128xbf16>
    %c0_50 = arith.constant 0 : index
    %c1024 = arith.constant 1024 : index
    %35 = vector.load %arg7[%c0_50, %c1024] : memref<128x1152xbf16, #tpu.memory_space<vmem>>, vector<128x128xbf16>
    tpu.vector_store %arg7[%c0_50, %c1024], %34 {strides = array<i32>} : memref<128x1152xbf16, #tpu.memory_space<vmem>>, vector<128x128xbf16>,
    %c0_51 = arith.constant 0 : index
    %c0_52 = arith.constant 0 : index
    %36 = vector.load %arg7[%c0_51, %c0_52] : memref<128x1152xbf16, #tpu.memory_space<vmem>>, vector<128x1152xbf16>
    %c0_53 = arith.constant 0 : index
    %c0_54 = arith.constant 0 : index
    %37 = vector.load %arg2[%c0_53, %c0_54] : memref<1152x128xbf16, #tpu.memory_space<vmem>>, vector<1152x128xbf16>
    %cst = arith.constant dense<0.000000e+00> : vector<128x128xf32>
    %38 = tpu.matmul %36, %37, %cst {dimension_numbers = #tpu.dot_dimension_numbers<[1], [0], [0], [1], [0, 0, 1, 1], [], []>} : vector<128x1152xbf16>, vector<1152x128xbf16>, vector<128x128xf32> -> vector<128x128xf32>
    %c0_55 = arith.constant 0 : index
    %c0_56 = arith.constant 0 : index
    %39 = vector.load %arg4[%c0_55, %c0_56] : memref<1x128xf32, #tpu.memory_space<vmem>>, vector<1x128xf32>
    %40 = vector.broadcast %39 : vector<1x128xf32> to vector<128x128xf32>
    %41 = arith.addf %38, %40 : vector<128x128xf32>
    %cst_57 = arith.constant 0.000000e+00 : f32
    %42 = vector.broadcast %cst_57 : f32 to vector<128x128xf32>
    %43 = arith.maximumf %41, %42 : vector<128x128xf32>
    %44 = arith.truncf %43 : vector<128x128xf32> to vector<128x128xbf16>
    %cst_58 = arith.constant 0.000000e+00 : bf16
    %45 = vector.broadcast %cst_58 : bf16 to vector<2x10x128xbf16>
    %cst_59 = arith.constant 0.000000e+00 : bf16
    %46 = vector.broadcast %cst_59 : bf16 to vector<2x8x128xbf16>
    %c0_60 = arith.constant 0 : index
    %c0_61 = arith.constant 0 : index
    %c0_62 = arith.constant 0 : index
    %c0_63 = arith.constant 0 : index
    %47 = vector.load %arg8[%c0_60, %c0_61, %c0_62, %c0_63] : memref<2x10x10x128xbf16, #tpu.memory_space<vmem>>, vector<2x1x10x128xbf16>
    %48 = vector.shape_cast %47 : vector<2x1x10x128xbf16> to vector<2x10x128xbf16>
    %49 = vector.shape_cast %45 : vector<2x10x128xbf16> to vector<2x1x10x128xbf16>
    tpu.vector_store %arg8[%c0_60, %c0_61, %c0_62, %c0_63], %49 {strides = array<i32>} : memref<2x10x10x128xbf16, #tpu.memory_space<vmem>>, vector<2x1x10x128xbf16>,
    %c0_64 = arith.constant 0 : index
    %c9 = arith.constant 9 : index
    %c0_65 = arith.constant 0 : index
    %c0_66 = arith.constant 0 : index
    %50 = vector.load %arg8[%c0_64, %c9, %c0_65, %c0_66] : memref<2x10x10x128xbf16, #tpu.memory_space<vmem>>, vector<2x1x10x128xbf16>
    %51 = vector.shape_cast %50 : vector<2x1x10x128xbf16> to vector<2x10x128xbf16>
    %52 = vector.shape_cast %45 : vector<2x10x128xbf16> to vector<2x1x10x128xbf16>
    tpu.vector_store %arg8[%c0_64, %c9, %c0_65, %c0_66], %52 {strides = array<i32>} : memref<2x10x10x128xbf16, #tpu.memory_space<vmem>>, vector<2x1x10x128xbf16>,
    %c0_67 = arith.constant 0 : index
    %c1_68 = arith.constant 1 : index
    %c0_69 = arith.constant 0 : index
    %c0_70 = arith.constant 0 : index
    %53 = vector.load %arg8[%c0_67, %c1_68, %c0_69, %c0_70] : memref<2x10x10x128xbf16, #tpu.memory_space<vmem>>, vector<2x8x1x128xbf16>
    %54 = vector.shape_cast %53 : vector<2x8x1x128xbf16> to vector<2x8x128xbf16>
    %55 = vector.shape_cast %46 : vector<2x8x128xbf16> to vector<2x8x1x128xbf16>
    tpu.vector_store %arg8[%c0_67, %c1_68, %c0_69, %c0_70], %55 {strides = array<i32>} : memref<2x10x10x128xbf16, #tpu.memory_space<vmem>>, vector<2x8x1x128xbf16>,
    %c0_71 = arith.constant 0 : index
    %c1_72 = arith.constant 1 : index
    %c9_73 = arith.constant 9 : index
    %c0_74 = arith.constant 0 : index
    %56 = vector.load %arg8[%c0_71, %c1_72, %c9_73, %c0_74] : memref<2x10x10x128xbf16, #tpu.memory_space<vmem>>, vector<2x8x1x128xbf16>
    %57 = vector.shape_cast %56 : vector<2x8x1x128xbf16> to vector<2x8x128xbf16>
    %58 = vector.shape_cast %46 : vector<2x8x128xbf16> to vector<2x8x1x128xbf16>
    tpu.vector_store %arg8[%c0_71, %c1_72, %c9_73, %c0_74], %58 {strides = array<i32>} : memref<2x10x10x128xbf16, #tpu.memory_space<vmem>>, vector<2x8x1x128xbf16>,
    %59 = vector.shape_cast %44 : vector<128x128xbf16> to vector<2x8x8x128xbf16>
    %c0_75 = arith.constant 0 : index
    %c1_76 = arith.constant 1 : index
    %c1_77 = arith.constant 1 : index
    %c0_78 = arith.constant 0 : index
    %60 = vector.load %arg8[%c0_75, %c1_76, %c1_77, %c0_78] : memref<2x10x10x128xbf16, #tpu.memory_space<vmem>>, vector<2x8x8x128xbf16>
    tpu.vector_store %arg8[%c0_75, %c1_76, %c1_77, %c0_78], %59 {strides = array<i32>} : memref<2x10x10x128xbf16, #tpu.memory_space<vmem>>, vector<2x8x8x128xbf16>,
    %c0_79 = arith.constant 0 : index
    %c0_80 = arith.constant 0 : index
    %c0_81 = arith.constant 0 : index
    %c0_82 = arith.constant 0 : index
    %61 = vector.load %arg8[%c0_79, %c0_80, %c0_81, %c0_82] : memref<2x10x10x128xbf16, #tpu.memory_space<vmem>>, vector<2x8x8x128xbf16>
    %62 = vector.shape_cast %61 : vector<2x8x8x128xbf16> to vector<128x128xbf16>
    %c0_83 = arith.constant 0 : index
    %c0_84 = arith.constant 0 : index
    %63 = vector.load %arg7[%c0_83, %c0_84] : memref<128x1152xbf16, #tpu.memory_space<vmem>>, vector<128x128xbf16>
    tpu.vector_store %arg7[%c0_83, %c0_84], %62 {strides = array<i32>} : memref<128x1152xbf16, #tpu.memory_space<vmem>>, vector<128x128xbf16>,
    %c0_85 = arith.constant 0 : index
    %c0_86 = arith.constant 0 : index
    %c1_87 = arith.constant 1 : index
    %c0_88 = arith.constant 0 : index
    %64 = vector.load %arg8[%c0_85, %c0_86, %c1_87, %c0_88] : memref<2x10x10x128xbf16, #tpu.memory_space<vmem>>, vector<2x8x8x128xbf16>
    %65 = vector.shape_cast %64 : vector<2x8x8x128xbf16> to vector<128x128xbf16>
    %c0_89 = arith.constant 0 : index
    %c128_90 = arith.constant 128 : index
    %66 = vector.load %arg7[%c0_89, %c128_90] : memref<128x1152xbf16, #tpu.memory_space<vmem>>, vector<128x128xbf16>
    tpu.vector_store %arg7[%c0_89, %c128_90], %65 {strides = array<i32>} : memref<128x1152xbf16, #tpu.memory_space<vmem>>, vector<128x128xbf16>,
    %c0_91 = arith.constant 0 : index
    %c0_92 = arith.constant 0 : index
    %c2_93 = arith.constant 2 : index
    %c0_94 = arith.constant 0 : index
    %67 = vector.load %arg8[%c0_91, %c0_92, %c2_93, %c0_94] : memref<2x10x10x128xbf16, #tpu.memory_space<vmem>>, vector<2x8x8x128xbf16>
    %68 = vector.shape_cast %67 : vector<2x8x8x128xbf16> to vector<128x128xbf16>
    %c0_95 = arith.constant 0 : index
    %c256_96 = arith.constant 256 : index
    %69 = vector.load %arg7[%c0_95, %c256_96] : memref<128x1152xbf16, #tpu.memory_space<vmem>>, vector<128x128xbf16>
    tpu.vector_store %arg7[%c0_95, %c256_96], %68 {strides = array<i32>} : memref<128x1152xbf16, #tpu.memory_space<vmem>>, vector<128x128xbf16>,
    %c0_97 = arith.constant 0 : index
    %c1_98 = arith.constant 1 : index
    %c0_99 = arith.constant 0 : index
    %c0_100 = arith.constant 0 : index
    %70 = vector.load %arg8[%c0_97, %c1_98, %c0_99, %c0_100] : memref<2x10x10x128xbf16, #tpu.memory_space<vmem>>, vector<2x8x8x128xbf16>
    %71 = vector.shape_cast %70 : vector<2x8x8x128xbf16> to vector<128x128xbf16>
    %c0_101 = arith.constant 0 : index
    %c384_102 = arith.constant 384 : index
    %72 = vector.load %arg7[%c0_101, %c384_102] : memref<128x1152xbf16, #tpu.memory_space<vmem>>, vector<128x128xbf16>
    tpu.vector_store %arg7[%c0_101, %c384_102], %71 {strides = array<i32>} : memref<128x1152xbf16, #tpu.memory_space<vmem>>, vector<128x128xbf16>,
    %c0_103 = arith.constant 0 : index
    %c1_104 = arith.constant 1 : index
    %c1_105 = arith.constant 1 : index
    %c0_106 = arith.constant 0 : index
    %73 = vector.load %arg8[%c0_103, %c1_104, %c1_105, %c0_106] : memref<2x10x10x128xbf16, #tpu.memory_space<vmem>>, vector<2x8x8x128xbf16>
    %74 = vector.shape_cast %73 : vector<2x8x8x128xbf16> to vector<128x128xbf16>
    %c0_107 = arith.constant 0 : index
    %c512_108 = arith.constant 512 : index
    %75 = vector.load %arg7[%c0_107, %c512_108] : memref<128x1152xbf16, #tpu.memory_space<vmem>>, vector<128x128xbf16>
    tpu.vector_store %arg7[%c0_107, %c512_108], %74 {strides = array<i32>} : memref<128x1152xbf16, #tpu.memory_space<vmem>>, vector<128x128xbf16>,
    %c0_109 = arith.constant 0 : index
    %c1_110 = arith.constant 1 : index
    %c2_111 = arith.constant 2 : index
    %c0_112 = arith.constant 0 : index
    %76 = vector.load %arg8[%c0_109, %c1_110, %c2_111, %c0_112] : memref<2x10x10x128xbf16, #tpu.memory_space<vmem>>, vector<2x8x8x128xbf16>
    %77 = vector.shape_cast %76 : vector<2x8x8x128xbf16> to vector<128x128xbf16>
    %c0_113 = arith.constant 0 : index
    %c640_114 = arith.constant 640 : index
    %78 = vector.load %arg7[%c0_113, %c640_114] : memref<128x1152xbf16, #tpu.memory_space<vmem>>, vector<128x128xbf16>
    tpu.vector_store %arg7[%c0_113, %c640_114], %77 {strides = array<i32>} : memref<128x1152xbf16, #tpu.memory_space<vmem>>, vector<128x128xbf16>,
    %c0_115 = arith.constant 0 : index
    %c2_116 = arith.constant 2 : index
    %c0_117 = arith.constant 0 : index
    %c0_118 = arith.constant 0 : index
    %79 = vector.load %arg8[%c0_115, %c2_116, %c0_117, %c0_118] : memref<2x10x10x128xbf16, #tpu.memory_space<vmem>>, vector<2x8x8x128xbf16>
    %80 = vector.shape_cast %79 : vector<2x8x8x128xbf16> to vector<128x128xbf16>
    %c0_119 = arith.constant 0 : index
    %c768_120 = arith.constant 768 : index
    %81 = vector.load %arg7[%c0_119, %c768_120] : memref<128x1152xbf16, #tpu.memory_space<vmem>>, vector<128x128xbf16>
    tpu.vector_store %arg7[%c0_119, %c768_120], %80 {strides = array<i32>} : memref<128x1152xbf16, #tpu.memory_space<vmem>>, vector<128x128xbf16>,
    %c0_121 = arith.constant 0 : index
    %c2_122 = arith.constant 2 : index
    %c1_123 = arith.constant 1 : index
    %c0_124 = arith.constant 0 : index
    %82 = vector.load %arg8[%c0_121, %c2_122, %c1_123, %c0_124] : memref<2x10x10x128xbf16, #tpu.memory_space<vmem>>, vector<2x8x8x128xbf16>
    %83 = vector.shape_cast %82 : vector<2x8x8x128xbf16> to vector<128x128xbf16>
    %c0_125 = arith.constant 0 : index
    %c896_126 = arith.constant 896 : index
    %84 = vector.load %arg7[%c0_125, %c896_126] : memref<128x1152xbf16, #tpu.memory_space<vmem>>, vector<128x128xbf16>
    tpu.vector_store %arg7[%c0_125, %c896_126], %83 {strides = array<i32>} : memref<128x1152xbf16, #tpu.memory_space<vmem>>, vector<128x128xbf16>,
    %c0_127 = arith.constant 0 : index
    %c2_128 = arith.constant 2 : index
    %c2_129 = arith.constant 2 : index
    %c0_130 = arith.constant 0 : index
    %85 = vector.load %arg8[%c0_127, %c2_128, %c2_129, %c0_130] : memref<2x10x10x128xbf16, #tpu.memory_space<vmem>>, vector<2x8x8x128xbf16>
    %86 = vector.shape_cast %85 : vector<2x8x8x128xbf16> to vector<128x128xbf16>
    %c0_131 = arith.constant 0 : index
    %c1024_132 = arith.constant 1024 : index
    %87 = vector.load %arg7[%c0_131, %c1024_132] : memref<128x1152xbf16, #tpu.memory_space<vmem>>, vector<128x128xbf16>
    tpu.vector_store %arg7[%c0_131, %c1024_132], %86 {strides = array<i32>} : memref<128x1152xbf16, #tpu.memory_space<vmem>>, vector<128x128xbf16>,
    %c0_133 = arith.constant 0 : index
    %c0_134 = arith.constant 0 : index
    %88 = vector.load %arg7[%c0_133, %c0_134] : memref<128x1152xbf16, #tpu.memory_space<vmem>>, vector<128x1152xbf16>
    %c0_135 = arith.constant 0 : index
    %c0_136 = arith.constant 0 : index
    %89 = vector.load %arg3[%c0_135, %c0_136] : memref<1152x128xbf16, #tpu.memory_space<vmem>>, vector<1152x128xbf16>
    %cst_137 = arith.constant dense<0.000000e+00> : vector<128x128xf32>
    %90 = tpu.matmul %88, %89, %cst_137 {dimension_numbers = #tpu.dot_dimension_numbers<[1], [0], [0], [1], [0, 0, 1, 1], [], []>} : vector<128x1152xbf16>, vector<1152x128xbf16>, vector<128x128xf32> -> vector<128x128xf32>
    %c0_138 = arith.constant 0 : index
    %c0_139 = arith.constant 0 : index
    %91 = vector.load %arg5[%c0_138, %c0_139] : memref<1x128xf32, #tpu.memory_space<vmem>>, vector<1x128xf32>
    %92 = vector.broadcast %91 : vector<1x128xf32> to vector<128x128xf32>
    %93 = arith.addf %90, %92 : vector<128x128xf32>
    %94 = vector.shape_cast %93 : vector<128x128xf32> to vector<2x8x8x128xf32>
    %c0_140 = arith.constant 0 : index
    %c0_141 = arith.constant 0 : index
    %c0_142 = arith.constant 0 : index
    %c0_143 = arith.constant 0 : index
    %c0_144 = arith.constant 0 : index
    %95 = vector.load %arg1[%c0_140, %c0_141, %c0_142, %c0_143, %c0_144] : memref<2x4x9x9x128xbf16, #tpu.memory_space<vmem>>, vector<2x1x8x8x128xbf16>
    %96 = vector.shape_cast %95 : vector<2x1x8x8x128xbf16> to vector<2x8x8x128xbf16>
    %c0_145 = arith.constant 0 : index
    %c1_146 = arith.constant 1 : index
    %c0_147 = arith.constant 0 : index
    %c0_148 = arith.constant 0 : index
    %c0_149 = arith.constant 0 : index
    %97 = vector.load %arg1[%c0_145, %c1_146, %c0_147, %c0_148, %c0_149] : memref<2x4x9x9x128xbf16, #tpu.memory_space<vmem>>, vector<2x1x8x8x128xbf16>
    %98 = vector.shape_cast %97 : vector<2x1x8x8x128xbf16> to vector<2x8x8x128xbf16>
    %99 = arith.maximumf %96, %98 : vector<2x8x8x128xbf16>
    %c0_150 = arith.constant 0 : index
    %c0_151 = arith.constant 0 : index
    %c0_152 = arith.constant 0 : index
    %c1_153 = arith.constant 1 : index
    %c0_154 = arith.constant 0 : index
    %100 = vector.load %arg1[%c0_150, %c0_151, %c0_152, %c1_153, %c0_154] : memref<2x4x9x9x128xbf16, #tpu.memory_space<vmem>>, vector<2x1x8x8x128xbf16>
    %101 = vector.shape_cast %100 : vector<2x1x8x8x128xbf16> to vector<2x8x8x128xbf16>
    %102 = arith.maximumf %99, %101 : vector<2x8x8x128xbf16>
    %c0_155 = arith.constant 0 : index
    %c2_156 = arith.constant 2 : index
    %c0_157 = arith.constant 0 : index
    %c0_158 = arith.constant 0 : index
    %c0_159 = arith.constant 0 : index
    %103 = vector.load %arg1[%c0_155, %c2_156, %c0_157, %c0_158, %c0_159] : memref<2x4x9x9x128xbf16, #tpu.memory_space<vmem>>, vector<2x1x8x8x128xbf16>
    %104 = vector.shape_cast %103 : vector<2x1x8x8x128xbf16> to vector<2x8x8x128xbf16>
    %105 = arith.maximumf %102, %104 : vector<2x8x8x128xbf16>
    %c0_160 = arith.constant 0 : index
    %c3_161 = arith.constant 3 : index
    %c0_162 = arith.constant 0 : index
    %c0_163 = arith.constant 0 : index
    %c0_164 = arith.constant 0 : index
    %106 = vector.load %arg1[%c0_160, %c3_161, %c0_162, %c0_163, %c0_164] : memref<2x4x9x9x128xbf16, #tpu.memory_space<vmem>>, vector<2x1x8x8x128xbf16>
    %107 = vector.shape_cast %106 : vector<2x1x8x8x128xbf16> to vector<2x8x8x128xbf16>
    %108 = arith.maximumf %105, %107 : vector<2x8x8x128xbf16>
    %c0_165 = arith.constant 0 : index
    %c2_166 = arith.constant 2 : index
    %c0_167 = arith.constant 0 : index
    %c1_168 = arith.constant 1 : index
    %c0_169 = arith.constant 0 : index
    %109 = vector.load %arg1[%c0_165, %c2_166, %c0_167, %c1_168, %c0_169] : memref<2x4x9x9x128xbf16, #tpu.memory_space<vmem>>, vector<2x1x8x8x128xbf16>
    %110 = vector.shape_cast %109 : vector<2x1x8x8x128xbf16> to vector<2x8x8x128xbf16>
    %111 = arith.maximumf %108, %110 : vector<2x8x8x128xbf16>
    %c0_170 = arith.constant 0 : index
    %c0_171 = arith.constant 0 : index
    %c1_172 = arith.constant 1 : index
    %c0_173 = arith.constant 0 : index
    %c0_174 = arith.constant 0 : index
    %112 = vector.load %arg1[%c0_170, %c0_171, %c1_172, %c0_173, %c0_174] : memref<2x4x9x9x128xbf16, #tpu.memory_space<vmem>>, vector<2x1x8x8x128xbf16>
    %113 = vector.shape_cast %112 : vector<2x1x8x8x128xbf16> to vector<2x8x8x128xbf16>
    %114 = arith.maximumf %111, %113 : vector<2x8x8x128xbf16>
    %c0_175 = arith.constant 0 : index
    %c1_176 = arith.constant 1 : index
    %c1_177 = arith.constant 1 : index
    %c0_178 = arith.constant 0 : index
    %c0_179 = arith.constant 0 : index
    %115 = vector.load %arg1[%c0_175, %c1_176, %c1_177, %c0_178, %c0_179] : memref<2x4x9x9x128xbf16, #tpu.memory_space<vmem>>, vector<2x1x8x8x128xbf16>
    %116 = vector.shape_cast %115 : vector<2x1x8x8x128xbf16> to vector<2x8x8x128xbf16>
    %117 = arith.maximumf %114, %116 : vector<2x8x8x128xbf16>
    %c0_180 = arith.constant 0 : index
    %c0_181 = arith.constant 0 : index
    %c1_182 = arith.constant 1 : index
    %c1_183 = arith.constant 1 : index
    %c0_184 = arith.constant 0 : index
    %118 = vector.load %arg1[%c0_180, %c0_181, %c1_182, %c1_183, %c0_184] : memref<2x4x9x9x128xbf16, #tpu.memory_space<vmem>>, vector<2x1x8x8x128xbf16>
    %119 = vector.shape_cast %118 : vector<2x1x8x8x128xbf16> to vector<2x8x8x128xbf16>
    %120 = arith.maximumf %117, %119 : vector<2x8x8x128xbf16>
    %121 = arith.extf %120 : vector<2x8x8x128xbf16> to vector<2x8x8x128xf32>
    %122 = arith.addf %94, %121 : vector<2x8x8x128xf32>
    %cst_185 = arith.constant 0.000000e+00 : f32
    %123 = vector.broadcast %cst_185 : f32 to vector<2x8x8x128xf32>
    %124 = arith.maximumf %122, %123 : vector<2x8x8x128xf32>
    %125 = arith.truncf %124 : vector<2x8x8x128xf32> to vector<2x8x8x128xbf16>
    %c0_186 = arith.constant 0 : index
    %c0_187 = arith.constant 0 : index
    %c0_188 = arith.constant 0 : index
    %c0_189 = arith.constant 0 : index
    %126 = vector.load %arg6[%c0_186, %c0_187, %c0_188, %c0_189] : memref<2x8x8x128xbf16, #tpu.memory_space<vmem>>, vector<2x8x8x128xbf16>
    tpu.vector_store %arg6[%c0_186, %c0_187, %c0_188, %c0_189], %125 {strides = array<i32>} : memref<2x8x8x128xbf16, #tpu.memory_space<vmem>>, vector<2x8x8x128xbf16>,
    return
  }
  func.func @transform_0(%arg0: i32) -> (i32, i32, i32, i32, i32) {
    %c0_i32 = arith.constant 0 : i32
    %c0_i32_0 = arith.constant 0 : i32
    %c0_i32_1 = arith.constant 0 : i32
    %c0_i32_2 = arith.constant 0 : i32
    %c0_i32_3 = arith.constant 0 : i32
    return %arg0, %c0_i32, %c0_i32_0, %c0_i32_1, %c0_i32_2 : i32, i32, i32, i32, i32
  }
  func.func @transform_1(%arg0: i32) -> (i32, i32) {
    %c0_i32 = arith.constant 0 : i32
    %c0_i32_0 = arith.constant 0 : i32
    %c0_i32_1 = arith.constant 0 : i32
    return %c0_i32, %c0_i32_0 : i32, i32
  }
  func.func @transform_2(%arg0: i32) -> (i32, i32) {
    %c0_i32 = arith.constant 0 : i32
    %c0_i32_0 = arith.constant 0 : i32
    %c0_i32_1 = arith.constant 0 : i32
    return %c0_i32, %c0_i32_0 : i32, i32
  }
  func.func @transform_3(%arg0: i32) -> (i32, i32) {
    %c0_i32 = arith.constant 0 : i32
    %c0_i32_0 = arith.constant 0 : i32
    %c0_i32_1 = arith.constant 0 : i32
    return %c0_i32, %c0_i32_0 : i32, i32
  }
  func.func @transform_4(%arg0: i32) -> (i32, i32) {
    %c0_i32 = arith.constant 0 : i32
    %c0_i32_0 = arith.constant 0 : i32
    %c0_i32_1 = arith.constant 0 : i32
    return %c0_i32, %c0_i32_0 : i32, i32
  }
  func.func @transform_5(%arg0: i32) -> (i32, i32, i32, i32) {
    %c0_i32 = arith.constant 0 : i32
    %c0_i32_0 = arith.constant 0 : i32
    %c0_i32_1 = arith.constant 0 : i32
    %c0_i32_2 = arith.constant 0 : i32
    return %arg0, %c0_i32, %c0_i32_0, %c0_i32_1 : i32, i32, i32, i32
  }
}

</mosaic_0001>

<llo_original>
// kernel: tpu_custom_call.1
$region0: #{tpu_custom_call.1}
  #allocation0 [shape = 'u32[]', space=smem, size = 0x4, offset = 0x4, fixed_abs, tag = 'smem constant byte address 0x4 - core index']
  #allocation1 [shape = 'u32[144,128]{1,0:T(1,128)}', space=vmem, size = 0x12000, scoped, tag = 'internal scratch']
  #allocation2 [shape = 'bf16[128,1152]{1,0:T(16,128)(2,1)}', space=vmem, size = 0x48000, scoped, tag = 'scratch operand']
  #allocation3 [shape = 'bf16[2,10,10,128]{3,2,1,0:T(8,128)(2,1)}', space=vmem, size = 0x14000, scoped, tag = 'scratch operand']
  %s0 = inlined_call_operand.vmem [shape: bf16[2,4,9,9,128], index: 0, kind: input, shape index: {}]
  %s1 = inlined_call_operand.vmem [shape: bf16[1152,128], index: 1, kind: input, shape index: {}]
  %s2 = inlined_call_operand.hbm [shape: bf16[1152,128], index: 2, kind: input, shape index: {}]
  %s3 = inlined_call_operand.vmem [shape: f32[1,128], index: 3, kind: input, shape index: {}]
  %s4 = inlined_call_operand.vmem [shape: f32[1,128], index: 4, kind: input, shape index: {}]
  %s5 = inlined_call_operand.hbm [shape: bf16[2,8,8,128], index: 5, kind: output, shape index: {}]
  %s6 = sld [smem:[#allocation0]]
  $region34: #{tpu_custom_call.1} parent=0
    _
  %s8 = ssub.s32 1, %s6
  %s9 = scalar_select 0, %s8, %s6
  $region1: #{tpu_custom_call.1} parent=0
    #allocation4 [shape = 'u8[294912]{0}', space=vmem, size = 0x48000, scoped, tag = 'input window, operand 2, single buffered']
    #allocation5 [shape = 's32[1]{0}', space=sflag, size = 0x4, scoped, tag = 'scoped memory for tpu_custom_call.1']
    #allocation6 [shape = 's32[1]{0}', space=sflag, size = 0x4, scoped, tag = 'scoped memory for tpu_custom_call.1']
    #allocation7 [shape = 'u8[32768]{0}', space=vmem, size = 0x8000, scoped, tag = 'output window, operand 0, single buffered']
    %10 = vsyncpa [#allocation5], 0
    %11 = vsyncpa [#allocation6], 0
    // Predicated region
    $region2: #{tpu_custom_call.1} parent=1 // pred_check
      _
    $region3: #{tpu_custom_call.1} parent=1 // pred_check_branch
      %13 = sbr.rel (0) target = $region5
    $region4: #{tpu_custom_call.1} parent=1 // pred_region
      _
    $region5: #{tpu_custom_call.1} parent=1 // pred_fallthru
      _
    // Predicated region
    $region6: #{tpu_custom_call.1} parent=1 // pred_check
      _
    $region7: #{tpu_custom_call.1} parent=1 // pred_check_branch
      %15 = sbr.rel (0) target = $region9
    $region8: #{tpu_custom_call.1} parent=1 // pred_region
      _
    $region9: #{tpu_custom_call.1} parent=1 // pred_fallthru
      _
    // Predicated region
    $region10: #{tpu_custom_call.1} parent=1 // pred_check
      _
    $region11: #{tpu_custom_call.1} parent=1 // pred_check_branch
      %17 = sbr.rel (0) target = $region13
    $region12: #{tpu_custom_call.1} parent=1 // pred_region
      %s19 = ssub.s32 9216, 9216
      %20 = vsyncadd [#allocation5], %s19
      %s21 = sshll.u32 [#allocation4], 4
      %s22 = int_to_ptr.vmem [resolvable:$true] %s21
      %27 = dma.hbm_to_vmem [thread:$0]  %s2, 9216, %s22, [#allocation5], 64, 64, 4
    $region13: #{tpu_custom_call.1} parent=1 // pred_fallthru
      _
    // Predicated region
    $region14: #{tpu_custom_call.1} parent=1 // pred_check
      _
    $region15: #{tpu_custom_call.1} parent=1 // pred_check_branch
      %29 = sbr.rel (0) target = $region17
    $region16: #{tpu_custom_call.1} parent=1 // pred_region
      _
    $region17: #{tpu_custom_call.1} parent=1 // pred_fallthru
      _
    // Predicated region
    $region18: #{tpu_custom_call.1} parent=1 // pred_check
      _
    $region19: #{tpu_custom_call.1} parent=1 // pred_check_branch
      %31 = sbr.rel (0) target = $region21
    $region20: #{tpu_custom_call.1} parent=1 // pred_region
      _
    $region21: #{tpu_custom_call.1} parent=1 // pred_fallthru
      _
    // Predicated region
    $region22: #{tpu_custom_call.1} parent=1 // pred_check
      _
    $region23: #{tpu_custom_call.1} parent=1 // pred_check_branch
      %33 = sbr.rel (0) target = $region25
    $region24: #{tpu_custom_call.1} parent=1 // pred_region
      %34 = dma.done [#allocation5], 9216
    $region25: #{tpu_custom_call.1} parent=1 // pred_fallthru
      _
    %v36 = vld [vmem:[%s0] sm:$0xf]
    %v37 = vld [vmem:[%s0 + $0x8] sm:$0xf]
    %v38 = vld [vmem:[%s0 + $0x10] sm:$0xf]
    %v39 = vld [vmem:[%s0 + $0x18] sm:$0xf]
    %v40 = vld [vmem:[%s0 + $0x20] sm:$0xf]
    %v41 = vld [vmem:[%s0 + $0x28] sm:$0xf]
    %v42 = vld [vmem:[%s0 + $0x30] sm:$0xf]
    %v43 = vld [vmem:[%s0 + $0x38] sm:$0xf]
    %v44 = vld [vmem:[%s0 + $0x120] sm:$0xf]
    %v45 = vld [vmem:[%s0 + $0x128] sm:$0xf]
    %v46 = vld [vmem:[%s0 + $0x130] sm:$0xf]
    %v47 = vld [vmem:[%s0 + $0x138] sm:$0xf]
    %v48 = vld [vmem:[%s0 + $0x140] sm:$0xf]
    %v49 = vld [vmem:[%s0 + $0x148] sm:$0xf]
    %v50 = vld [vmem:[%s0 + $0x150] sm:$0xf]
    %v51 = vld [vmem:[%s0 + $0x158] sm:$0xf]
    %v68 = vunpack.c.l.b16 %v36
    %v69 = vunpack.c.l.b16 %v37
    %v70 = vunpack.c.l.b16 %v38
    %v71 = vunpack.c.l.b16 %v39
    %v72 = vunpack.c.l.b16 %v40
    %v73 = vunpack.c.l.b16 %v41
    %v74 = vunpack.c.l.b16 %v42
    %v75 = vunpack.c.l.b16 %v43
    %v76 = vunpack.c.l.b16 %v44
    %v77 = vunpack.c.l.b16 %v45
    %v78 = vunpack.c.l.b16 %v46
    %v79 = vunpack.c.l.b16 %v47
    %v80 = vunpack.c.l.b16 %v48
    %v81 = vunpack.c.l.b16 %v49
    %v82 = vunpack.c.l.b16 %v50
    %v83 = vunpack.c.l.b16 %v51
    %v84 = vpack.c.b16 %v69, %v68
    %v85 = vpack.c.b16 %v71, %v70
    %v86 = vpack.c.b16 %v73, %v72
    %v87 = vpack.c.b16 %v75, %v74
    %v88 = vpack.c.b16 %v77, %v76
    %v89 = vpack.c.b16 %v79, %v78
    %v90 = vpack.c.b16 %v81, %v80
    %v91 = vpack.c.b16 %v83, %v82
    %100 = vst [vmem:[#allocation2] sm:$0xff] %v84
    %101 = vst [vmem:[#allocation2 + $0x48] sm:$0xff] %v85
    %102 = vst [vmem:[#allocation2 + $0x90] sm:$0xff] %v86
    %103 = vst [vmem:[#allocation2 + $0xd8] sm:$0xff] %v87
    %104 = vst [vmem:[#allocation2 + $0x120] sm:$0xff] %v88
    %105 = vst [vmem:[#allocation2 + $0x168] sm:$0xff] %v89
    %106 = vst [vmem:[#allocation2 + $0x1b0] sm:$0xff] %v90
    %107 = vst [vmem:[#allocation2 + $0x1f8] sm:$0xff] %v91
    %s108 = scalar_lea.vmem %s0, 72
    %v109 = vld [vmem:[%s108] sm:$0xf]
    %v110 = vld [vmem:[%s108 + $0x8] sm:$0xf]
    %v111 = vld [vmem:[%s108 + $0x10] sm:$0xf]
    %v112 = vld [vmem:[%s108 + $0x18] sm:$0xf]
    %v113 = vld [vmem:[%s108 + $0x20] sm:$0xf]
    %v114 = vld [vmem:[%s108 + $0x28] sm:$0xf]
    %v115 = vld [vmem:[%s108 + $0x30] sm:$0xf]
    %v116 = vld [vmem:[%s108 + $0x38] sm:$0xf]
    %v117 = vld [vmem:[%s108 + $0x120] sm:$0xf]
    %v118 = vld [vmem:[%s108 + $0x128] sm:$0xf]
    %v119 = vld [vmem:[%s108 + $0x130] sm:$0xf]
    %v120 = vld [vmem:[%s108 + $0x138] sm:$0xf]
    %v121 = vld [vmem:[%s108 + $0x140] sm:$0xf]
    %v122 = vld [vmem:[%s108 + $0x148] sm:$0xf]
    %v123 = vld [vmem:[%s108 + $0x150] sm:$0xf]
    %v124 = vld [vmem:[%s108 + $0x158] sm:$0xf]
    %v141 = vunpack.c.l.b16 %v109
    %v142 = vunpack.c.l.b16 %v110
    %v143 = vunpack.c.l.b16 %v111
    %v144 = vunpack.c.l.b16 %v112
    %v145 = vunpack.c.l.b16 %v113
    %v146 = vunpack.c.l.b16 %v114
    %v147 = vunpack.c.l.b16 %v115
    %v148 = vunpack.c.l.b16 %v116
    %v149 = vunpack.c.l.b16 %v117
    %v150 = vunpack.c.l.b16 %v118
    %v151 = vunpack.c.l.b16 %v119
    %v152 = vunpack.c.l.b16 %v120
    %v153 = vunpack.c.l.b16 %v121
    %v154 = vunpack.c.l.b16 %v122
    %v155 = vunpack.c.l.b16 %v123
    %v156 = vunpack.c.l.b16 %v124
    %v157 = vpack.c.b16 %v142, %v141
    %v158 = vpack.c.b16 %v144, %v143
    %v159 = vpack.c.b16 %v146, %v145
    %v160 = vpack.c.b16 %v148, %v147
    %v161 = vpack.c.b16 %v150, %v149
    %v162 = vpack.c.b16 %v152, %v151
    %v163 = vpack.c.b16 %v154, %v153
    %v164 = vpack.c.b16 %v156, %v155
    %173 = vst [vmem:[#allocation2 + $0x8] sm:$0xff] %v157
    %174 = vst [vmem:[#allocation2 + $0x50] sm:$0xff] %v158
    %175 = vst [vmem:[#allocation2 + $0x98] sm:$0xff] %v159
    %176 = vst [vmem:[#allocation2 + $0xe0] sm:$0xff] %v160
    %177 = vst [vmem:[#allocation2 + $0x128] sm:$0xff] %v161
    %178 = vst [vmem:[#allocation2 + $0x170] sm:$0xff] %v162
    %179 = vst [vmem:[#allocation2 + $0x1b8] sm:$0xff] %v163
    %180 = vst [vmem:[#allocation2 + $0x200] sm:$0xff] %v164
    %v181 = vld [vmem:[%s0] sm:$0xf]
    %v182 = vld [vmem:[%s0 + $0x4] sm:$0x1]
    %v183 = vld [vmem:[%s0 + $0x8] sm:$0xf]
    %v184 = vld [vmem:[%s0 + $0xc] sm:$0x1]
    %v185 = vld [vmem:[%s0 + $0x10] sm:$0xf]
    %v186 = vld [vmem:[%s0 + $0x14] sm:$0x1]
    %v187 = vld [vmem:[%s0 + $0x18] sm:$0xf]
    %v188 = vld [vmem:[%s0 + $0x1c] sm:$0x1]
    %v189 = vld [vmem:[%s0 + $0x20] sm:$0xf]
    %v190 = vld [vmem:[%s0 + $0x24] sm:$0x1]
    %v191 = vld [vmem:[%s0 + $0x28] sm:$0xf]
    %v192 = vld [vmem:[%s0 + $0x2c] sm:$0x1]
    %v193 = vld [vmem:[%s0 + $0x30] sm:$0xf]
    %v194 = vld [vmem:[%s0 + $0x34] sm:$0x1]
    %v195 = vld [vmem:[%s0 + $0x38] sm:$0xf]
    %v196 = vld [vmem:[%s0 + $0x3c] sm:$0x1]
    %v197 = vld [vmem:[%s0 + $0x120] sm:$0xf]
    %v198 = vld [vmem:[%s0 + $0x124] sm:$0x1]
    %v199 = vld [vmem:[%s0 + $0x128] sm:$0xf]
    %v200 = vld [vmem:[%s0 + $0x12c] sm:$0x1]
    %v201 = vld [vmem:[%s0 + $0x130] sm:$0xf]
    %v202 = vld [vmem:[%s0 + $0x134] sm:$0x1]
    %v203 = vld [vmem:[%s0 + $0x138] sm:$0xf]
    %v204 = vld [vmem:[%s0 + $0x13c] sm:$0x1]
    %v205 = vld [vmem:[%s0 + $0x140] sm:$0xf]
    %v206 = vld [vmem:[%s0 + $0x144] sm:$0x1]
    %v207 = vld [vmem:[%s0 + $0x148] sm:$0xf]
    %v208 = vld [vmem:[%s0 + $0x14c] sm:$0x1]
    %v209 = vld [vmem:[%s0 + $0x150] sm:$0xf]
    %v210 = vld [vmem:[%s0 + $0x154] sm:$0x1]
    %v211 = vld [vmem:[%s0 + $0x158] sm:$0xf]
    %v212 = vld [vmem:[%s0 + $0x15c] sm:$0x1]
    %vm213 = vsmask.f32 3328
    %vm214 = vsmask.f32 7440
    %vm215 = vmor %vm213, %vm214
    %v217 = vshrl.u32 %v181, 16
    %v219 = vrot.slane %v217, 4
    %v220 = vshll.u32 %v181, 16
    %v222 = vrot.slane %v220, 5
    %v223 = vor.u32 %v219, %v222
    %v224 = vrot.slane %v223, 4
    %v226 = vshll.u32 %v182, 16
    %v228 = vrot.slane %v226, 5
    %v229 = vsel %vm215, %v224, %v228
    %v231 = vshrl.u32 %v183, 16
    %v233 = vrot.slane %v231, 4
    %v234 = vshll.u32 %v183, 16
    %v236 = vrot.slane %v234, 5
    %v237 = vor.u32 %v233, %v236
    %v238 = vrot.slane %v237, 4
    %v240 = vshll.u32 %v184, 16
    %v242 = vrot.slane %v240, 5
    %v243 = vsel %vm215, %v238, %v242
    %v245 = vshrl.u32 %v185, 16
    %v247 = vrot.slane %v245, 4
    %v248 = vshll.u32 %v185, 16
    %v250 = vrot.slane %v248, 5
    %v251 = vor.u32 %v247, %v250
    %v252 = vrot.slane %v251, 4
    %v254 = vshll.u32 %v186, 16
    %v256 = vrot.slane %v254, 5
    %v257 = vsel %vm215, %v252, %v256
    %v259 = vshrl.u32 %v187, 16
    %v261 = vrot.slane %v259, 4
    %v262 = vshll.u32 %v187, 16
    %v264 = vrot.slane %v262, 5
    %v265 = vor.u32 %v261, %v264
    %v266 = vrot.slane %v265, 4
    %v268 = vshll.u32 %v188, 16
    %v270 = vrot.slane %v268, 5
    %v271 = vsel %vm215, %v266, %v270
    %v273 = vshrl.u32 %v189, 16
    %v275 = vrot.slane %v273, 4
    %v276 = vshll.u32 %v189, 16
    %v278 = vrot.slane %v276, 5
    %v279 = vor.u32 %v275, %v278
    %v280 = vrot.slane %v279, 4
    %v282 = vshll.u32 %v190, 16
    %v284 = vrot.slane %v282, 5
    %v285 = vsel %vm215, %v280, %v284
    %v287 = vshrl.u32 %v191, 16
    %v289 = vrot.slane %v287, 4
    %v290 = vshll.u32 %v191, 16
    %v292 = vrot.slane %v290, 5
    %v293 = vor.u32 %v289, %v292
    %v294 = vrot.slane %v293, 4
    %v296 = vshll.u32 %v192, 16
    %v298 = vrot.slane %v296, 5
    %v299 = vsel %vm215, %v294, %v298
    %v301 = vshrl.u32 %v193, 16
    %v303 = vrot.slane %v301, 4
    %v304 = vshll.u32 %v193, 16
    %v306 = vrot.slane %v304, 5
    %v307 = vor.u32 %v303, %v306
    %v308 = vrot.slane %v307, 4
    %v310 = vshll.u32 %v194, 16
    %v312 = vrot.slane %v310, 5
    %v313 = vsel %vm215, %v308, %v312
    %v315 = vshrl.u32 %v195, 16
    %v317 = vrot.slane %v315, 4
    %v318 = vshll.u32 %v195, 16
    %v320 = vrot.slane %v318, 5
    %v321 = vor.u32 %v317, %v320
    %v322 = vrot.slane %v321, 4
    %v324 = vshll.u32 %v196, 16
    %v326 = vrot.slane %v324, 5
    %v327 = vsel %vm215, %v322, %v326
    %v329 = vshrl.u32 %v197, 16
    %v331 = vrot.slane %v329, 4
    %v332 = vshll.u32 %v197, 16
    %v334 = vrot.slane %v332, 5
    %v335 = vor.u32 %v331, %v334
    %v336 = vrot.slane %v335, 4
    %v338 = vshll.u32 %v198, 16
    %v340 = vrot.slane %v338, 5
    %v341 = vsel %vm215, %v336, %v340
    %v343 = vshrl.u32 %v199, 16
    %v345 = vrot.slane %v343, 4
    %v346 = vshll.u32 %v199, 16
    %v348 = vrot.slane %v346, 5
    %v349 = vor.u32 %v345, %v348
    %v350 = vrot.slane %v349, 4
    %v352 = vshll.u32 %v200, 16
    %v354 = vrot.slane %v352, 5
    %v355 = vsel %vm215, %v350, %v354
    %v357 = vshrl.u32 %v201, 16
    %v359 = vrot.slane %v357, 4
    %v360 = vshll.u32 %v201, 16
    %v362 = vrot.slane %v360, 5
    %v363 = vor.u32 %v359, %v362
    %v364 = vrot.slane %v363, 4
    %v366 = vshll.u32 %v202, 16
    %v368 = vrot.slane %v366, 5
    %v369 = vsel %vm215, %v364, %v368
    %v371 = vshrl.u32 %v203, 16
    %v373 = vrot.slane %v371, 4
    %v374 = vshll.u32 %v203, 16
    %v376 = vrot.slane %v374, 5
    %v377 = vor.u32 %v373, %v376
    %v378 = vrot.slane %v377, 4
    %v380 = vshll.u32 %v204, 16
    %v382 = vrot.slane %v380, 5
    %v383 = vsel %vm215, %v378, %v382
    %v385 = vshrl.u32 %v205, 16
    %v387 = vrot.slane %v385, 4
    %v388 = vshll.u32 %v205, 16
    %v390 = vrot.slane %v388, 5
    %v391 = vor.u32 %v387, %v390
    %v392 = vrot.slane %v391, 4
    %v394 = vshll.u32 %v206, 16
    %v396 = vrot.slane %v394, 5
    %v397 = vsel %vm215, %v392, %v396
    %v399 = vshrl.u32 %v207, 16
    %v401 = vrot.slane %v399, 4
    %v402 = vshll.u32 %v207, 16
    %v404 = vrot.slane %v402, 5
    %v405 = vor.u32 %v401, %v404
    %v406 = vrot.slane %v405, 4
    %v408 = vshll.u32 %v208, 16
    %v410 = vrot.slane %v408, 5
    %v411 = vsel %vm215, %v406, %v410
    %v413 = vshrl.u32 %v209, 16
    %v415 = vrot.slane %v413, 4
    %v416 = vshll.u32 %v209, 16
    %v418 = vrot.slane %v416, 5
    %v419 = vor.u32 %v415, %v418
    %v420 = vrot.slane %v419, 4
    %v422 = vshll.u32 %v210, 16
    %v424 = vrot.slane %v422, 5
    %v425 = vsel %vm215, %v420, %v424
    %v427 = vshrl.u32 %v211, 16
    %v429 = vrot.slane %v427, 4
    %v430 = vshll.u32 %v211, 16
    %v432 = vrot.slane %v430, 5
    %v433 = vor.u32 %v429, %v432
    %v434 = vrot.slane %v433, 4
    %v436 = vshll.u32 %v212, 16
    %v438 = vrot.slane %v436, 5
    %v439 = vsel %vm215, %v434, %v438
    %v440 = vunpack.c.l.b16 %v229
    %v441 = vunpack.c.l.b16 %v243
    %v442 = vunpack.c.l.b16 %v257
    %v443 = vunpack.c.l.b16 %v271
    %v444 = vunpack.c.l.b16 %v285
    %v445 = vunpack.c.l.b16 %v299
    %v446 = vunpack.c.l.b16 %v313
    %v447 = vunpack.c.l.b16 %v327
    %v448 = vunpack.c.l.b16 %v341
    %v449 = vunpack.c.l.b16 %v355
    %v450 = vunpack.c.l.b16 %v369
    %v451 = vunpack.c.l.b16 %v383
    %v452 = vunpack.c.l.b16 %v397
    %v453 = vunpack.c.l.b16 %v411
    %v454 = vunpack.c.l.b16 %v425
    %v455 = vunpack.c.l.b16 %v439
    %v456 = vpack.c.b16 %v441, %v440
    %v457 = vpack.c.b16 %v443, %v442
    %v458 = vpack.c.b16 %v445, %v444
    %v459 = vpack.c.b16 %v447, %v446
    %v460 = vpack.c.b16 %v449, %v448
    %v461 = vpack.c.b16 %v451, %v450
    %v462 = vpack.c.b16 %v453, %v452
    %v463 = vpack.c.b16 %v455, %v454
    %472 = vst [vmem:[#allocation2 + $0x10] sm:$0xff] %v456
    %473 = vst [vmem:[#allocation2 + $0x58] sm:$0xff] %v457
    %474 = vst [vmem:[#allocation2 + $0xa0] sm:$0xff] %v458
    %475 = vst [vmem:[#allocation2 + $0xe8] sm:$0xff] %v459
    %476 = vst [vmem:[#allocation2 + $0x130] sm:$0xff] %v460
    %477 = vst [vmem:[#allocation2 + $0x178] sm:$0xff] %v461
    %478 = vst [vmem:[#allocation2 + $0x1c0] sm:$0xff] %v462
    %479 = vst [vmem:[#allocation2 + $0x208] sm:$0xff] %v463
    %s480 = scalar_lea.vmem %s0, 144
    %v481 = vld [vmem:[%s480] sm:$0xf]
    %v482 = vld [vmem:[%s480 + $0x8] sm:$0xf]
    %v483 = vld [vmem:[%s480 + $0x10] sm:$0xf]
    %v484 = vld [vmem:[%s480 + $0x18] sm:$0xf]
    %v485 = vld [vmem:[%s480 + $0x20] sm:$0xf]
    %v486 = vld [vmem:[%s480 + $0x28] sm:$0xf]
    %v487 = vld [vmem:[%s480 + $0x30] sm:$0xf]
    %v488 = vld [vmem:[%s480 + $0x38] sm:$0xf]
    %v489 = vld [vmem:[%s480 + $0x120] sm:$0xf]
    %v490 = vld [vmem:[%s480 + $0x128] sm:$0xf]
    %v491 = vld [vmem:[%s480 + $0x130] sm:$0xf]
    %v492 = vld [vmem:[%s480 + $0x138] sm:$0xf]
    %v493 = vld [vmem:[%s480 + $0x140] sm:$0xf]
    %v494 = vld [vmem:[%s480 + $0x148] sm:$0xf]
    %v495 = vld [vmem:[%s480 + $0x150] sm:$0xf]
    %v496 = vld [vmem:[%s480 + $0x158] sm:$0xf]
    %v513 = vunpack.c.l.b16 %v481
    %v514 = vunpack.c.l.b16 %v482
    %v515 = vunpack.c.l.b16 %v483
    %v516 = vunpack.c.l.b16 %v484
    %v517 = vunpack.c.l.b16 %v485
    %v518 = vunpack.c.l.b16 %v486
    %v519 = vunpack.c.l.b16 %v487
    %v520 = vunpack.c.l.b16 %v488
    %v521 = vunpack.c.l.b16 %v489
    %v522 = vunpack.c.l.b16 %v490
    %v523 = vunpack.c.l.b16 %v491
    %v524 = vunpack.c.l.b16 %v492
    %v525 = vunpack.c.l.b16 %v493
    %v526 = vunpack.c.l.b16 %v494
    %v527 = vunpack.c.l.b16 %v495
    %v528 = vunpack.c.l.b16 %v496
    %v529 = vpack.c.b16 %v514, %v513
    %v530 = vpack.c.b16 %v516, %v515
    %v531 = vpack.c.b16 %v518, %v517
    %v532 = vpack.c.b16 %v520, %v519
    %v533 = vpack.c.b16 %v522, %v521
    %v534 = vpack.c.b16 %v524, %v523
    %v535 = vpack.c.b16 %v526, %v525
    %v536 = vpack.c.b16 %v528, %v527
    %545 = vst [vmem:[#allocation2 + $0x18] sm:$0xff] %v529
    %546 = vst [vmem:[#allocation2 + $0x60] sm:$0xff] %v530
    %547 = vst [vmem:[#allocation2 + $0xa8] sm:$0xff] %v531
    %548 = vst [vmem:[#allocation2 + $0xf0] sm:$0xff] %v532
    %549 = vst [vmem:[#allocation2 + $0x138] sm:$0xff] %v533
    %550 = vst [vmem:[#allocation2 + $0x180] sm:$0xff] %v534
    %551 = vst [vmem:[#allocation2 + $0x1c8] sm:$0xff] %v535
    %552 = vst [vmem:[#allocation2 + $0x210] sm:$0xff] %v536
    %s553 = scalar_lea.vmem %s0, 216
    %v554 = vld [vmem:[%s553] sm:$0xf]
    %v555 = vld [vmem:[%s553 + $0x8] sm:$0xf]
    %v556 = vld [vmem:[%s553 + $0x10] sm:$0xf]
    %v557 = vld [vmem:[%s553 + $0x18] sm:$0xf]
    %v558 = vld [vmem:[%s553 + $0x20] sm:$0xf]
    %v559 = vld [vmem:[%s553 + $0x28] sm:$0xf]
    %v560 = vld [vmem:[%s553 + $0x30] sm:$0xf]
    %v561 = vld [vmem:[%s553 + $0x38] sm:$0xf]
    %v562 = vld [vmem:[%s553 + $0x120] sm:$0xf]
    %v563 = vld [vmem:[%s553 + $0x128] sm:$0xf]
    %v564 = vld [vmem:[%s553 + $0x130] sm:$0xf]
    %v565 = vld [vmem:[%s553 + $0x138] sm:$0xf]
    %v566 = vld [vmem:[%s553 + $0x140] sm:$0xf]
    %v567 = vld [vmem:[%s553 + $0x148] sm:$0xf]
    %v568 = vld [vmem:[%s553 + $0x150] sm:$0xf]
    %v569 = vld [vmem:[%s553 + $0x158] sm:$0xf]
    %v586 = vunpack.c.l.b16 %v554
    %v587 = vunpack.c.l.b16 %v555
    %v588 = vunpack.c.l.b16 %v556
    %v589 = vunpack.c.l.b16 %v557
    %v590 = vunpack.c.l.b16 %v558
    %v591 = vunpack.c.l.b16 %v559
    %v592 = vunpack.c.l.b16 %v560
    %v593 = vunpack.c.l.b16 %v561
    %v594 = vunpack.c.l.b16 %v562
    %v595 = vunpack.c.l.b16 %v563
    %v596 = vunpack.c.l.b16 %v564
    %v597 = vunpack.c.l.b16 %v565
    %v598 = vunpack.c.l.b16 %v566
    %v599 = vunpack.c.l.b16 %v567
    %v600 = vunpack.c.l.b16 %v568
    %v601 = vunpack.c.l.b16 %v569
    %v602 = vpack.c.b16 %v587, %v586
    %v603 = vpack.c.b16 %v589, %v588
    %v604 = vpack.c.b16 %v591, %v590
    %v605 = vpack.c.b16 %v593, %v592
    %v606 = vpack.c.b16 %v595, %v594
    %v607 = vpack.c.b16 %v597, %v596
    %v608 = vpack.c.b16 %v599, %v598
    %v609 = vpack.c.b16 %v601, %v600
    %618 = vst [vmem:[#allocation2 + $0x20] sm:$0xff] %v602
    %619 = vst [vmem:[#allocation2 + $0x68] sm:$0xff] %v603
    %620 = vst [vmem:[#allocation2 + $0xb0] sm:$0xff] %v604
    %621 = vst [vmem:[#allocation2 + $0xf8] sm:$0xff] %v605
    %622 = vst [vmem:[#allocation2 + $0x140] sm:$0xff] %v606
    %623 = vst [vmem:[#allocation2 + $0x188] sm:$0xff] %v607
    %624 = vst [vmem:[#allocation2 + $0x1d0] sm:$0xff] %v608
    %625 = vst [vmem:[#allocation2 + $0x218] sm:$0xff] %v609
    %v626 = vld [vmem:[%s480] sm:$0xf]
    %v627 = vld [vmem:[%s480 + $0x4] sm:$0x1]
    %v628 = vld [vmem:[%s480 + $0x8] sm:$0xf]
    %v629 = vld [vmem:[%s480 + $0xc] sm:$0x1]
    %v630 = vld [vmem:[%s480 + $0x10] sm:$0xf]
    %v631 = vld [vmem:[%s480 + $0x14] sm:$0x1]
    %v632 = vld [vmem:[%s480 + $0x18] sm:$0xf]
    %v633 = vld [vmem:[%s480 + $0x1c] sm:$0x1]
    %v634 = vld [vmem:[%s480 + $0x20] sm:$0xf]
    %v635 = vld [vmem:[%s480 + $0x24] sm:$0x1]
    %v636 = vld [vmem:[%s480 + $0x28] sm:$0xf]
    %v637 = vld [vmem:[%s480 + $0x2c] sm:$0x1]
    %v638 = vld [vmem:[%s480 + $0x30] sm:$0xf]
    %v639 = vld [vmem:[%s480 + $0x34] sm:$0x1]
    %v640 = vld [vmem:[%s480 + $0x38] sm:$0xf]
    %v641 = vld [vmem:[%s480 + $0x3c] sm:$0x1]
    %v642 = vld [vmem:[%s480 + $0x120] sm:$0xf]
    %v643 = vld [vmem:[%s480 + $0x124] sm:$0x1]
    %v644 = vld [vmem:[%s480 + $0x128] sm:$0xf]
    %v645 = vld [vmem:[%s480 + $0x12c] sm:$0x1]
    %v646 = vld [vmem:[%s480 + $0x130] sm:$0xf]
    %v647 = vld [vmem:[%s480 + $0x134] sm:$0x1]
    %v648 = vld [vmem:[%s480 + $0x138] sm:$0xf]
    %v649 = vld [vmem:[%s480 + $0x13c] sm:$0x1]
    %v650 = vld [vmem:[%s480 + $0x140] sm:$0xf]
    %v651 = vld [vmem:[%s480 + $0x144] sm:$0x1]
    %v652 = vld [vmem:[%s480 + $0x148] sm:$0xf]
    %v653 = vld [vmem:[%s480 + $0x14c] sm:$0x1]
    %v654 = vld [vmem:[%s480 + $0x150] sm:$0xf]
    %v655 = vld [vmem:[%s480 + $0x154] sm:$0x1]
    %v656 = vld [vmem:[%s480 + $0x158] sm:$0xf]
    %v657 = vld [vmem:[%s480 + $0x15c] sm:$0x1]
    %v659 = vshrl.u32 %v626, 16
    %v661 = vrot.slane %v659, 4
    %v662 = vshll.u32 %v626, 16
    %v664 = vrot.slane %v662, 5
    %v665 = vor.u32 %v661, %v664
    %v666 = vrot.slane %v665, 4
    %v668 = vshll.u32 %v627, 16
    %v670 = vrot.slane %v668, 5
    %v671 = vsel %vm215, %v666, %v670
    %v673 = vshrl.u32 %v628, 16
    %v675 = vrot.slane %v673, 4
    %v676 = vshll.u32 %v628, 16
    %v678 = vrot.slane %v676, 5
    %v679 = vor.u32 %v675, %v678
    %v680 = vrot.slane %v679, 4
    %v682 = vshll.u32 %v629, 16
    %v684 = vrot.slane %v682, 5
    %v685 = vsel %vm215, %v680, %v684
    %v687 = vshrl.u32 %v630, 16
    %v689 = vrot.slane %v687, 4
    %v690 = vshll.u32 %v630, 16
    %v692 = vrot.slane %v690, 5
    %v693 = vor.u32 %v689, %v692
    %v694 = vrot.slane %v693, 4
    %v696 = vshll.u32 %v631, 16
    %v698 = vrot.slane %v696, 5
    %v699 = vsel %vm215, %v694, %v698
    %v701 = vshrl.u32 %v632, 16
    %v703 = vrot.slane %v701, 4
    %v704 = vshll.u32 %v632, 16
    %v706 = vrot.slane %v704, 5
    %v707 = vor.u32 %v703, %v706
    %v708 = vrot.slane %v707, 4
    %v710 = vshll.u32 %v633, 16
    %v712 = vrot.slane %v710, 5
    %v713 = vsel %vm215, %v708, %v712
    %v715 = vshrl.u32 %v634, 16
    %v717 = vrot.slane %v715, 4
    %v718 = vshll.u32 %v634, 16
    %v720 = vrot.slane %v718, 5
    %v721 = vor.u32 %v717, %v720
    %v722 = vrot.slane %v721, 4
    %v724 = vshll.u32 %v635, 16
    %v726 = vrot.slane %v724, 5
    %v727 = vsel %vm215, %v722, %v726
    %v729 = vshrl.u32 %v636, 16
    %v731 = vrot.slane %v729, 4
    %v732 = vshll.u32 %v636, 16
    %v734 = vrot.slane %v732, 5
    %v735 = vor.u32 %v731, %v734
    %v736 = vrot.slane %v735, 4
    %v738 = vshll.u32 %v637, 16
    %v740 = vrot.slane %v738, 5
    %v741 = vsel %vm215, %v736, %v740
    %v743 = vshrl.u32 %v638, 16
    %v745 = vrot.slane %v743, 4
    %v746 = vshll.u32 %v638, 16
    %v748 = vrot.slane %v746, 5
    %v749 = vor.u32 %v745, %v748
    %v750 = vrot.slane %v749, 4
    %v752 = vshll.u32 %v639, 16
    %v754 = vrot.slane %v752, 5
    %v755 = vsel %vm215, %v750, %v754
    %v757 = vshrl.u32 %v640, 16
    %v759 = vrot.slane %v757, 4
    %v760 = vshll.u32 %v640, 16
    %v762 = vrot.slane %v760, 5
    %v763 = vor.u32 %v759, %v762
    %v764 = vrot.slane %v763, 4
    %v766 = vshll.u32 %v641, 16
    %v768 = vrot.slane %v766, 5
    %v769 = vsel %vm215, %v764, %v768
    %v771 = vshrl.u32 %v642, 16
    %v773 = vrot.slane %v771, 4
    %v774 = vshll.u32 %v642, 16
    %v776 = vrot.slane %v774, 5
    %v777 = vor.u32 %v773, %v776
    %v778 = vrot.slane %v777, 4
    %v780 = vshll.u32 %v643, 16
    %v782 = vrot.slane %v780, 5
    %v783 = vsel %vm215, %v778, %v782
    %v785 = vshrl.u32 %v644, 16
    %v787 = vrot.slane %v785, 4
    %v788 = vshll.u32 %v644, 16
    %v790 = vrot.slane %v788, 5
    %v791 = vor.u32 %v787, %v790
    %v792 = vrot.slane %v791, 4
    %v794 = vshll.u32 %v645, 16
    %v796 = vrot.slane %v794, 5
    %v797 = vsel %vm215, %v792, %v796
    %v799 = vshrl.u32 %v646, 16
    %v801 = vrot.slane %v799, 4
    %v802 = vshll.u32 %v646, 16
    %v804 = vrot.slane %v802, 5
    %v805 = vor.u32 %v801, %v804
    %v806 = vrot.slane %v805, 4
    %v808 = vshll.u32 %v647, 16
    %v810 = vrot.slane %v808, 5
    %v811 = vsel %vm215, %v806, %v810
    %v813 = vshrl.u32 %v648, 16
    %v815 = vrot.slane %v813, 4
    %v816 = vshll.u32 %v648, 16
    %v818 = vrot.slane %v816, 5
    %v819 = vor.u32 %v815, %v818
    %v820 = vrot.slane %v819, 4
    %v822 = vshll.u32 %v649, 16
    %v824 = vrot.slane %v822, 5
    %v825 = vsel %vm215, %v820, %v824
    %v827 = vshrl.u32 %v650, 16
    %v829 = vrot.slane %v827, 4
    %v830 = vshll.u32 %v650, 16
    %v832 = vrot.slane %v830, 5
    %v833 = vor.u32 %v829, %v832
    %v834 = vrot.slane %v833, 4
    %v836 = vshll.u32 %v651, 16
    %v838 = vrot.slane %v836, 5
    %v839 = vsel %vm215, %v834, %v838
    %v841 = vshrl.u32 %v652, 16
    %v843 = vrot.slane %v841, 4
    %v844 = vshll.u32 %v652, 16
    %v846 = vrot.slane %v844, 5
    %v847 = vor.u32 %v843, %v846
    %v848 = vrot.slane %v847, 4
    %v850 = vshll.u32 %v653, 16
    %v852 = vrot.slane %v850, 5
    %v853 = vsel %vm215, %v848, %v852
    %v855 = vshrl.u32 %v654, 16
    %v857 = vrot.slane %v855, 4
    %v858 = vshll.u32 %v654, 16
    %v860 = vrot.slane %v858, 5
    %v861 = vor.u32 %v857, %v860
    %v862 = vrot.slane %v861, 4
    %v864 = vshll.u32 %v655, 16
    %v866 = vrot.slane %v864, 5
    %v867 = vsel %vm215, %v862, %v866
    %v869 = vshrl.u32 %v656, 16
    %v871 = vrot.slane %v869, 4
    %v872 = vshll.u32 %v656, 16
    %v874 = vrot.slane %v872, 5
    %v875 = vor.u32 %v871, %v874
    %v876 = vrot.slane %v875, 4
    %v878 = vshll.u32 %v657, 16
    %v880 = vrot.slane %v878, 5
    %v881 = vsel %vm215, %v876, %v880
    %v882 = vunpack.c.l.b16 %v671
    %v883 = vunpack.c.l.b16 %v685
    %v884 = vunpack.c.l.b16 %v699
    %v885 = vunpack.c.l.b16 %v713
    %v886 = vunpack.c.l.b16 %v727
    %v887 = vunpack.c.l.b16 %v741
    %v888 = vunpack.c.l.b16 %v755
    %v889 = vunpack.c.l.b16 %v769
    %v890 = vunpack.c.l.b16 %v783
    %v891 = vunpack.c.l.b16 %v797
    %v892 = vunpack.c.l.b16 %v811
    %v893 = vunpack.c.l.b16 %v825
    %v894 = vunpack.c.l.b16 %v839
    %v895 = vunpack.c.l.b16 %v853
    %v896 = vunpack.c.l.b16 %v867
    %v897 = vunpack.c.l.b16 %v881
    %v898 = vpack.c.b16 %v883, %v882
    %v899 = vpack.c.b16 %v885, %v884
    %v900 = vpack.c.b16 %v887, %v886
    %v901 = vpack.c.b16 %v889, %v888
    %v902 = vpack.c.b16 %v891, %v890
    %v903 = vpack.c.b16 %v893, %v892
    %v904 = vpack.c.b16 %v895, %v894
    %v905 = vpack.c.b16 %v897, %v896
    %914 = vst [vmem:[#allocation2 + $0x28] sm:$0xff] %v898
    %915 = vst [vmem:[#allocation2 + $0x70] sm:$0xff] %v899
    %916 = vst [vmem:[#allocation2 + $0xb8] sm:$0xff] %v900
    %917 = vst [vmem:[#allocation2 + $0x100] sm:$0xff] %v901
    %918 = vst [vmem:[#allocation2 + $0x148] sm:$0xff] %v902
    %919 = vst [vmem:[#allocation2 + $0x190] sm:$0xff] %v903
    %920 = vst [vmem:[#allocation2 + $0x1d8] sm:$0xff] %v904
    %921 = vst [vmem:[#allocation2 + $0x220] sm:$0xff] %v905
    %s922 = scalar_lea.vmem %s0, 8
    %v923 = vld [vmem:[%s922] sm:$0xf]
    %v924 = vld [vmem:[%s922 + $0x8] sm:$0xf]
    %v925 = vld [vmem:[%s922 + $0x10] sm:$0xf]
    %v926 = vld [vmem:[%s922 + $0x18] sm:$0xf]
    %v927 = vld [vmem:[%s922 + $0x20] sm:$0xf]
    %v928 = vld [vmem:[%s922 + $0x28] sm:$0xf]
    %v929 = vld [vmem:[%s922 + $0x30] sm:$0xf]
    %v930 = vld [vmem:[%s922 + $0x38] sm:$0xf]
    %v931 = vld [vmem:[%s922 + $0x120] sm:$0xf]
    %v932 = vld [vmem:[%s922 + $0x128] sm:$0xf]
    %v933 = vld [vmem:[%s922 + $0x130] sm:$0xf]
    %v934 = vld [vmem:[%s922 + $0x138] sm:$0xf]
    %v935 = vld [vmem:[%s922 + $0x140] sm:$0xf]
    %v936 = vld [vmem:[%s922 + $0x148] sm:$0xf]
    %v937 = vld [vmem:[%s922 + $0x150] sm:$0xf]
    %v938 = vld [vmem:[%s922 + $0x158] sm:$0xf]
    %v955 = vunpack.c.l.b16 %v923
    %v956 = vunpack.c.l.b16 %v924
    %v957 = vunpack.c.l.b16 %v925
    %v958 = vunpack.c.l.b16 %v926
    %v959 = vunpack.c.l.b16 %v927
    %v960 = vunpack.c.l.b16 %v928
    %v961 = vunpack.c.l.b16 %v929
    %v962 = vunpack.c.l.b16 %v930
    %v963 = vunpack.c.l.b16 %v931
    %v964 = vunpack.c.l.b16 %v932
    %v965 = vunpack.c.l.b16 %v933
    %v966 = vunpack.c.l.b16 %v934
    %v967 = vunpack.c.l.b16 %v935
    %v968 = vunpack.c.l.b16 %v936
    %v969 = vunpack.c.l.b16 %v937
    %v970 = vunpack.c.l.b16 %v938
    %v971 = vpack.c.b16 %v956, %v955
    %v972 = vpack.c.b16 %v958, %v957
    %v973 = vpack.c.b16 %v960, %v959
    %v974 = vpack.c.b16 %v962, %v961
    %v975 = vpack.c.b16 %v964, %v963
    %v976 = vpack.c.b16 %v966, %v965
    %v977 = vpack.c.b16 %v968, %v967
    %v978 = vpack.c.b16 %v970, %v969
    %987 = vst [vmem:[#allocation2 + $0x30] sm:$0xff] %v971
    %988 = vst [vmem:[#allocation2 + $0x78] sm:$0xff] %v972
    %989 = vst [vmem:[#allocation2 + $0xc0] sm:$0xff] %v973
    %990 = vst [vmem:[#allocation2 + $0x108] sm:$0xff] %v974
    %991 = vst [vmem:[#allocation2 + $0x150] sm:$0xff] %v975
    %992 = vst [vmem:[#allocation2 + $0x198] sm:$0xff] %v976
    %993 = vst [vmem:[#allocation2 + $0x1e0] sm:$0xff] %v977
    %994 = vst [vmem:[#allocation2 + $0x228] sm:$0xff] %v978
    %s995 = scalar_lea.vmem %s0, 80
    %v996 = vld [vmem:[%s995] sm:$0xf]
    %v997 = vld [vmem:[%s995 + $0x8] sm:$0xf]
    %v998 = vld [vmem:[%s995 + $0x10] sm:$0xf]
    %v999 = vld [vmem:[%s995 + $0x18] sm:$0xf]
    %v1000 = vld [vmem:[%s995 + $0x20] sm:$0xf]
    %v1001 = vld [vmem:[%s995 + $0x28] sm:$0xf]
    %v1002 = vld [vmem:[%s995 + $0x30] sm:$0xf]
    %v1003 = vld [vmem:[%s995 + $0x38] sm:$0xf]
    %v1004 = vld [vmem:[%s995 + $0x120] sm:$0xf]
    %v1005 = vld [vmem:[%s995 + $0x128] sm:$0xf]
    %v1006 = vld [vmem:[%s995 + $0x130] sm:$0xf]
    %v1007 = vld [vmem:[%s995 + $0x138] sm:$0xf]
    %v1008 = vld [vmem:[%s995 + $0x140] sm:$0xf]
    %v1009 = vld [vmem:[%s995 + $0x148] sm:$0xf]
    %v1010 = vld [vmem:[%s995 + $0x150] sm:$0xf]
    %v1011 = vld [vmem:[%s995 + $0x158] sm:$0xf]
    %v1028 = vunpack.c.l.b16 %v996
    %v1029 = vunpack.c.l.b16 %v997
    %v1030 = vunpack.c.l.b16 %v998
    %v1031 = vunpack.c.l.b16 %v999
    %v1032 = vunpack.c.l.b16 %v1000
    %v1033 = vunpack.c.l.b16 %v1001
    %v1034 = vunpack.c.l.b16 %v1002
    %v1035 = vunpack.c.l.b16 %v1003
    %v1036 = vunpack.c.l.b16 %v1004
    %v1037 = vunpack.c.l.b16 %v1005
    %v1038 = vunpack.c.l.b16 %v1006
    %v1039 = vunpack.c.l.b16 %v1007
    %v1040 = vunpack.c.l.b16 %v1008
    %v1041 = vunpack.c.l.b16 %v1009
    %v1042 = vunpack.c.l.b16 %v1010
    %v1043 = vunpack.c.l.b16 %v1011
    %v1044 = vpack.c.b16 %v1029, %v1028
    %v1045 = vpack.c.b16 %v1031, %v1030
    %v1046 = vpack.c.b16 %v1033, %v1032
    %v1047 = vpack.c.b16 %v1035, %v1034
    %v1048 = vpack.c.b16 %v1037, %v1036
    %v1049 = vpack.c.b16 %v1039, %v1038
    %v1050 = vpack.c.b16 %v1041, %v1040
    %v1051 = vpack.c.b16 %v1043, %v1042
    %1060 = vst [vmem:[#allocation2 + $0x38] sm:$0xff] %v1044
    %1061 = vst [vmem:[#allocation2 + $0x80] sm:$0xff] %v1045
    %1062 = vst [vmem:[#allocation2 + $0xc8] sm:$0xff] %v1046
    %1063 = vst [vmem:[#allocation2 + $0x110] sm:$0xff] %v1047
    %1064 = vst [vmem:[#allocation2 + $0x158] sm:$0xff] %v1048
    %1065 = vst [vmem:[#allocation2 + $0x1a0] sm:$0xff] %v1049
    %1066 = vst [vmem:[#allocation2 + $0x1e8] sm:$0xff] %v1050
    %1067 = vst [vmem:[#allocation2 + $0x230] sm:$0xff] %v1051
    %v1068 = vld [vmem:[%s922] sm:$0xf]
    %v1069 = vld [vmem:[%s922 + $0x4] sm:$0x1]
    %v1070 = vld [vmem:[%s922 + $0x8] sm:$0xf]
    %v1071 = vld [vmem:[%s922 + $0xc] sm:$0x1]
    %v1072 = vld [vmem:[%s922 + $0x10] sm:$0xf]
    %v1073 = vld [vmem:[%s922 + $0x14] sm:$0x1]
    %v1074 = vld [vmem:[%s922 + $0x18] sm:$0xf]
    %v1075 = vld [vmem:[%s922 + $0x1c] sm:$0x1]
    %v1076 = vld [vmem:[%s922 + $0x20] sm:$0xf]
    %v1077 = vld [vmem:[%s922 + $0x24] sm:$0x1]
    %v1078 = vld [vmem:[%s922 + $0x28] sm:$0xf]
    %v1079 = vld [vmem:[%s922 + $0x2c] sm:$0x1]
    %v1080 = vld [vmem:[%s922 + $0x30] sm:$0xf]
    %v1081 = vld [vmem:[%s922 + $0x34] sm:$0x1]
    %v1082 = vld [vmem:[%s922 + $0x38] sm:$0xf]
    %v1083 = vld [vmem:[%s922 + $0x3c] sm:$0x1]
    %v1084 = vld [vmem:[%s922 + $0x120] sm:$0xf]
    %v1085 = vld [vmem:[%s922 + $0x124] sm:$0x1]
    %v1086 = vld [vmem:[%s922 + $0x128] sm:$0xf]
    %v1087 = vld [vmem:[%s922 + $0x12c] sm:$0x1]
    %v1088 = vld [vmem:[%s922 + $0x130] sm:$0xf]
    %v1089 = vld [vmem:[%s922 + $0x134] sm:$0x1]
    %v1090 = vld [vmem:[%s922 + $0x138] sm:$0xf]
    %v1091 = vld [vmem:[%s922 + $0x13c] sm:$0x1]
    %v1092 = vld [vmem:[%s922 + $0x140] sm:$0xf]
    %v1093 = vld [vmem:[%s922 + $0x144] sm:$0x1]
    %v1094 = vld [vmem:[%s922 + $0x148] sm:$0xf]
    %v1095 = vld [vmem:[%s922 + $0x14c] sm:$0x1]
    %v1096 = vld [vmem:[%s922 + $0x150] sm:$0xf]
    %v1097 = vld [vmem:[%s922 + $0x154] sm:$0x1]
    %v1098 = vld [vmem:[%s922 + $0x158] sm:$0xf]
    %v1099 = vld [vmem:[%s922 + $0x15c] sm:$0x1]
    %v1101 = vshrl.u32 %v1068, 16
    %v1103 = vrot.slane %v1101, 4
    %v1104 = vshll.u32 %v1068, 16
    %v1106 = vrot.slane %v1104, 5
    %v1107 = vor.u32 %v1103, %v1106
    %v1108 = vrot.slane %v1107, 4
    %v1110 = vshll.u32 %v1069, 16
    %v1112 = vrot.slane %v1110, 5
    %v1113 = vsel %vm215, %v1108, %v1112
    %v1115 = vshrl.u32 %v1070, 16
    %v1117 = vrot.slane %v1115, 4
    %v1118 = vshll.u32 %v1070, 16
    %v1120 = vrot.slane %v1118, 5
    %v1121 = vor.u32 %v1117, %v1120
    %v1122 = vrot.slane %v1121, 4
    %v1124 = vshll.u32 %v1071, 16
    %v1126 = vrot.slane %v1124, 5
    %v1127 = vsel %vm215, %v1122, %v1126
    %v1129 = vshrl.u32 %v1072, 16
    %v1131 = vrot.slane %v1129, 4
    %v1132 = vshll.u32 %v1072, 16
    %v1134 = vrot.slane %v1132, 5
    %v1135 = vor.u32 %v1131, %v1134
    %v1136 = vrot.slane %v1135, 4
    %v1138 = vshll.u32 %v1073, 16
    %v1140 = vrot.slane %v1138, 5
    %v1141 = vsel %vm215, %v1136, %v1140
    %v1143 = vshrl.u32 %v1074, 16
    %v1145 = vrot.slane %v1143, 4
    %v1146 = vshll.u32 %v1074, 16
    %v1148 = vrot.slane %v1146, 5
    %v1149 = vor.u32 %v1145, %v1148
    %v1150 = vrot.slane %v1149, 4
    %v1152 = vshll.u32 %v1075, 16
    %v1154 = vrot.slane %v1152, 5
    %v1155 = vsel %vm215, %v1150, %v1154
    %v1157 = vshrl.u32 %v1076, 16
    %v1159 = vrot.slane %v1157, 4
    %v1160 = vshll.u32 %v1076, 16
    %v1162 = vrot.slane %v1160, 5
    %v1163 = vor.u32 %v1159, %v1162
    %v1164 = vrot.slane %v1163, 4
    %v1166 = vshll.u32 %v1077, 16
    %v1168 = vrot.slane %v1166, 5
    %v1169 = vsel %vm215, %v1164, %v1168
    %v1171 = vshrl.u32 %v1078, 16
    %v1173 = vrot.slane %v1171, 4
    %v1174 = vshll.u32 %v1078, 16
    %v1176 = vrot.slane %v1174, 5
    %v1177 = vor.u32 %v1173, %v1176
    %v1178 = vrot.slane %v1177, 4
    %v1180 = vshll.u32 %v1079, 16
    %v1182 = vrot.slane %v1180, 5
    %v1183 = vsel %vm215, %v1178, %v1182
    %v1185 = vshrl.u32 %v1080, 16
    %v1187 = vrot.slane %v1185, 4
    %v1188 = vshll.u32 %v1080, 16
    %v1190 = vrot.slane %v1188, 5
    %v1191 = vor.u32 %v1187, %v1190
    %v1192 = vrot.slane %v1191, 4
    %v1194 = vshll.u32 %v1081, 16
    %v1196 = vrot.slane %v1194, 5
    %v1197 = vsel %vm215, %v1192, %v1196
    %v1199 = vshrl.u32 %v1082, 16
    %v1201 = vrot.slane %v1199, 4
    %v1202 = vshll.u32 %v1082, 16
    %v1204 = vrot.slane %v1202, 5
    %v1205 = vor.u32 %v1201, %v1204
    %v1206 = vrot.slane %v1205, 4
    %v1208 = vshll.u32 %v1083, 16
    %v1210 = vrot.slane %v1208, 5
    %v1211 = vsel %vm215, %v1206, %v1210
    %v1213 = vshrl.u32 %v1084, 16
    %v1215 = vrot.slane %v1213, 4
    %v1216 = vshll.u32 %v1084, 16
    %v1218 = vrot.slane %v1216, 5
    %v1219 = vor.u32 %v1215, %v1218
    %v1220 = vrot.slane %v1219, 4
    %v1222 = vshll.u32 %v1085, 16
    %v1224 = vrot.slane %v1222, 5
    %v1225 = vsel %vm215, %v1220, %v1224
    %v1227 = vshrl.u32 %v1086, 16
    %v1229 = vrot.slane %v1227, 4
    %v1230 = vshll.u32 %v1086, 16
    %v1232 = vrot.slane %v1230, 5
    %v1233 = vor.u32 %v1229, %v1232
    %v1234 = vrot.slane %v1233, 4
    %v1236 = vshll.u32 %v1087, 16
    %v1238 = vrot.slane %v1236, 5
    %v1239 = vsel %vm215, %v1234, %v1238
    %v1241 = vshrl.u32 %v1088, 16
    %v1243 = vrot.slane %v1241, 4
    %v1244 = vshll.u32 %v1088, 16
    %v1246 = vrot.slane %v1244, 5
    %v1247 = vor.u32 %v1243, %v1246
    %v1248 = vrot.slane %v1247, 4
    %v1250 = vshll.u32 %v1089, 16
    %v1252 = vrot.slane %v1250, 5
    %v1253 = vsel %vm215, %v1248, %v1252
    %v1255 = vshrl.u32 %v1090, 16
    %v1257 = vrot.slane %v1255, 4
    %v1258 = vshll.u32 %v1090, 16
    %v1260 = vrot.slane %v1258, 5
    %v1261 = vor.u32 %v1257, %v1260
    %v1262 = vrot.slane %v1261, 4
    %v1264 = vshll.u32 %v1091, 16
    %v1266 = vrot.slane %v1264, 5
    %v1267 = vsel %vm215, %v1262, %v1266
    %v1269 = vshrl.u32 %v1092, 16
    %v1271 = vrot.slane %v1269, 4
    %v1272 = vshll.u32 %v1092, 16
    %v1274 = vrot.slane %v1272, 5
    %v1275 = vor.u32 %v1271, %v1274
    %v1276 = vrot.slane %v1275, 4
    %v1278 = vshll.u32 %v1093, 16
    %v1280 = vrot.slane %v1278, 5
    %v1281 = vsel %vm215, %v1276, %v1280
    %v1283 = vshrl.u32 %v1094, 16
    %v1285 = vrot.slane %v1283, 4
    %v1286 = vshll.u32 %v1094, 16
    %v1288 = vrot.slane %v1286, 5
    %v1289 = vor.u32 %v1285, %v1288
    %v1290 = vrot.slane %v1289, 4
    %v1292 = vshll.u32 %v1095, 16
    %v1294 = vrot.slane %v1292, 5
    %v1295 = vsel %vm215, %v1290, %v1294
    %v1297 = vshrl.u32 %v1096, 16
    %v1299 = vrot.slane %v1297, 4
    %v1300 = vshll.u32 %v1096, 16
    %v1302 = vrot.slane %v1300, 5
    %v1303 = vor.u32 %v1299, %v1302
    %v1304 = vrot.slane %v1303, 4
    %v1306 = vshll.u32 %v1097, 16
    %v1308 = vrot.slane %v1306, 5
    %v1309 = vsel %vm215, %v1304, %v1308
    %v1311 = vshrl.u32 %v1098, 16
    %v1313 = vrot.slane %v1311, 4
    %v1314 = vshll.u32 %v1098, 16
    %v1316 = vrot.slane %v1314, 5
    %v1317 = vor.u32 %v1313, %v1316
    %v1318 = vrot.slane %v1317, 4
    %v1320 = vshll.u32 %v1099, 16
    %v1322 = vrot.slane %v1320, 5
    %v1323 = vsel %vm215, %v1318, %v1322
    %v1324 = vunpack.c.l.b16 %v1113
    %v1325 = vunpack.c.l.b16 %v1127
    %v1326 = vunpack.c.l.b16 %v1141
    %v1327 = vunpack.c.l.b16 %v1155
    %v1328 = vunpack.c.l.b16 %v1169
    %v1329 = vunpack.c.l.b16 %v1183
    %v1330 = vunpack.c.l.b16 %v1197
    %v1331 = vunpack.c.l.b16 %v1211
    %v1332 = vunpack.c.l.b16 %v1225
    %v1333 = vunpack.c.l.b16 %v1239
    %v1334 = vunpack.c.l.b16 %v1253
    %v1335 = vunpack.c.l.b16 %v1267
    %v1336 = vunpack.c.l.b16 %v1281
    %v1337 = vunpack.c.l.b16 %v1295
    %v1338 = vunpack.c.l.b16 %v1309
    %v1339 = vunpack.c.l.b16 %v1323
    %v1340 = vpack.c.b16 %v1325, %v1324
    %v1341 = vpack.c.b16 %v1327, %v1326
    %v1342 = vpack.c.b16 %v1329, %v1328
    %v1343 = vpack.c.b16 %v1331, %v1330
    %v1344 = vpack.c.b16 %v1333, %v1332
    %v1345 = vpack.c.b16 %v1335, %v1334
    %v1346 = vpack.c.b16 %v1337, %v1336
    %v1347 = vpack.c.b16 %v1339, %v1338
    %1356 = vst [vmem:[#allocation2 + $0x40] sm:$0xff] %v1340
    %1357 = vst [vmem:[#allocation2 + $0x88] sm:$0xff] %v1341
    %1358 = vst [vmem:[#allocation2 + $0xd0] sm:$0xff] %v1342
    %1359 = vst [vmem:[#allocation2 + $0x118] sm:$0xff] %v1343
    %1360 = vst [vmem:[#allocation2 + $0x160] sm:$0xff] %v1344
    %1361 = vst [vmem:[#allocation2 + $0x1a8] sm:$0xff] %v1345
    %1362 = vst [vmem:[#allocation2 + $0x1f0] sm:$0xff] %v1346
    %1363 = vst [vmem:[#allocation2 + $0x238] sm:$0xff] %v1347
    %v1364 = vld [vmem:[#allocation2] sm:$0xff]
    %v1365 = vld [vmem:[#allocation2 + $0x8] sm:$0xff]
    %v1366 = vld [vmem:[#allocation2 + $0x10] sm:$0xff]
    %v1367 = vld [vmem:[#allocation2 + $0x18] sm:$0xff]
    %v1368 = vld [vmem:[#allocation2 + $0x20] sm:$0xff]
    %v1369 = vld [vmem:[#allocation2 + $0x28] sm:$0xff]
    %v1370 = vld [vmem:[#allocation2 + $0x30] sm:$0xff]
    %v1371 = vld [vmem:[#allocation2 + $0x38] sm:$0xff]
    %v1372 = vld [vmem:[#allocation2 + $0x40] sm:$0xff]
    %v1373 = vld [vmem:[#allocation2 + $0x48] sm:$0xff]
    %v1374 = vld [vmem:[#allocation2 + $0x50] sm:$0xff]
    %v1375 = vld [vmem:[#allocation2 + $0x58] sm:$0xff]
    %v1376 = vld [vmem:[#allocation2 + $0x60] sm:$0xff]
    %v1377 = vld [vmem:[#allocation2 + $0x68] sm:$0xff]
    %v1378 = vld [vmem:[#allocation2 + $0x70] sm:$0xff]
    %v1379 = vld [vmem:[#allocation2 + $0x78] sm:$0xff]
    %v1380 = vld [vmem:[#allocation2 + $0x80] sm:$0xff]
    %v1381 = vld [vmem:[#allocation2 + $0x88] sm:$0xff]
    %v1382 = vld [vmem:[#allocation2 + $0x90] sm:$0xff]
    %v1383 = vld [vmem:[#allocation2 + $0x98] sm:$0xff]
    %v1384 = vld [vmem:[#allocation2 + $0xa0] sm:$0xff]
    %v1385 = vld [vmem:[#allocation2 + $0xa8] sm:$0xff]
    %v1386 = vld [vmem:[#allocation2 + $0xb0] sm:$0xff]
    %v1387 = vld [vmem:[#allocation2 + $0xb8] sm:$0xff]
    %v1388 = vld [vmem:[#allocation2 + $0xc0] sm:$0xff]
    %v1389 = vld [vmem:[#allocation2 + $0xc8] sm:$0xff]
    %v1390 = vld [vmem:[#allocation2 + $0xd0] sm:$0xff]
    %v1391 = vld [vmem:[#allocation2 + $0xd8] sm:$0xff]
    %v1392 = vld [vmem:[#allocation2 + $0xe0] sm:$0xff]
    %v1393 = vld [vmem:[#allocation2 + $0xe8] sm:$0xff]
    %v1394 = vld [vmem:[#allocation2 + $0xf0] sm:$0xff]
    %v1395 = vld [vmem:[#allocation2 + $0xf8] sm:$0xff]
    %v1396 = vld [vmem:[#allocation2 + $0x100] sm:$0xff]
    %v1397 = vld [vmem:[#allocation2 + $0x108] sm:$0xff]
    %v1398 = vld [vmem:[#allocation2 + $0x110] sm:$0xff]
    %v1399 = vld [vmem:[#allocation2 + $0x118] sm:$0xff]
    %v1400 = vld [vmem:[#allocation2 + $0x120] sm:$0xff]
    %v1401 = vld [vmem:[#allocation2 + $0x128] sm:$0xff]
    %v1402 = vld [vmem:[#allocation2 + $0x130] sm:$0xff]
    %v1403 = vld [vmem:[#allocation2 + $0x138] sm:$0xff]
    %v1404 = vld [vmem:[#allocation2 + $0x140] sm:$0xff]
    %v1405 = vld [vmem:[#allocation2 + $0x148] sm:$0xff]
    %v1406 = vld [vmem:[#allocation2 + $0x150] sm:$0xff]
    %v1407 = vld [vmem:[#allocation2 + $0x158] sm:$0xff]
    %v1408 = vld [vmem:[#allocation2 + $0x160] sm:$0xff]
    %v1409 = vld [vmem:[#allocation2 + $0x168] sm:$0xff]
    %v1410 = vld [vmem:[#allocation2 + $0x170] sm:$0xff]
    %v1411 = vld [vmem:[#allocation2 + $0x178] sm:$0xff]
    %v1412 = vld [vmem:[#allocation2 + $0x180] sm:$0xff]
    %v1413 = vld [vmem:[#allocation2 + $0x188] sm:$0xff]
    %v1414 = vld [vmem:[#allocation2 + $0x190] sm:$0xff]
    %v1415 = vld [vmem:[#allocation2 + $0x198] sm:$0xff]
    %v1416 = vld [vmem:[#allocation2 + $0x1a0] sm:$0xff]
    %v1417 = vld [vmem:[#allocation2 + $0x1a8] sm:$0xff]
    %v1418 = vld [vmem:[#allocation2 + $0x1b0] sm:$0xff]
    %v1419 = vld [vmem:[#allocation2 + $0x1b8] sm:$0xff]
    %v1420 = vld [vmem:[#allocation2 + $0x1c0] sm:$0xff]
    %v1421 = vld [vmem:[#allocation2 + $0x1c8] sm:$0xff]
    %v1422 = vld [vmem:[#allocation2 + $0x1d0] sm:$0xff]
    %v1423 = vld [vmem:[#allocation2 + $0x1d8] sm:$0xff]
    %v1424 = vld [vmem:[#allocation2 + $0x1e0] sm:$0xff]
    %v1425 = vld [vmem:[#allocation2 + $0x1e8] sm:$0xff]
    %v1426 = vld [vmem:[#allocation2 + $0x1f0] sm:$0xff]
    %v1427 = vld [vmem:[#allocation2 + $0x1f8] sm:$0xff]
    %v1428 = vld [vmem:[#allocation2 + $0x200] sm:$0xff]
    %v1429 = vld [vmem:[#allocation2 + $0x208] sm:$0xff]
    %v1430 = vld [vmem:[#allocation2 + $0x210] sm:$0xff]
    %v1431 = vld [vmem:[#allocation2 + $0x218] sm:$0xff]
    %v1432 = vld [vmem:[#allocation2 + $0x220] sm:$0xff]
    %v1433 = vld [vmem:[#allocation2 + $0x228] sm:$0xff]
    %v1434 = vld [vmem:[#allocation2 + $0x230] sm:$0xff]
    %v1435 = vld [vmem:[#allocation2 + $0x238] sm:$0xff]
    %v1436 = vld [vmem:[%s1] sm:$0xf]
    %v1437 = vld [vmem:[%s1 + $0x4] sm:$0xf]
    %v1438 = vld [vmem:[%s1 + $0x8] sm:$0xf]
    %v1439 = vld [vmem:[%s1 + $0xc] sm:$0xf]
    %v1440 = vld [vmem:[%s1 + $0x10] sm:$0xf]
    %v1441 = vld [vmem:[%s1 + $0x14] sm:$0xf]
    %v1442 = vld [vmem:[%s1 + $0x18] sm:$0xf]
    %v1443 = vld [vmem:[%s1 + $0x1c] sm:$0xf]
    %v1444 = vld [vmem:[%s1 + $0x20] sm:$0xf]
    %v1445 = vld [vmem:[%s1 + $0x24] sm:$0xf]
    %v1446 = vld [vmem:[%s1 + $0x28] sm:$0xf]
    %v1447 = vld [vmem:[%s1 + $0x2c] sm:$0xf]
    %v1448 = vld [vmem:[%s1 + $0x30] sm:$0xf]
    %v1449 = vld [vmem:[%s1 + $0x34] sm:$0xf]
    %v1450 = vld [vmem:[%s1 + $0x38] sm:$0xf]
    %v1451 = vld [vmem:[%s1 + $0x3c] sm:$0xf]
    %v1452 = vld [vmem:[%s1 + $0x40] sm:$0xf]
    %v1453 = vld [vmem:[%s1 + $0x44] sm:$0xf]
    %v1454 = vld [vmem:[%s1 + $0x48] sm:$0xf]
    %v1455 = vld [vmem:[%s1 + $0x4c] sm:$0xf]
    %v1456 = vld [vmem:[%s1 + $0x50] sm:$0xf]
    %v1457 = vld [vmem:[%s1 + $0x54] sm:$0xf]
    %v1458 = vld [vmem:[%s1 + $0x58] sm:$0xf]
    %v1459 = vld [vmem:[%s1 + $0x5c] sm:$0xf]
    %v1460 = vld [vmem:[%s1 + $0x60] sm:$0xf]
    %v1461 = vld [vmem:[%s1 + $0x64] sm:$0xf]
    %v1462 = vld [vmem:[%s1 + $0x68] sm:$0xf]
    %v1463 = vld [vmem:[%s1 + $0x6c] sm:$0xf]
    %v1464 = vld [vmem:[%s1 + $0x70] sm:$0xf]
    %v1465 = vld [vmem:[%s1 + $0x74] sm:$0xf]
    %v1466 = vld [vmem:[%s1 + $0x78] sm:$0xf]
    %v1467 = vld [vmem:[%s1 + $0x7c] sm:$0xf]
    %v1468 = vld [vmem:[%s1 + $0x80] sm:$0xf]
    %v1469 = vld [vmem:[%s1 + $0x84] sm:$0xf]
    %v1470 = vld [vmem:[%s1 + $0x88] sm:$0xf]
    %v1471 = vld [vmem:[%s1 + $0x8c] sm:$0xf]
    %v1472 = vld [vmem:[%s1 + $0x90] sm:$0xf]
    %v1473 = vld [vmem:[%s1 + $0x94] sm:$0xf]
    %v1474 = vld [vmem:[%s1 + $0x98] sm:$0xf]
    %v1475 = vld [vmem:[%s1 + $0x9c] sm:$0xf]
    %v1476 = vld [vmem:[%s1 + $0xa0] sm:$0xf]
    %v1477 = vld [vmem:[%s1 + $0xa4] sm:$0xf]
    %v1478 = vld [vmem:[%s1 + $0xa8] sm:$0xf]
    %v1479 = vld [vmem:[%s1 + $0xac] sm:$0xf]
    %v1480 = vld [vmem:[%s1 + $0xb0] sm:$0xf]
    %v1481 = vld [vmem:[%s1 + $0xb4] sm:$0xf]
    %v1482 = vld [vmem:[%s1 + $0xb8] sm:$0xf]
    %v1483 = vld [vmem:[%s1 + $0xbc] sm:$0xf]
    %v1484 = vld [vmem:[%s1 + $0xc0] sm:$0xf]
    %v1485 = vld [vmem:[%s1 + $0xc4] sm:$0xf]
    %v1486 = vld [vmem:[%s1 + $0xc8] sm:$0xf]
    %v1487 = vld [vmem:[%s1 + $0xcc] sm:$0xf]
    %v1488 = vld [vmem:[%s1 + $0xd0] sm:$0xf]
    %v1489 = vld [vmem:[%s1 + $0xd4] sm:$0xf]
    %v1490 = vld [vmem:[%s1 + $0xd8] sm:$0xf]
    %v1491 = vld [vmem:[%s1 + $0xdc] sm:$0xf]
    %v1492 = vld [vmem:[%s1 + $0xe0] sm:$0xf]
    %v1493 = vld [vmem:[%s1 + $0xe4] sm:$0xf]
    %v1494 = vld [vmem:[%s1 + $0xe8] sm:$0xf]
    %v1495 = vld [vmem:[%s1 + $0xec] sm:$0xf]
    %v1496 = vld [vmem:[%s1 + $0xf0] sm:$0xf]
    %v1497 = vld [vmem:[%s1 + $0xf4] sm:$0xf]
    %v1498 = vld [vmem:[%s1 + $0xf8] sm:$0xf]
    %v1499 = vld [vmem:[%s1 + $0xfc] sm:$0xf]
    %v1500 = vld [vmem:[%s1 + $0x100] sm:$0xf]
    %v1501 = vld [vmem:[%s1 + $0x104] sm:$0xf]
    %v1502 = vld [vmem:[%s1 + $0x108] sm:$0xf]
    %v1503 = vld [vmem:[%s1 + $0x10c] sm:$0xf]
    %v1504 = vld [vmem:[%s1 + $0x110] sm:$0xf]
    %v1505 = vld [vmem:[%s1 + $0x114] sm:$0xf]
    %v1506 = vld [vmem:[%s1 + $0x118] sm:$0xf]
    %v1507 = vld [vmem:[%s1 + $0x11c] sm:$0xf]
    %v1508 = vld [vmem:[%s1 + $0x120] sm:$0xf]
    %v1509 = vld [vmem:[%s1 + $0x124] sm:$0xf]
    %v1510 = vld [vmem:[%s1 + $0x128] sm:$0xf]
    %v1511 = vld [vmem:[%s1 + $0x12c] sm:$0xf]
    %v1512 = vld [vmem:[%s1 + $0x130] sm:$0xf]
    %v1513 = vld [vmem:[%s1 + $0x134] sm:$0xf]
    %v1514 = vld [vmem:[%s1 + $0x138] sm:$0xf]
    %v1515 = vld [vmem:[%s1 + $0x13c] sm:$0xf]
    %v1516 = vld [vmem:[%s1 + $0x140] sm:$0xf]
    %v1517 = vld [vmem:[%s1 + $0x144] sm:$0xf]
    %v1518 = vld [vmem:[%s1 + $0x148] sm:$0xf]
    %v1519 = vld [vmem:[%s1 + $0x14c] sm:$0xf]
    %v1520 = vld [vmem:[%s1 + $0x150] sm:$0xf]
    %v1521 = vld [vmem:[%s1 + $0x154] sm:$0xf]
    %v1522 = vld [vmem:[%s1 + $0x158] sm:$0xf]
    %v1523 = vld [vmem:[%s1 + $0x15c] sm:$0xf]
    %v1524 = vld [vmem:[%s1 + $0x160] sm:$0xf]
    %v1525 = vld [vmem:[%s1 + $0x164] sm:$0xf]
    %v1526 = vld [vmem:[%s1 + $0x168] sm:$0xf]
    %v1527 = vld [vmem:[%s1 + $0x16c] sm:$0xf]
    %v1528 = vld [vmem:[%s1 + $0x170] sm:$0xf]
    %v1529 = vld [vmem:[%s1 + $0x174] sm:$0xf]
    %v1530 = vld [vmem:[%s1 + $0x178] sm:$0xf]
    %v1531 = vld [vmem:[%s1 + $0x17c] sm:$0xf]
    %v1532 = vld [vmem:[%s1 + $0x180] sm:$0xf]
    %v1533 = vld [vmem:[%s1 + $0x184] sm:$0xf]
    %v1534 = vld [vmem:[%s1 + $0x188] sm:$0xf]
    %v1535 = vld [vmem:[%s1 + $0x18c] sm:$0xf]
    %v1536 = vld [vmem:[%s1 + $0x190] sm:$0xf]
    %v1537 = vld [vmem:[%s1 + $0x194] sm:$0xf]
    %v1538 = vld [vmem:[%s1 + $0x198] sm:$0xf]
    %v1539 = vld [vmem:[%s1 + $0x19c] sm:$0xf]
    %v1540 = vld [vmem:[%s1 + $0x1a0] sm:$0xf]
    %v1541 = vld [vmem:[%s1 + $0x1a4] sm:$0xf]
    %v1542 = vld [vmem:[%s1 + $0x1a8] sm:$0xf]
    %v1543 = vld [vmem:[%s1 + $0x1ac] sm:$0xf]
    %v1544 = vld [vmem:[%s1 + $0x1b0] sm:$0xf]
    %v1545 = vld [vmem:[%s1 + $0x1b4] sm:$0xf]
    %v1546 = vld [vmem:[%s1 + $0x1b8] sm:$0xf]
    %v1547 = vld [vmem:[%s1 + $0x1bc] sm:$0xf]
    %v1548 = vld [vmem:[%s1 + $0x1c0] sm:$0xf]
    %v1549 = vld [vmem:[%s1 + $0x1c4] sm:$0xf]
    %v1550 = vld [vmem:[%s1 + $0x1c8] sm:$0xf]
    %v1551 = vld [vmem:[%s1 + $0x1cc] sm:$0xf]
    %v1552 = vld [vmem:[%s1 + $0x1d0] sm:$0xf]
    %v1553 = vld [vmem:[%s1 + $0x1d4] sm:$0xf]
    %v1554 = vld [vmem:[%s1 + $0x1d8] sm:$0xf]
    %v1555 = vld [vmem:[%s1 + $0x1dc] sm:$0xf]
    %v1556 = vld [vmem:[%s1 + $0x1e0] sm:$0xf]
    %v1557 = vld [vmem:[%s1 + $0x1e4] sm:$0xf]
    %v1558 = vld [vmem:[%s1 + $0x1e8] sm:$0xf]
    %v1559 = vld [vmem:[%s1 + $0x1ec] sm:$0xf]
    %v1560 = vld [vmem:[%s1 + $0x1f0] sm:$0xf]
    %v1561 = vld [vmem:[%s1 + $0x1f4] sm:$0xf]
    %v1562 = vld [vmem:[%s1 + $0x1f8] sm:$0xf]
    %v1563 = vld [vmem:[%s1 + $0x1fc] sm:$0xf]
    %v1564 = vld [vmem:[%s1 + $0x200] sm:$0xf]
    %v1565 = vld [vmem:[%s1 + $0x204] sm:$0xf]
    %v1566 = vld [vmem:[%s1 + $0x208] sm:$0xf]
    %v1567 = vld [vmem:[%s1 + $0x20c] sm:$0xf]
    %v1568 = vld [vmem:[%s1 + $0x210] sm:$0xf]
    %v1569 = vld [vmem:[%s1 + $0x214] sm:$0xf]
    %v1570 = vld [vmem:[%s1 + $0x218] sm:$0xf]
    %v1571 = vld [vmem:[%s1 + $0x21c] sm:$0xf]
    %v1572 = vld [vmem:[%s1 + $0x220] sm:$0xf]
    %v1573 = vld [vmem:[%s1 + $0x224] sm:$0xf]
    %v1574 = vld [vmem:[%s1 + $0x228] sm:$0xf]
    %v1575 = vld [vmem:[%s1 + $0x22c] sm:$0xf]
    %v1576 = vld [vmem:[%s1 + $0x230] sm:$0xf]
    %v1577 = vld [vmem:[%s1 + $0x234] sm:$0xf]
    %v1578 = vld [vmem:[%s1 + $0x238] sm:$0xf]
    %v1579 = vld [vmem:[%s1 + $0x23c] sm:$0xf]
    %v1580 = vld [vmem:[%s3] sm:$0x1]
    %v1582 = vlaneseq
    %v1583 = vshrl.u32 %v1582, 7
    %v1584 = vsub.s32 0, %v1583
    %v1585 = vrot.slane %v1580, %v1584
    %v1731 = vunpack.c.l.b16 %v1436
    %v1732 = vunpack.c.l.b16 %v1437
    %v1733 = vunpack.c.l.b16 %v1438
    %v1734 = vunpack.c.l.b16 %v1439
    %v1735 = vunpack.c.l.b16 %v1440
    %v1736 = vunpack.c.l.b16 %v1441
    %v1737 = vunpack.c.l.b16 %v1442
    %v1738 = vunpack.c.l.b16 %v1443
    %v1739 = vunpack.c.l.b16 %v1444
    %v1740 = vunpack.c.l.b16 %v1445
    %v1741 = vunpack.c.l.b16 %v1446
    %v1742 = vunpack.c.l.b16 %v1447
    %v1743 = vunpack.c.l.b16 %v1448
    %v1744 = vunpack.c.l.b16 %v1449
    %v1745 = vunpack.c.l.b16 %v1450
    %v1746 = vunpack.c.l.b16 %v1451
    %v1747 = vunpack.c.l.b16 %v1452
    %v1748 = vunpack.c.l.b16 %v1453
    %v1749 = vunpack.c.l.b16 %v1454
    %v1750 = vunpack.c.l.b16 %v1455
    %v1751 = vunpack.c.l.b16 %v1456
    %v1752 = vunpack.c.l.b16 %v1457
    %v1753 = vunpack.c.l.b16 %v1458
    %v1754 = vunpack.c.l.b16 %v1459
    %v1755 = vunpack.c.l.b16 %v1460
    %v1756 = vunpack.c.l.b16 %v1461
    %v1757 = vunpack.c.l.b16 %v1462
    %v1758 = vunpack.c.l.b16 %v1463
    %v1759 = vunpack.c.l.b16 %v1464
    %v1760 = vunpack.c.l.b16 %v1465
    %v1761 = vunpack.c.l.b16 %v1466
    %v1762 = vunpack.c.l.b16 %v1467
    %v1763 = vunpack.c.l.b16 %v1468
    %v1764 = vunpack.c.l.b16 %v1469
    %v1765 = vunpack.c.l.b16 %v1470
    %v1766 = vunpack.c.l.b16 %v1471
    %v1767 = vunpack.c.l.b16 %v1472
    %v1768 = vunpack.c.l.b16 %v1473
    %v1769 = vunpack.c.l.b16 %v1474
    %v1770 = vunpack.c.l.b16 %v1475
    %v1771 = vunpack.c.l.b16 %v1476
    %v1772 = vunpack.c.l.b16 %v1477
    %v1773 = vunpack.c.l.b16 %v1478
    %v1774 = vunpack.c.l.b16 %v1479
    %v1775 = vunpack.c.l.b16 %v1480
    %v1776 = vunpack.c.l.b16 %v1481
    %v1777 = vunpack.c.l.b16 %v1482
    %v1778 = vunpack.c.l.b16 %v1483
    %v1779 = vunpack.c.l.b16 %v1484
    %v1780 = vunpack.c.l.b16 %v1485
    %v1781 = vunpack.c.l.b16 %v1486
    %v1782 = vunpack.c.l.b16 %v1487
    %v1783 = vunpack.c.l.b16 %v1488
    %v1784 = vunpack.c.l.b16 %v1489
    %v1785 = vunpack.c.l.b16 %v1490
    %v1786 = vunpack.c.l.b16 %v1491
    %v1787 = vunpack.c.l.b16 %v1492
    %v1788 = vunpack.c.l.b16 %v1493
    %v1789 = vunpack.c.l.b16 %v1494
    %v1790 = vunpack.c.l.b16 %v1495
    %v1791 = vunpack.c.l.b16 %v1496
    %v1792 = vunpack.c.l.b16 %v1497
    %v1793 = vunpack.c.l.b16 %v1498
    %v1794 = vunpack.c.l.b16 %v1499
    %v1795 = vunpack.c.l.b16 %v1500
    %v1796 = vunpack.c.l.b16 %v1501
    %v1797 = vunpack.c.l.b16 %v1502
    %v1798 = vunpack.c.l.b16 %v1503
    %v1799 = vunpack.c.l.b16 %v1504
    %v1800 = vunpack.c.l.b16 %v1505
    %v1801 = vunpack.c.l.b16 %v1506
    %v1802 = vunpack.c.l.b16 %v1507
    %v1803 = vunpack.c.l.b16 %v1508
    %v1804 = vunpack.c.l.b16 %v1509
    %v1805 = vunpack.c.l.b16 %v1510
    %v1806 = vunpack.c.l.b16 %v1511
    %v1807 = vunpack.c.l.b16 %v1512
    %v1808 = vunpack.c.l.b16 %v1513
    %v1809 = vunpack.c.l.b16 %v1514
    %v1810 = vunpack.c.l.b16 %v1515
    %v1811 = vunpack.c.l.b16 %v1516
    %v1812 = vunpack.c.l.b16 %v1517
    %v1813 = vunpack.c.l.b16 %v1518
    %v1814 = vunpack.c.l.b16 %v1519
    %v1815 = vunpack.c.l.b16 %v1520
    %v1816 = vunpack.c.l.b16 %v1521
    %v1817 = vunpack.c.l.b16 %v1522
    %v1818 = vunpack.c.l.b16 %v1523
    %v1819 = vunpack.c.l.b16 %v1524
    %v1820 = vunpack.c.l.b16 %v1525
    %v1821 = vunpack.c.l.b16 %v1526
    %v1822 = vunpack.c.l.b16 %v1527
    %v1823 = vunpack.c.l.b16 %v1528
    %v1824 = vunpack.c.l.b16 %v1529
    %v1825 = vunpack.c.l.b16 %v1530
    %v1826 = vunpack.c.l.b16 %v1531
    %v1827 = vunpack.c.l.b16 %v1532
    %v1828 = vunpack.c.l.b16 %v1533
    %v1829 = vunpack.c.l.b16 %v1534
    %v1830 = vunpack.c.l.b16 %v1535
    %v1831 = vunpack.c.l.b16 %v1536
    %v1832 = vunpack.c.l.b16 %v1537
    %v1833 = vunpack.c.l.b16 %v1538
    %v1834 = vunpack.c.l.b16 %v1539
    %v1835 = vunpack.c.l.b16 %v1540
    %v1836 = vunpack.c.l.b16 %v1541
    %v1837 = vunpack.c.l.b16 %v1542
    %v1838 = vunpack.c.l.b16 %v1543
    %v1839 = vunpack.c.l.b16 %v1544
    %v1840 = vunpack.c.l.b16 %v1545
    %v1841 = vunpack.c.l.b16 %v1546
    %v1842 = vunpack.c.l.b16 %v1547
    %v1843 = vunpack.c.l.b16 %v1548
    %v1844 = vunpack.c.l.b16 %v1549
    %v1845 = vunpack.c.l.b16 %v1550
    %v1846 = vunpack.c.l.b16 %v1551
    %v1847 = vunpack.c.l.b16 %v1552
    %v1848 = vunpack.c.l.b16 %v1553
    %v1849 = vunpack.c.l.b16 %v1554
    %v1850 = vunpack.c.l.b16 %v1555
    %v1851 = vunpack.c.l.b16 %v1556
    %v1852 = vunpack.c.l.b16 %v1557
    %v1853 = vunpack.c.l.b16 %v1558
    %v1854 = vunpack.c.l.b16 %v1559
    %v1855 = vunpack.c.l.b16 %v1560
    %v1856 = vunpack.c.l.b16 %v1561
    %v1857 = vunpack.c.l.b16 %v1562
    %v1858 = vunpack.c.l.b16 %v1563
    %v1859 = vunpack.c.l.b16 %v1564
    %v1860 = vunpack.c.l.b16 %v1565
    %v1861 = vunpack.c.l.b16 %v1566
    %v1862 = vunpack.c.l.b16 %v1567
    %v1863 = vunpack.c.l.b16 %v1568
    %v1864 = vunpack.c.l.b16 %v1569
    %v1865 = vunpack.c.l.b16 %v1570
    %v1866 = vunpack.c.l.b16 %v1571
    %v1867 = vunpack.c.l.b16 %v1572
    %v1868 = vunpack.c.l.b16 %v1573
    %v1869 = vunpack.c.l.b16 %v1574
    %v1870 = vunpack.c.l.b16 %v1575
    %v1871 = vunpack.c.l.b16 %v1576
    %v1872 = vunpack.c.l.b16 %v1577
    %v1873 = vunpack.c.l.b16 %v1578
    %v1874 = vunpack.c.l.b16 %v1579
    %v1875 = vpack.c.b16 %v1732, %v1731
    %v1876 = vpack.c.b16 %v1734, %v1733
    %v1877 = vpack.c.b16 %v1736, %v1735
    %v1878 = vpack.c.b16 %v1738, %v1737
    %v1879 = vpack.c.b16 %v1740, %v1739
    %v1880 = vpack.c.b16 %v1742, %v1741
    %v1881 = vpack.c.b16 %v1744, %v1743
    %v1882 = vpack.c.b16 %v1746, %v1745
    %v1883 = vpack.c.b16 %v1748, %v1747
    %v1884 = vpack.c.b16 %v1750, %v1749
    %v1885 = vpack.c.b16 %v1752, %v1751
    %v1886 = vpack.c.b16 %v1754, %v1753
    %v1887 = vpack.c.b16 %v1756, %v1755
    %v1888 = vpack.c.b16 %v1758, %v1757
    %v1889 = vpack.c.b16 %v1760, %v1759
    %v1890 = vpack.c.b16 %v1762, %v1761
    %v1891 = vpack.c.b16 %v1764, %v1763
    %v1892 = vpack.c.b16 %v1766, %v1765
    %v1893 = vpack.c.b16 %v1768, %v1767
    %v1894 = vpack.c.b16 %v1770, %v1769
    %v1895 = vpack.c.b16 %v1772, %v1771
    %v1896 = vpack.c.b16 %v1774, %v1773
    %v1897 = vpack.c.b16 %v1776, %v1775
    %v1898 = vpack.c.b16 %v1778, %v1777
    %v1899 = vpack.c.b16 %v1780, %v1779
    %v1900 = vpack.c.b16 %v1782, %v1781
    %v1901 = vpack.c.b16 %v1784, %v1783
    %v1902 = vpack.c.b16 %v1786, %v1785
    %v1903 = vpack.c.b16 %v1788, %v1787
    %v1904 = vpack.c.b16 %v1790, %v1789
    %v1905 = vpack.c.b16 %v1792, %v1791
    %v1906 = vpack.c.b16 %v1794, %v1793
    %v1907 = vpack.c.b16 %v1796, %v1795
    %v1908 = vpack.c.b16 %v1798, %v1797
    %v1909 = vpack.c.b16 %v1800, %v1799
    %v1910 = vpack.c.b16 %v1802, %v1801
    %v1911 = vpack.c.b16 %v1804, %v1803
    %v1912 = vpack.c.b16 %v1806, %v1805
    %v1913 = vpack.c.b16 %v1808, %v1807
    %v1914 = vpack.c.b16 %v1810, %v1809
    %v1915 = vpack.c.b16 %v1812, %v1811
    %v1916 = vpack.c.b16 %v1814, %v1813
    %v1917 = vpack.c.b16 %v1816, %v1815
    %v1918 = vpack.c.b16 %v1818, %v1817
    %v1919 = vpack.c.b16 %v1820, %v1819
    %v1920 = vpack.c.b16 %v1822, %v1821
    %v1921 = vpack.c.b16 %v1824, %v1823
    %v1922 = vpack.c.b16 %v1826, %v1825
    %v1923 = vpack.c.b16 %v1828, %v1827
    %v1924 = vpack.c.b16 %v1830, %v1829
    %v1925 = vpack.c.b16 %v1832, %v1831
    %v1926 = vpack.c.b16 %v1834, %v1833
    %v1927 = vpack.c.b16 %v1836, %v1835
    %v1928 = vpack.c.b16 %v1838, %v1837
    %v1929 = vpack.c.b16 %v1840, %v1839
    %v1930 = vpack.c.b16 %v1842, %v1841
    %v1931 = vpack.c.b16 %v1844, %v1843
    %v1932 = vpack.c.b16 %v1846, %v1845
    %v1933 = vpack.c.b16 %v1848, %v1847
    %v1934 = vpack.c.b16 %v1850, %v1849
    %v1935 = vpack.c.b16 %v1852, %v1851
    %v1936 = vpack.c.b16 %v1854, %v1853
    %v1937 = vpack.c.b16 %v1856, %v1855
    %v1938 = vpack.c.b16 %v1858, %v1857
    %v1939 = vpack.c.b16 %v1860, %v1859
    %v1940 = vpack.c.b16 %v1862, %v1861
    %v1941 = vpack.c.b16 %v1864, %v1863
    %v1942 = vpack.c.b16 %v1866, %v1865
    %v1943 = vpack.c.b16 %v1868, %v1867
    %v1944 = vpack.c.b16 %v1870, %v1869
    %v1945 = vpack.c.b16 %v1872, %v1871
    %v1946 = vpack.c.b16 %v1874, %v1873
    %2019 = vmatprep.subr.bf16.mxu0 0
    %2020 = vmatpush1.bf16.msra.mxu0 %v1875
    %2021 = vmatprep.subr.bf16.mxu0 0
    %2022 = vmatpush1.bf16.msra.mxu0 %v1876
    %2023 = vmatprep.subr.bf16.mxu0 0
    %2024 = vmatpush1.bf16.msra.mxu0 %v1877
    %2025 = vmatprep.subr.bf16.mxu0 0
    %2026 = vmatpush1.bf16.msra.mxu0 %v1878
    %2027 = vmatprep.subr.bf16.mxu0 0
    %2028 = vmatpush1.bf16.msra.mxu0 %v1879
    %2029 = vmatprep.subr.bf16.mxu0 0
    %2030 = vmatpush1.bf16.msra.mxu0 %v1880
    %2031 = vmatprep.subr.bf16.mxu0 0
    %2032 = vmatpush1.bf16.msra.mxu0 %v1881
    %2033 = vmatprep.subr.bf16.mxu0 0
    %2034 = vmatpush1.bf16.msra.mxu0 %v1882
    %2035 = vmatprep.subr.bf16.mxu0 0
    %2036 = vmatpush1.bf16.msra.mxu0 %v1883
    %2037 = vmatprep.subr.bf16.mxu0 0
    %2038 = vmatpush1.bf16.msra.mxu0 %v1884
    %2039 = vmatprep.subr.bf16.mxu0 0
    %2040 = vmatpush1.bf16.msra.mxu0 %v1885
    %2041 = vmatprep.subr.bf16.mxu0 0
    %2042 = vmatpush1.bf16.msra.mxu0 %v1886
    %2043 = vmatprep.subr.bf16.mxu0 0
    %2044 = vmatpush1.bf16.msra.mxu0 %v1887
    %2045 = vmatprep.subr.bf16.mxu0 0
    %2046 = vmatpush1.bf16.msra.mxu0 %v1888
    %2047 = vmatprep.subr.bf16.mxu0 0
    %2048 = vmatpush1.bf16.msra.mxu0 %v1889
    %2049 = vmatprep.subr.bf16.mxu0 0
    %2050 = vmatpush1.bf16.msra.mxu0 %v1890
    %2051 = vmatprep.mubr.bf16.mxu0 %v1365
    %2052 = vmatmul.mubr.bf16.gmra.mrb[0].mxu0 %v1364
    %v2053 = vpop.f32.mrb[0].mxu0
    %v2054 = vadd.f32 %v1585, %v2053
    %v2055 = vpop.f32.mrb[0].mxu0
    %v2056 = vpop.f32.mrb[0].mxu0
    %v2057 = vadd.f32 %v1585, %v2056
    %v2058 = vpop.f32.mrb[0].mxu0
    %2059 = vmatprep.mubr.bf16.mxu0 %v1374
    %2060 = vmatmul.mubr.bf16.gmra.mrb[0].mxu0 %v1373
    %v2061 = vpop.f32.mrb[0].mxu0
    %v2062 = vadd.f32 %v1585, %v2061
    %v2063 = vpop.f32.mrb[0].mxu0
    %v2064 = vpop.f32.mrb[0].mxu0
    %v2065 = vadd.f32 %v1585, %v2064
    %v2066 = vpop.f32.mrb[0].mxu0
    %2067 = vmatprep.mubr.bf16.mxu0 %v1383
    %2068 = vmatmul.mubr.bf16.gmra.mrb[0].mxu0 %v1382
    %v2069 = vpop.f32.mrb[0].mxu0
    %v2070 = vadd.f32 %v1585, %v2069
    %v2071 = vpop.f32.mrb[0].mxu0
    %v2072 = vpop.f32.mrb[0].mxu0
    %v2073 = vadd.f32 %v1585, %v2072
    %v2074 = vpop.f32.mrb[0].mxu0
    %2075 = vmatprep.mubr.bf16.mxu0 %v1392
    %2076 = vmatmul.mubr.bf16.gmra.mrb[0].mxu0 %v1391
    %v2077 = vpop.f32.mrb[0].mxu0
    %v2078 = vadd.f32 %v1585, %v2077
    %v2079 = vpop.f32.mrb[0].mxu0
    %v2080 = vpop.f32.mrb[0].mxu0
    %v2081 = vadd.f32 %v1585, %v2080
    %v2082 = vpop.f32.mrb[0].mxu0
    %2083 = vmatprep.mubr.bf16.mxu0 %v1401
    %2084 = vmatmul.mubr.bf16.gmra.mrb[0].mxu0 %v1400
    %v2085 = vpop.f32.mrb[0].mxu0
    %v2086 = vadd.f32 %v1585, %v2085
    %v2087 = vpop.f32.mrb[0].mxu0
    %v2088 = vpop.f32.mrb[0].mxu0
    %v2089 = vadd.f32 %v1585, %v2088
    %v2090 = vpop.f32.mrb[0].mxu0
    %2091 = vmatprep.mubr.bf16.mxu0 %v1410
    %2092 = vmatmul.mubr.bf16.gmra.mrb[0].mxu0 %v1409
    %v2093 = vpop.f32.mrb[0].mxu0
    %v2094 = vadd.f32 %v1585, %v2093
    %v2095 = vpop.f32.mrb[0].mxu0
    %v2096 = vpop.f32.mrb[0].mxu0
    %v2097 = vadd.f32 %v1585, %v2096
    %v2098 = vpop.f32.mrb[0].mxu0
    %2099 = vmatprep.mubr.bf16.mxu0 %v1419
    %2100 = vmatmul.mubr.bf16.gmra.mrb[0].mxu0 %v1418
    %v2101 = vpop.f32.mrb[0].mxu0
    %v2102 = vadd.f32 %v1585, %v2101
    %v2103 = vpop.f32.mrb[0].mxu0
    %v2104 = vpop.f32.mrb[0].mxu0
    %v2105 = vadd.f32 %v1585, %v2104
    %v2106 = vpop.f32.mrb[0].mxu0
    %2107 = vmatprep.mubr.bf16.mxu0 %v1428
    %2108 = vmatmul.mubr.bf16.gmra.mrb[0].mxu0 %v1427
    %v2109 = vpop.f32.mrb[0].mxu0
    %v2110 = vadd.f32 %v1585, %v2109
    %v2111 = vpop.f32.mrb[0].mxu0
    %v2112 = vpop.f32.mrb[0].mxu0
    %v2113 = vadd.f32 %v1585, %v2112
    %v2114 = vpop.f32.mrb[0].mxu0
    %2115 = vdwg.mxu0
    %2116 = vmatprep.subr.bf16.mxu0 0
    %2117 = vmatpush1.bf16.msra.mxu0 %v1891
    %2118 = vmatprep.subr.bf16.mxu0 0
    %2119 = vmatpush1.bf16.msra.mxu0 %v1892
    %2120 = vmatprep.subr.bf16.mxu0 0
    %2121 = vmatpush1.bf16.msra.mxu0 %v1893
    %2122 = vmatprep.subr.bf16.mxu0 0
    %2123 = vmatpush1.bf16.msra.mxu0 %v1894
    %2124 = vmatprep.subr.bf16.mxu0 0
    %2125 = vmatpush1.bf16.msra.mxu0 %v1895
    %2126 = vmatprep.subr.bf16.mxu0 0
    %2127 = vmatpush1.bf16.msra.mxu0 %v1896
    %2128 = vmatprep.subr.bf16.mxu0 0
    %2129 = vmatpush1.bf16.msra.mxu0 %v1897
    %2130 = vmatprep.subr.bf16.mxu0 0
    %2131 = vmatpush1.bf16.msra.mxu0 %v1898
    %2132 = vmatprep.subr.bf16.mxu0 0
    %2133 = vmatpush1.bf16.msra.mxu0 %v1899
    %2134 = vmatprep.subr.bf16.mxu0 0
    %2135 = vmatpush1.bf16.msra.mxu0 %v1900
    %2136 = vmatprep.subr.bf16.mxu0 0
    %2137 = vmatpush1.bf16.msra.mxu0 %v1901
    %2138 = vmatprep.subr.bf16.mxu0 0
    %2139 = vmatpush1.bf16.msra.mxu0 %v1902
    %2140 = vmatprep.subr.bf16.mxu0 0
    %2141 = vmatpush1.bf16.msra.mxu0 %v1903
    %2142 = vmatprep.subr.bf16.mxu0 0
    %2143 = vmatpush1.bf16.msra.mxu0 %v1904
    %2144 = vmatprep.subr.bf16.mxu0 0
    %2145 = vmatpush1.bf16.msra.mxu0 %v1905
    %2146 = vmatprep.subr.bf16.mxu0 0
    %2147 = vmatpush1.bf16.msra.mxu0 %v1906
    %2148 = vmatprep.mubr.bf16.mxu0 %v1367
    %2149 = vmatmul.mubr.bf16.gmra.mrb[0].mxu0 %v1366
    %v2150 = vpop.f32.mrb[0].mxu0
    %v2151 = vadd.f32 %v2054, %v2150
    %v2152 = vpop.f32.mrb[0].mxu0
    %v2153 = vpop.f32.mrb[0].mxu0
    %v2154 = vadd.f32 %v2057, %v2153
    %v2155 = vpop.f32.mrb[0].mxu0
    %2156 = vmatprep.mubr.bf16.mxu0 %v1376
    %2157 = vmatmul.mubr.bf16.gmra.mrb[0].mxu0 %v1375
    %v2158 = vpop.f32.mrb[0].mxu0
    %v2159 = vadd.f32 %v2062, %v2158
    %v2160 = vpop.f32.mrb[0].mxu0
    %v2161 = vpop.f32.mrb[0].mxu0
    %v2162 = vadd.f32 %v2065, %v2161
    %v2163 = vpop.f32.mrb[0].mxu0
    %2164 = vmatprep.mubr.bf16.mxu0 %v1385
    %2165 = vmatmul.mubr.bf16.gmra.mrb[0].mxu0 %v1384
    %v2166 = vpop.f32.mrb[0].mxu0
    %v2167 = vadd.f32 %v2070, %v2166
    %v2168 = vpop.f32.mrb[0].mxu0
    %v2169 = vpop.f32.mrb[0].mxu0
    %v2170 = vadd.f32 %v2073, %v2169
    %v2171 = vpop.f32.mrb[0].mxu0
    %2172 = vmatprep.mubr.bf16.mxu0 %v1394
    %2173 = vmatmul.mubr.bf16.gmra.mrb[0].mxu0 %v1393
    %v2174 = vpop.f32.mrb[0].mxu0
    %v2175 = vadd.f32 %v2078, %v2174
    %v2176 = vpop.f32.mrb[0].mxu0
    %v2177 = vpop.f32.mrb[0].mxu0
    %v2178 = vadd.f32 %v2081, %v2177
    %v2179 = vpop.f32.mrb[0].mxu0
    %2180 = vmatprep.mubr.bf16.mxu0 %v1403
    %2181 = vmatmul.mubr.bf16.gmra.mrb[0].mxu0 %v1402
    %v2182 = vpop.f32.mrb[0].mxu0
    %v2183 = vadd.f32 %v2086, %v2182
    %v2184 = vpop.f32.mrb[0].mxu0
    %v2185 = vpop.f32.mrb[0].mxu0
    %v2186 = vadd.f32 %v2089, %v2185
    %v2187 = vpop.f32.mrb[0].mxu0
    %2188 = vmatprep.mubr.bf16.mxu0 %v1412
    %2189 = vmatmul.mubr.bf16.gmra.mrb[0].mxu0 %v1411
    %v2190 = vpop.f32.mrb[0].mxu0
    %v2191 = vadd.f32 %v2094, %v2190
    %v2192 = vpop.f32.mrb[0].mxu0
    %v2193 = vpop.f32.mrb[0].mxu0
    %v2194 = vadd.f32 %v2097, %v2193
    %v2195 = vpop.f32.mrb[0].mxu0
    %2196 = vmatprep.mubr.bf16.mxu0 %v1421
    %2197 = vmatmul.mubr.bf16.gmra.mrb[0].mxu0 %v1420
    %v2198 = vpop.f32.mrb[0].mxu0
    %v2199 = vadd.f32 %v2102, %v2198
    %v2200 = vpop.f32.mrb[0].mxu0
    %v2201 = vpop.f32.mrb[0].mxu0
    %v2202 = vadd.f32 %v2105, %v2201
    %v2203 = vpop.f32.mrb[0].mxu0
    %2204 = vmatprep.mubr.bf16.mxu0 %v1430
    %2205 = vmatmul.mubr.bf16.gmra.mrb[0].mxu0 %v1429
    %v2206 = vpop.f32.mrb[0].mxu0
    %v2207 = vadd.f32 %v2110, %v2206
    %v2208 = vpop.f32.mrb[0].mxu0
    %v2209 = vpop.f32.mrb[0].mxu0
    %v2210 = vadd.f32 %v2113, %v2209
    %v2211 = vpop.f32.mrb[0].mxu0
    %2212 = vdwg.mxu0
    %2213 = vmatprep.subr.bf16.mxu0 0
    %2214 = vmatpush1.bf16.msra.mxu0 %v1907
    %2215 = vmatprep.subr.bf16.mxu0 0
    %2216 = vmatpush1.bf16.msra.mxu0 %v1908
    %2217 = vmatprep.subr.bf16.mxu0 0
    %2218 = vmatpush1.bf16.msra.mxu0 %v1909
    %2219 = vmatprep.subr.bf16.mxu0 0
    %2220 = vmatpush1.bf16.msra.mxu0 %v1910
    %2221 = vmatprep.subr.bf16.mxu0 0
    %2222 = vmatpush1.bf16.msra.mxu0 %v1911
    %2223 = vmatprep.subr.bf16.mxu0 0
    %2224 = vmatpush1.bf16.msra.mxu0 %v1912
    %2225 = vmatprep.subr.bf16.mxu0 0
    %2226 = vmatpush1.bf16.msra.mxu0 %v1913
    %2227 = vmatprep.subr.bf16.mxu0 0
    %2228 = vmatpush1.bf16.msra.mxu0 %v1914
    %2229 = vmatprep.subr.bf16.mxu0 0
    %2230 = vmatpush1.bf16.msra.mxu0 %v1915
    %2231 = vmatprep.subr.bf16.mxu0 0
    %2232 = vmatpush1.bf16.msra.mxu0 %v1916
    %2233 = vmatprep.subr.bf16.mxu0 0
    %2234 = vmatpush1.bf16.msra.mxu0 %v1917
    %2235 = vmatprep.subr.bf16.mxu0 0
    %2236 = vmatpush1.bf16.msra.mxu0 %v1918
    %2237 = vmatprep.subr.bf16.mxu0 0
    %2238 = vmatpush1.bf16.msra.mxu0 %v1919
    %2239 = vmatprep.subr.bf16.mxu0 0
    %2240 = vmatpush1.bf16.msra.mxu0 %v1920
    %2241 = vmatprep.subr.bf16.mxu0 0
    %2242 = vmatpush1.bf16.msra.mxu0 %v1921
    %2243 = vmatprep.subr.bf16.mxu0 0
    %2244 = vmatpush1.bf16.msra.mxu0 %v1922
    %2245 = vmatprep.mubr.bf16.mxu0 %v1369
    %2246 = vmatmul.mubr.bf16.gmra.mrb[0].mxu0 %v1368
    %v2247 = vpop.f32.mrb[0].mxu0
    %v2248 = vadd.f32 %v2151, %v2247
    %v2249 = vpop.f32.mrb[0].mxu0
    %v2250 = vpop.f32.mrb[0].mxu0
    %v2251 = vadd.f32 %v2154, %v2250
    %v2252 = vpop.f32.mrb[0].mxu0
    %2253 = vmatprep.mubr.bf16.mxu0 %v1378
    %2254 = vmatmul.mubr.bf16.gmra.mrb[0].mxu0 %v1377
    %v2255 = vpop.f32.mrb[0].mxu0
    %v2256 = vadd.f32 %v2159, %v2255
    %v2257 = vpop.f32.mrb[0].mxu0
    %v2258 = vpop.f32.mrb[0].mxu0
    %v2259 = vadd.f32 %v2162, %v2258
    %v2260 = vpop.f32.mrb[0].mxu0
    %2261 = vmatprep.mubr.bf16.mxu0 %v1387
    %2262 = vmatmul.mubr.bf16.gmra.mrb[0].mxu0 %v1386
    %v2263 = vpop.f32.mrb[0].mxu0
    %v2264 = vadd.f32 %v2167, %v2263
    %v2265 = vpop.f32.mrb[0].mxu0
    %v2266 = vpop.f32.mrb[0].mxu0
    %v2267 = vadd.f32 %v2170, %v2266
    %v2268 = vpop.f32.mrb[0].mxu0
    %2269 = vmatprep.mubr.bf16.mxu0 %v1396
    %2270 = vmatmul.mubr.bf16.gmra.mrb[0].mxu0 %v1395
    %v2271 = vpop.f32.mrb[0].mxu0
    %v2272 = vadd.f32 %v2175, %v2271
    %v2273 = vpop.f32.mrb[0].mxu0
    %v2274 = vpop.f32.mrb[0].mxu0
    %v2275 = vadd.f32 %v2178, %v2274
    %v2276 = vpop.f32.mrb[0].mxu0
    %2277 = vmatprep.mubr.bf16.mxu0 %v1405
    %2278 = vmatmul.mubr.bf16.gmra.mrb[0].mxu0 %v1404
    %v2279 = vpop.f32.mrb[0].mxu0
    %v2280 = vadd.f32 %v2183, %v2279
    %v2281 = vpop.f32.mrb[0].mxu0
    %v2282 = vpop.f32.mrb[0].mxu0
    %v2283 = vadd.f32 %v2186, %v2282
    %v2284 = vpop.f32.mrb[0].mxu0
    %2285 = vmatprep.mubr.bf16.mxu0 %v1414
    %2286 = vmatmul.mubr.bf16.gmra.mrb[0].mxu0 %v1413
    %v2287 = vpop.f32.mrb[0].mxu0
    %v2288 = vadd.f32 %v2191, %v2287
    %v2289 = vpop.f32.mrb[0].mxu0
    %v2290 = vpop.f32.mrb[0].mxu0
    %v2291 = vadd.f32 %v2194, %v2290
    %v2292 = vpop.f32.mrb[0].mxu0
    %2293 = vmatprep.mubr.bf16.mxu0 %v1423
    %2294 = vmatmul.mubr.bf16.gmra.mrb[0].mxu0 %v1422
    %v2295 = vpop.f32.mrb[0].mxu0
    %v2296 = vadd.f32 %v2199, %v2295
    %v2297 = vpop.f32.mrb[0].mxu0
    %v2298 = vpop.f32.mrb[0].mxu0
    %v2299 = vadd.f32 %v2202, %v2298
    %v2300 = vpop.f32.mrb[0].mxu0
    %2301 = vmatprep.mubr.bf16.mxu0 %v1432
    %2302 = vmatmul.mubr.bf16.gmra.mrb[0].mxu0 %v1431
    %v2303 = vpop.f32.mrb[0].mxu0
    %v2304 = vadd.f32 %v2207, %v2303
    %v2305 = vpop.f32.mrb[0].mxu0
    %v2306 = vpop.f32.mrb[0].mxu0
    %v2307 = vadd.f32 %v2210, %v2306
    %v2308 = vpop.f32.mrb[0].mxu0
    %2309 = vdwg.mxu0
    %2310 = vmatprep.subr.bf16.mxu0 0
    %2311 = vmatpush1.bf16.msra.mxu0 %v1923
    %2312 = vmatprep.subr.bf16.mxu0 0
    %2313 = vmatpush1.bf16.msra.mxu0 %v1924
    %2314 = vmatprep.subr.bf16.mxu0 0
    %2315 = vmatpush1.bf16.msra.mxu0 %v1925
    %2316 = vmatprep.subr.bf16.mxu0 0
    %2317 = vmatpush1.bf16.msra.mxu0 %v1926
    %2318 = vmatprep.subr.bf16.mxu0 0
    %2319 = vmatpush1.bf16.msra.mxu0 %v1927
    %2320 = vmatprep.subr.bf16.mxu0 0
    %2321 = vmatpush1.bf16.msra.mxu0 %v1928
    %2322 = vmatprep.subr.bf16.mxu0 0
    %2323 = vmatpush1.bf16.msra.mxu0 %v1929
    %2324 = vmatprep.subr.bf16.mxu0 0
    %2325 = vmatpush1.bf16.msra.mxu0 %v1930
    %2326 = vmatprep.subr.bf16.mxu0 0
    %2327 = vmatpush1.bf16.msra.mxu0 %v1931
    %2328 = vmatprep.subr.bf16.mxu0 0
    %2329 = vmatpush1.bf16.msra.mxu0 %v1932
    %2330 = vmatprep.subr.bf16.mxu0 0
    %2331 = vmatpush1.bf16.msra.mxu0 %v1933
    %2332 = vmatprep.subr.bf16.mxu0 0
    %2333 = vmatpush1.bf16.msra.mxu0 %v1934
    %2334 = vmatprep.subr.bf16.mxu0 0
    %2335 = vmatpush1.bf16.msra.mxu0 %v1935
    %2336 = vmatprep.subr.bf16.mxu0 0
    %2337 = vmatpush1.bf16.msra.mxu0 %v1936
    %2338 = vmatprep.subr.bf16.mxu0 0
    %2339 = vmatpush1.bf16.msra.mxu0 %v1937
    %2340 = vmatprep.subr.bf16.mxu0 0
    %2341 = vmatpush1.bf16.msra.mxu0 %v1938
    %2342 = vmatprep.mubr.bf16.mxu0 %v1371
    %2343 = vmatmul.mubr.bf16.gmra.mrb[0].mxu0 %v1370
    %v2344 = vpop.f32.mrb[0].mxu0
    %v2345 = vadd.f32 %v2248, %v2344
    %v2346 = vpop.f32.mrb[0].mxu0
    %v2347 = vpop.f32.mrb[0].mxu0
    %v2348 = vadd.f32 %v2251, %v2347
    %v2349 = vpop.f32.mrb[0].mxu0
    %2350 = vmatprep.mubr.bf16.mxu0 %v1380
    %2351 = vmatmul.mubr.bf16.gmra.mrb[0].mxu0 %v1379
    %v2352 = vpop.f32.mrb[0].mxu0
    %v2353 = vadd.f32 %v2256, %v2352
    %v2354 = vpop.f32.mrb[0].mxu0
    %v2355 = vpop.f32.mrb[0].mxu0
    %v2356 = vadd.f32 %v2259, %v2355
    %v2357 = vpop.f32.mrb[0].mxu0
    %2358 = vmatprep.mubr.bf16.mxu0 %v1389
    %2359 = vmatmul.mubr.bf16.gmra.mrb[0].mxu0 %v1388
    %v2360 = vpop.f32.mrb[0].mxu0
    %v2361 = vadd.f32 %v2264, %v2360
    %v2362 = vpop.f32.mrb[0].mxu0
    %v2363 = vpop.f32.mrb[0].mxu0
    %v2364 = vadd.f32 %v2267, %v2363
    %v2365 = vpop.f32.mrb[0].mxu0
    %2366 = vmatprep.mubr.bf16.mxu0 %v1398
    %2367 = vmatmul.mubr.bf16.gmra.mrb[0].mxu0 %v1397
    %v2368 = vpop.f32.mrb[0].mxu0
    %v2369 = vadd.f32 %v2272, %v2368
    %v2370 = vpop.f32.mrb[0].mxu0
    %v2371 = vpop.f32.mrb[0].mxu0
    %v2372 = vadd.f32 %v2275, %v2371
    %v2373 = vpop.f32.mrb[0].mxu0
    %2374 = vmatprep.mubr.bf16.mxu0 %v1407
    %2375 = vmatmul.mubr.bf16.gmra.mrb[0].mxu0 %v1406
    %v2376 = vpop.f32.mrb[0].mxu0
    %v2377 = vadd.f32 %v2280, %v2376
    %v2378 = vpop.f32.mrb[0].mxu0
    %v2379 = vpop.f32.mrb[0].mxu0
    %v2380 = vadd.f32 %v2283, %v2379
    %v2381 = vpop.f32.mrb[0].mxu0
    %2382 = vmatprep.mubr.bf16.mxu0 %v1416
    %2383 = vmatmul.mubr.bf16.gmra.mrb[0].mxu0 %v1415
    %v2384 = vpop.f32.mrb[0].mxu0
    %v2385 = vadd.f32 %v2288, %v2384
    %v2386 = vpop.f32.mrb[0].mxu0
    %v2387 = vpop.f32.mrb[0].mxu0
    %v2388 = vadd.f32 %v2291, %v2387
    %v2389 = vpop.f32.mrb[0].mxu0
    %2390 = vmatprep.mubr.bf16.mxu0 %v1425
    %2391 = vmatmul.mubr.bf16.gmra.mrb[0].mxu0 %v1424
    %v2392 = vpop.f32.mrb[0].mxu0
    %v2393 = vadd.f32 %v2296, %v2392
    %v2394 = vpop.f32.mrb[0].mxu0
    %v2395 = vpop.f32.mrb[0].mxu0
    %v2396 = vadd.f32 %v2299, %v2395
    %v2397 = vpop.f32.mrb[0].mxu0
    %2398 = vmatprep.mubr.bf16.mxu0 %v1434
    %2399 = vmatmul.mubr.bf16.gmra.mrb[0].mxu0 %v1433
    %v2400 = vpop.f32.mrb[0].mxu0
    %v2401 = vadd.f32 %v2304, %v2400
    %v2402 = vpop.f32.mrb[0].mxu0
    %v2403 = vpop.f32.mrb[0].mxu0
    %v2404 = vadd.f32 %v2307, %v2403
    %v2405 = vpop.f32.mrb[0].mxu0
    %2406 = vdwg.mxu0
    %2407 = vmatprep.subr.bf16.mxu0 0
    %2408 = vmatpush1.bf16.msra.mxu0 %v1939
    %2409 = vmatprep.subr.bf16.mxu0 0
    %2410 = vmatpush1.bf16.msra.mxu0 %v1940
    %2411 = vmatprep.subr.bf16.mxu0 0
    %2412 = vmatpush1.bf16.msra.mxu0 %v1941
    %2413 = vmatprep.subr.bf16.mxu0 0
    %2414 = vmatpush1.bf16.msra.mxu0 %v1942
    %2415 = vmatprep.subr.bf16.mxu0 0
    %2416 = vmatpush1.bf16.msra.mxu0 %v1943
    %2417 = vmatprep.subr.bf16.mxu0 0
    %2418 = vmatpush1.bf16.msra.mxu0 %v1944
    %2419 = vmatprep.subr.bf16.mxu0 0
    %2420 = vmatpush1.bf16.msra.mxu0 %v1945
    %2421 = vmatprep.subr.bf16.mxu0 0
    %2422 = vmatpush1.bf16.msra.mxu0 %v1946
    %2423 = vmatprep.subr.bf16.mxu0 0
    %2424 = vmatpush1.bf16.msra.mxu0 0
    %2425 = vmatprep.subr.bf16.mxu0 0
    %2426 = vmatpush1.bf16.msra.mxu0 0
    %2427 = vmatprep.subr.bf16.mxu0 0
    %2428 = vmatpush1.bf16.msra.mxu0 0
    %2429 = vmatprep.subr.bf16.mxu0 0
    %2430 = vmatpush1.bf16.msra.mxu0 0
    %2431 = vmatprep.subr.bf16.mxu0 0
    %2432 = vmatpush1.bf16.msra.mxu0 0
    %2433 = vmatprep.subr.bf16.mxu0 0
    %2434 = vmatpush1.bf16.msra.mxu0 0
    %2435 = vmatprep.subr.bf16.mxu0 0
    %2436 = vmatpush1.bf16.msra.mxu0 0
    %2437 = vmatprep.subr.bf16.mxu0 0
    %2438 = vmatpush1.bf16.msra.mxu0 0
    %2439 = vmatprep.mubr.bf16.mxu0 0
    %2440 = vmatmul.mubr.bf16.gmra.mrb[0].mxu0 %v1372
    %v2441 = vpop.f32.mrb[0].mxu0
    %v2442 = vadd.f32 %v2345, %v2441
    %v2443 = vpop.f32.mrb[0].mxu0
    %v2444 = vpop.f32.mrb[0].mxu0
    %v2445 = vadd.f32 %v2348, %v2444
    %v2446 = vpop.f32.mrb[0].mxu0
    %2447 = vmatprep.mubr.bf16.mxu0 0
    %2448 = vmatmul.mubr.bf16.gmra.mrb[0].mxu0 %v1381
    %v2449 = vpop.f32.mrb[0].mxu0
    %v2450 = vadd.f32 %v2353, %v2449
    %v2451 = vpop.f32.mrb[0].mxu0
    %v2452 = vpop.f32.mrb[0].mxu0
    %v2453 = vadd.f32 %v2356, %v2452
    %v2454 = vpop.f32.mrb[0].mxu0
    %2455 = vmatprep.mubr.bf16.mxu0 0
    %2456 = vmatmul.mubr.bf16.gmra.mrb[0].mxu0 %v1390
    %v2457 = vpop.f32.mrb[0].mxu0
    %v2458 = vadd.f32 %v2361, %v2457
    %v2459 = vpop.f32.mrb[0].mxu0
    %v2460 = vpop.f32.mrb[0].mxu0
    %v2461 = vadd.f32 %v2364, %v2460
    %v2462 = vpop.f32.mrb[0].mxu0
    %2463 = vmatprep.mubr.bf16.mxu0 0
    %2464 = vmatmul.mubr.bf16.gmra.mrb[0].mxu0 %v1399
    %v2465 = vpop.f32.mrb[0].mxu0
    %v2466 = vadd.f32 %v2369, %v2465
    %v2467 = vpop.f32.mrb[0].mxu0
    %v2468 = vpop.f32.mrb[0].mxu0
    %v2469 = vadd.f32 %v2372, %v2468
    %v2470 = vpop.f32.mrb[0].mxu0
    %2471 = vmatprep.mubr.bf16.mxu0 0
    %2472 = vmatmul.mubr.bf16.gmra.mrb[0].mxu0 %v1408
    %v2473 = vpop.f32.mrb[0].mxu0
    %v2474 = vadd.f32 %v2377, %v2473
    %v2475 = vpop.f32.mrb[0].mxu0
    %v2476 = vpop.f32.mrb[0].mxu0
    %v2477 = vadd.f32 %v2380, %v2476
    %v2478 = vpop.f32.mrb[0].mxu0
    %2479 = vmatprep.mubr.bf16.mxu0 0
    %2480 = vmatmul.mubr.bf16.gmra.mrb[0].mxu0 %v1417
    %v2481 = vpop.f32.mrb[0].mxu0
    %v2482 = vadd.f32 %v2385, %v2481
    %v2483 = vpop.f32.mrb[0].mxu0
    %v2484 = vpop.f32.mrb[0].mxu0
    %v2485 = vadd.f32 %v2388, %v2484
    %v2486 = vpop.f32.mrb[0].mxu0
    %2487 = vmatprep.mubr.bf16.mxu0 0
    %2488 = vmatmul.mubr.bf16.gmra.mrb[0].mxu0 %v1426
    %v2489 = vpop.f32.mrb[0].mxu0
    %v2490 = vadd.f32 %v2393, %v2489
    %v2491 = vpop.f32.mrb[0].mxu0
    %v2492 = vpop.f32.mrb[0].mxu0
    %v2493 = vadd.f32 %v2396, %v2492
    %v2494 = vpop.f32.mrb[0].mxu0
    %2495 = vmatprep.mubr.bf16.mxu0 0
    %2496 = vmatmul.mubr.bf16.gmra.mrb[0].mxu0 %v1435
    %v2497 = vpop.f32.mrb[0].mxu0
    %v2498 = vadd.f32 %v2401, %v2497
    %v2499 = vpop.f32.mrb[0].mxu0
    %v2500 = vpop.f32.mrb[0].mxu0
    %v2501 = vadd.f32 %v2404, %v2500
    %v2502 = vpop.f32.mrb[0].mxu0
    %2503 = vdwg.mxu0
    %v2504 = vmax.f32 %v2442, 0.0
    %v2505 = vmax.f32 %v2445, 0.0
    %v2506 = vmax.f32 %v2450, 0.0
    %v2507 = vmax.f32 %v2453, 0.0
    %v2508 = vmax.f32 %v2458, 0.0
    %v2509 = vmax.f32 %v2461, 0.0
    %v2510 = vmax.f32 %v2466, 0.0
    %v2511 = vmax.f32 %v2469, 0.0
    %v2512 = vmax.f32 %v2474, 0.0
    %v2513 = vmax.f32 %v2477, 0.0
    %v2514 = vmax.f32 %v2482, 0.0
    %v2515 = vmax.f32 %v2485, 0.0
    %v2516 = vmax.f32 %v2490, 0.0
    %v2517 = vmax.f32 %v2493, 0.0
    %v2518 = vmax.f32 %v2498, 0.0
    %v2519 = vmax.f32 %v2501, 0.0
    %v2520 = vpack.c.bf16 %v2505, %v2504
    %v2521 = vpack.c.bf16 %v2507, %v2506
    %v2522 = vpack.c.bf16 %v2509, %v2508
    %v2523 = vpack.c.bf16 %v2511, %v2510
    %v2524 = vpack.c.bf16 %v2513, %v2512
    %v2525 = vpack.c.bf16 %v2515, %v2514
    %v2526 = vpack.c.bf16 %v2517, %v2516
    %v2527 = vpack.c.bf16 %v2519, %v2518
    %2528 = vst [vmem:[#allocation3] sm:$0xf] 0
    %2529 = vst [vmem:[#allocation3 + $0x4] sm:$0x1] 0
    %2530 = vst [vmem:[#allocation3 + $0x50] sm:$0xf] 0
    %2531 = vst [vmem:[#allocation3 + $0x54] sm:$0x1] 0
    %s2532 = scalar_lea.vmem [#allocation3], 72
    %2533 = vst [vmem:[%s2532] sm:$0xf] 0
    %2534 = vst [vmem:[%s2532 + $0x4] sm:$0x1] 0
    %2535 = vst [vmem:[%s2532 + $0x50] sm:$0xf] 0
    %2536 = vst [vmem:[%s2532 + $0x54] sm:$0x1] 0
    %s2537 = scalar_lea.vmem [#allocation3], 8
    %vm2538 = vcmask 1040384
    %vm2539 = vsmask.f32 256
    %vm2540 = vmand %vm2538, %vm2539
    %v2541 = vld [vmem:[%s2537] sm:$0x1]
    %v2542 = vsel %vm2540, 0, %v2541
    %2543 = vst [vmem:[%s2537] sm:$0x1] %v2542
    %v2544 = vld [vmem:[%s2537 + $0x8] sm:$0x1]
    %v2545 = vsel %vm2540, 0, %v2544
    %2546 = vst [vmem:[%s2537 + $0x8] sm:$0x1] %v2545
    %v2547 = vld [vmem:[%s2537 + $0x10] sm:$0x1]
    %v2548 = vsel %vm2540, 0, %v2547
    %2549 = vst [vmem:[%s2537 + $0x10] sm:$0x1] %v2548
    %v2550 = vld [vmem:[%s2537 + $0x18] sm:$0x1]
    %v2551 = vsel %vm2540, 0, %v2550
    %2552 = vst [vmem:[%s2537 + $0x18] sm:$0x1] %v2551
    %v2553 = vld [vmem:[%s2537 + $0x20] sm:$0x1]
    %v2554 = vsel %vm2540, 0, %v2553
    %2555 = vst [vmem:[%s2537 + $0x20] sm:$0x1] %v2554
    %v2556 = vld [vmem:[%s2537 + $0x28] sm:$0x1]
    %v2557 = vsel %vm2540, 0, %v2556
    %2558 = vst [vmem:[%s2537 + $0x28] sm:$0x1] %v2557
    %v2559 = vld [vmem:[%s2537 + $0x30] sm:$0x1]
    %v2560 = vsel %vm2540, 0, %v2559
    %2561 = vst [vmem:[%s2537 + $0x30] sm:$0x1] %v2560
    %v2562 = vld [vmem:[%s2537 + $0x38] sm:$0x1]
    %v2563 = vsel %vm2540, 0, %v2562
    %2564 = vst [vmem:[%s2537 + $0x38] sm:$0x1] %v2563
    %v2565 = vld [vmem:[%s2537 + $0x50] sm:$0x1]
    %v2566 = vsel %vm2540, 0, %v2565
    %2567 = vst [vmem:[%s2537 + $0x50] sm:$0x1] %v2566
    %v2568 = vld [vmem:[%s2537 + $0x58] sm:$0x1]
    %v2569 = vsel %vm2540, 0, %v2568
    %2570 = vst [vmem:[%s2537 + $0x58] sm:$0x1] %v2569
    %v2571 = vld [vmem:[%s2537 + $0x60] sm:$0x1]
    %v2572 = vsel %vm2540, 0, %v2571
    %2573 = vst [vmem:[%s2537 + $0x60] sm:$0x1] %v2572
    %v2574 = vld [vmem:[%s2537 + $0x68] sm:$0x1]
    %v2575 = vsel %vm2540, 0, %v2574
    %2576 = vst [vmem:[%s2537 + $0x68] sm:$0x1] %v2575
    %v2577 = vld [vmem:[%s2537 + $0x70] sm:$0x1]
    %v2578 = vsel %vm2540, 0, %v2577
    %2579 = vst [vmem:[%s2537 + $0x70] sm:$0x1] %v2578
    %v2580 = vld [vmem:[%s2537 + $0x78] sm:$0x1]
    %v2581 = vsel %vm2540, 0, %v2580
    %2582 = vst [vmem:[%s2537 + $0x78] sm:$0x1] %v2581
    %v2583 = vld [vmem:[%s2537 + $0x80] sm:$0x1]
    %v2584 = vsel %vm2540, 0, %v2583
    %2585 = vst [vmem:[%s2537 + $0x80] sm:$0x1] %v2584
    %v2586 = vld [vmem:[%s2537 + $0x88] sm:$0x1]
    %v2587 = vsel %vm2540, 0, %v2586
    %2588 = vst [vmem:[%s2537 + $0x88] sm:$0x1] %v2587
    %vm2589 = vsmask.f32 7938
    %vm2590 = vmand %vm2538, %vm2589
    %v2591 = vld [vmem:[%s2537 + $0x4] sm:$0x1]
    %v2592 = vsel %vm2590, 0, %v2591
    %2593 = vst [vmem:[%s2537 + $0x4] sm:$0x1] %v2592
    %v2594 = vld [vmem:[%s2537 + $0xc] sm:$0x1]
    %v2595 = vsel %vm2590, 0, %v2594
    %2596 = vst [vmem:[%s2537 + $0xc] sm:$0x1] %v2595
    %v2597 = vld [vmem:[%s2537 + $0x14] sm:$0x1]
    %v2598 = vsel %vm2590, 0, %v2597
    %2599 = vst [vmem:[%s2537 + $0x14] sm:$0x1] %v2598
    %v2600 = vld [vmem:[%s2537 + $0x1c] sm:$0x1]
    %v2601 = vsel %vm2590, 0, %v2600
    %2602 = vst [vmem:[%s2537 + $0x1c] sm:$0x1] %v2601
    %v2603 = vld [vmem:[%s2537 + $0x24] sm:$0x1]
    %v2604 = vsel %vm2590, 0, %v2603
    %2605 = vst [vmem:[%s2537 + $0x24] sm:$0x1] %v2604
    %v2606 = vld [vmem:[%s2537 + $0x2c] sm:$0x1]
    %v2607 = vsel %vm2590, 0, %v2606
    %2608 = vst [vmem:[%s2537 + $0x2c] sm:$0x1] %v2607
    %v2609 = vld [vmem:[%s2537 + $0x34] sm:$0x1]
    %v2610 = vsel %vm2590, 0, %v2609
    %2611 = vst [vmem:[%s2537 + $0x34] sm:$0x1] %v2610
    %v2612 = vld [vmem:[%s2537 + $0x3c] sm:$0x1]
    %v2613 = vsel %vm2590, 0, %v2612
    %2614 = vst [vmem:[%s2537 + $0x3c] sm:$0x1] %v2613
    %v2615 = vld [vmem:[%s2537 + $0x54] sm:$0x1]
    %v2616 = vsel %vm2590, 0, %v2615
    %2617 = vst [vmem:[%s2537 + $0x54] sm:$0x1] %v2616
    %v2618 = vld [vmem:[%s2537 + $0x5c] sm:$0x1]
    %v2619 = vsel %vm2590, 0, %v2618
    %2620 = vst [vmem:[%s2537 + $0x5c] sm:$0x1] %v2619
    %v2621 = vld [vmem:[%s2537 + $0x64] sm:$0x1]
    %v2622 = vsel %vm2590, 0, %v2621
    %2623 = vst [vmem:[%s2537 + $0x64] sm:$0x1] %v2622
    %v2624 = vld [vmem:[%s2537 + $0x6c] sm:$0x1]
    %v2625 = vsel %vm2590, 0, %v2624
    %2626 = vst [vmem:[%s2537 + $0x6c] sm:$0x1] %v2625
    %v2627 = vld [vmem:[%s2537 + $0x74] sm:$0x1]
    %v2628 = vsel %vm2590, 0, %v2627
    %2629 = vst [vmem:[%s2537 + $0x74] sm:$0x1] %v2628
    %v2630 = vld [vmem:[%s2537 + $0x7c] sm:$0x1]
    %v2631 = vsel %vm2590, 0, %v2630
    %2632 = vst [vmem:[%s2537 + $0x7c] sm:$0x1] %v2631
    %v2633 = vld [vmem:[%s2537 + $0x84] sm:$0x1]
    %v2634 = vsel %vm2590, 0, %v2633
    %2635 = vst [vmem:[%s2537 + $0x84] sm:$0x1] %v2634
    %v2636 = vld [vmem:[%s2537 + $0x8c] sm:$0x1]
    %v2637 = vsel %vm2590, 0, %v2636
    %2638 = vst [vmem:[%s2537 + $0x8c] sm:$0x1] %v2637
    %v2647 = vunpack.c.l.b16 %v2520
    %v2648 = vunpack.c.h.b16 %v2520
    %v2649 = vunpack.c.l.b16 %v2521
    %v2650 = vunpack.c.h.b16 %v2521
    %v2651 = vunpack.c.l.b16 %v2522
    %v2652 = vunpack.c.h.b16 %v2522
    %v2653 = vunpack.c.l.b16 %v2523
    %v2654 = vunpack.c.h.b16 %v2523
    %v2655 = vunpack.c.l.b16 %v2524
    %v2656 = vunpack.c.h.b16 %v2524
    %v2657 = vunpack.c.l.b16 %v2525
    %v2658 = vunpack.c.h.b16 %v2525
    %v2659 = vunpack.c.l.b16 %v2526
    %v2660 = vunpack.c.h.b16 %v2526
    %v2661 = vunpack.c.l.b16 %v2527
    %v2662 = vunpack.c.h.b16 %v2527
    %v2663 = vpack.c.b16 %v2647, %v2647
    %v2664 = vpack.c.b16 %v2648, %v2648
    %v2665 = vpack.c.b16 %v2649, %v2649
    %v2666 = vpack.c.b16 %v2650, %v2650
    %v2667 = vpack.c.b16 %v2651, %v2651
    %v2668 = vpack.c.b16 %v2652, %v2652
    %v2669 = vpack.c.b16 %v2653, %v2653
    %v2670 = vpack.c.b16 %v2654, %v2654
    %v2671 = vpack.c.b16 %v2655, %v2655
    %v2672 = vpack.c.b16 %v2656, %v2656
    %v2673 = vpack.c.b16 %v2657, %v2657
    %v2674 = vpack.c.b16 %v2658, %v2658
    %v2675 = vpack.c.b16 %v2659, %v2659
    %v2676 = vpack.c.b16 %v2660, %v2660
    %v2677 = vpack.c.b16 %v2661, %v2661
    %v2678 = vpack.c.b16 %v2662, %v2662
    %v2680 = vshrl.u32 %v2663, 16
    %v2682 = vrot.slane %v2680, 7
    %v2683 = vshll.u32 %v2663, 16
    %v2685 = vor.u32 %v2682, %v2683
    %v2686 = vrot.slane %v2682, 4
    %v2688 = vshrl.u32 %v2664, 16
    %v2690 = vrot.slane %v2688, 7
    %v2691 = vshll.u32 %v2664, 16
    %v2693 = vor.u32 %v2690, %v2691
    %v2694 = vrot.slane %v2690, 4
    %v2696 = vshrl.u32 %v2665, 16
    %v2698 = vrot.slane %v2696, 7
    %v2699 = vshll.u32 %v2665, 16
    %v2701 = vor.u32 %v2698, %v2699
    %v2702 = vrot.slane %v2698, 4
    %v2704 = vshrl.u32 %v2666, 16
    %v2706 = vrot.slane %v2704, 7
    %v2707 = vshll.u32 %v2666, 16
    %v2709 = vor.u32 %v2706, %v2707
    %v2710 = vrot.slane %v2706, 4
    %v2712 = vshrl.u32 %v2667, 16
    %v2714 = vrot.slane %v2712, 7
    %v2715 = vshll.u32 %v2667, 16
    %v2717 = vor.u32 %v2714, %v2715
    %v2718 = vrot.slane %v2714, 4
    %v2720 = vshrl.u32 %v2668, 16
    %v2722 = vrot.slane %v2720, 7
    %v2723 = vshll.u32 %v2668, 16
    %v2725 = vor.u32 %v2722, %v2723
    %v2726 = vrot.slane %v2722, 4
    %v2728 = vshrl.u32 %v2669, 16
    %v2730 = vrot.slane %v2728, 7
    %v2731 = vshll.u32 %v2669, 16
    %v2733 = vor.u32 %v2730, %v2731
    %v2734 = vrot.slane %v2730, 4
    %v2736 = vshrl.u32 %v2670, 16
    %v2738 = vrot.slane %v2736, 7
    %v2739 = vshll.u32 %v2670, 16
    %v2741 = vor.u32 %v2738, %v2739
    %v2742 = vrot.slane %v2738, 4
    %v2744 = vshrl.u32 %v2671, 16
    %v2746 = vrot.slane %v2744, 7
    %v2747 = vshll.u32 %v2671, 16
    %v2749 = vor.u32 %v2746, %v2747
    %v2750 = vrot.slane %v2746, 4
    %v2752 = vshrl.u32 %v2672, 16
    %v2754 = vrot.slane %v2752, 7
    %v2755 = vshll.u32 %v2672, 16
    %v2757 = vor.u32 %v2754, %v2755
    %v2758 = vrot.slane %v2754, 4
    %v2760 = vshrl.u32 %v2673, 16
    %v2762 = vrot.slane %v2760, 7
    %v2763 = vshll.u32 %v2673, 16
    %v2765 = vor.u32 %v2762, %v2763
    %v2766 = vrot.slane %v2762, 4
    %v2768 = vshrl.u32 %v2674, 16
    %v2770 = vrot.slane %v2768, 7
    %v2771 = vshll.u32 %v2674, 16
    %v2773 = vor.u32 %v2770, %v2771
    %v2774 = vrot.slane %v2770, 4
    %v2776 = vshrl.u32 %v2675, 16
    %v2778 = vrot.slane %v2776, 7
    %v2779 = vshll.u32 %v2675, 16
    %v2781 = vor.u32 %v2778, %v2779
    %v2782 = vrot.slane %v2778, 4
    %v2784 = vshrl.u32 %v2676, 16
    %v2786 = vrot.slane %v2784, 7
    %v2787 = vshll.u32 %v2676, 16
    %v2789 = vor.u32 %v2786, %v2787
    %v2790 = vrot.slane %v2786, 4
    %v2792 = vshrl.u32 %v2677, 16
    %v2794 = vrot.slane %v2792, 7
    %v2795 = vshll.u32 %v2677, 16
    %v2797 = vor.u32 %v2794, %v2795
    %v2798 = vrot.slane %v2794, 4
    %v2800 = vshrl.u32 %v2678, 16
    %v2802 = vrot.slane %v2800, 7
    %v2803 = vshll.u32 %v2678, 16
    %v2805 = vor.u32 %v2802, %v2803
    %v2806 = vrot.slane %v2802, 4
    %vm2839 = vcmask 1043456
    %vm2840 = vmand %vm2839, %vm2589
    %v2841 = vld [vmem:[%s2537] sm:$0xf]
    %v2842 = vsel %vm2840, %v2685, %v2841
    %2843 = vst [vmem:[%s2537] sm:$0xf] %v2842
    %v2844 = vld [vmem:[%s2537 + $0x4] sm:$0x1]
    %v2845 = vsel %vm2540, %v2686, %v2844
    %2846 = vst [vmem:[%s2537 + $0x4] sm:$0x1] %v2845
    %v2847 = vld [vmem:[%s2537 + $0x8] sm:$0xf]
    %v2848 = vsel %vm2840, %v2693, %v2847
    %2849 = vst [vmem:[%s2537 + $0x8] sm:$0xf] %v2848
    %v2850 = vld [vmem:[%s2537 + $0xc] sm:$0x1]
    %v2851 = vsel %vm2540, %v2694, %v2850
    %2852 = vst [vmem:[%s2537 + $0xc] sm:$0x1] %v2851
    %v2853 = vld [vmem:[%s2537 + $0x10] sm:$0xf]
    %v2854 = vsel %vm2840, %v2701, %v2853
    %2855 = vst [vmem:[%s2537 + $0x10] sm:$0xf] %v2854
    %v2856 = vld [vmem:[%s2537 + $0x14] sm:$0x1]
    %v2857 = vsel %vm2540, %v2702, %v2856
    %2858 = vst [vmem:[%s2537 + $0x14] sm:$0x1] %v2857
    %v2859 = vld [vmem:[%s2537 + $0x18] sm:$0xf]
    %v2860 = vsel %vm2840, %v2709, %v2859
    %2861 = vst [vmem:[%s2537 + $0x18] sm:$0xf] %v2860
    %v2862 = vld [vmem:[%s2537 + $0x1c] sm:$0x1]
    %v2863 = vsel %vm2540, %v2710, %v2862
    %2864 = vst [vmem:[%s2537 + $0x1c] sm:$0x1] %v2863
    %v2865 = vld [vmem:[%s2537 + $0x20] sm:$0xf]
    %v2866 = vsel %vm2840, %v2717, %v2865
    %2867 = vst [vmem:[%s2537 + $0x20] sm:$0xf] %v2866
    %v2868 = vld [vmem:[%s2537 + $0x24] sm:$0x1]
    %v2869 = vsel %vm2540, %v2718, %v2868
    %2870 = vst [vmem:[%s2537 + $0x24] sm:$0x1] %v2869
    %v2871 = vld [vmem:[%s2537 + $0x28] sm:$0xf]
    %v2872 = vsel %vm2840, %v2725, %v2871
    %2873 = vst [vmem:[%s2537 + $0x28] sm:$0xf] %v2872
    %v2874 = vld [vmem:[%s2537 + $0x2c] sm:$0x1]
    %v2875 = vsel %vm2540, %v2726, %v2874
    %2876 = vst [vmem:[%s2537 + $0x2c] sm:$0x1] %v2875
    %v2877 = vld [vmem:[%s2537 + $0x30] sm:$0xf]
    %v2878 = vsel %vm2840, %v2733, %v2877
    %2879 = vst [vmem:[%s2537 + $0x30] sm:$0xf] %v2878
    %v2880 = vld [vmem:[%s2537 + $0x34] sm:$0x1]
    %v2881 = vsel %vm2540, %v2734, %v2880
    %2882 = vst [vmem:[%s2537 + $0x34] sm:$0x1] %v2881
    %v2883 = vld [vmem:[%s2537 + $0x38] sm:$0xf]
    %v2884 = vsel %vm2840, %v2741, %v2883
    %2885 = vst [vmem:[%s2537 + $0x38] sm:$0xf] %v2884
    %v2886 = vld [vmem:[%s2537 + $0x3c] sm:$0x1]
    %v2887 = vsel %vm2540, %v2742, %v2886
    %2888 = vst [vmem:[%s2537 + $0x3c] sm:$0x1] %v2887
    %v2889 = vld [vmem:[%s2537 + $0x50] sm:$0xf]
    %v2890 = vsel %vm2840, %v2749, %v2889
    %2891 = vst [vmem:[%s2537 + $0x50] sm:$0xf] %v2890
    %v2892 = vld [vmem:[%s2537 + $0x54] sm:$0x1]
    %v2893 = vsel %vm2540, %v2750, %v2892
    %2894 = vst [vmem:[%s2537 + $0x54] sm:$0x1] %v2893
    %v2895 = vld [vmem:[%s2537 + $0x58] sm:$0xf]
    %v2896 = vsel %vm2840, %v2757, %v2895
    %2897 = vst [vmem:[%s2537 + $0x58] sm:$0xf] %v2896
    %v2898 = vld [vmem:[%s2537 + $0x5c] sm:$0x1]
    %v2899 = vsel %vm2540, %v2758, %v2898
    %2900 = vst [vmem:[%s2537 + $0x5c] sm:$0x1] %v2899
    %v2901 = vld [vmem:[%s2537 + $0x60] sm:$0xf]
    %v2902 = vsel %vm2840, %v2765, %v2901
    %2903 = vst [vmem:[%s2537 + $0x60] sm:$0xf] %v2902
    %v2904 = vld [vmem:[%s2537 + $0x64] sm:$0x1]
    %v2905 = vsel %vm2540, %v2766, %v2904
    %2906 = vst [vmem:[%s2537 + $0x64] sm:$0x1] %v2905
    %v2907 = vld [vmem:[%s2537 + $0x68] sm:$0xf]
    %v2908 = vsel %vm2840, %v2773, %v2907
    %2909 = vst [vmem:[%s2537 + $0x68] sm:$0xf] %v2908
    %v2910 = vld [vmem:[%s2537 + $0x6c] sm:$0x1]
    %v2911 = vsel %vm2540, %v2774, %v2910
    %2912 = vst [vmem:[%s2537 + $0x6c] sm:$0x1] %v2911
    %v2913 = vld [vmem:[%s2537 + $0x70] sm:$0xf]
    %v2914 = vsel %vm2840, %v2781, %v2913
    %2915 = vst [vmem:[%s2537 + $0x70] sm:$0xf] %v2914
    %v2916 = vld [vmem:[%s2537 + $0x74] sm:$0x1]
    %v2917 = vsel %vm2540, %v2782, %v2916
    %2918 = vst [vmem:[%s2537 + $0x74] sm:$0x1] %v2917
    %v2919 = vld [vmem:[%s2537 + $0x78] sm:$0xf]
    %v2920 = vsel %vm2840, %v2789, %v2919
    %2921 = vst [vmem:[%s2537 + $0x78] sm:$0xf] %v2920
    %v2922 = vld [vmem:[%s2537 + $0x7c] sm:$0x1]
    %v2923 = vsel %vm2540, %v2790, %v2922
    %2924 = vst [vmem:[%s2537 + $0x7c] sm:$0x1] %v2923
    %v2925 = vld [vmem:[%s2537 + $0x80] sm:$0xf]
    %v2926 = vsel %vm2840, %v2797, %v2925
    %2927 = vst [vmem:[%s2537 + $0x80] sm:$0xf] %v2926
    %v2928 = vld [vmem:[%s2537 + $0x84] sm:$0x1]
    %v2929 = vsel %vm2540, %v2798, %v2928
    %2930 = vst [vmem:[%s2537 + $0x84] sm:$0x1] %v2929
    %v2931 = vld [vmem:[%s2537 + $0x88] sm:$0xf]
    %v2932 = vsel %vm2840, %v2805, %v2931
    %2933 = vst [vmem:[%s2537 + $0x88] sm:$0xf] %v2932
    %v2934 = vld [vmem:[%s2537 + $0x8c] sm:$0x1]
    %v2935 = vsel %vm2540, %v2806, %v2934
    %2936 = vst [vmem:[%s2537 + $0x8c] sm:$0x1] %v2935
    %v2937 = vld [vmem:[#allocation3] sm:$0xf]
    %v2938 = vld [vmem:[#allocation3 + $0x8] sm:$0xf]
    %v2939 = vld [vmem:[#allocation3 + $0x10] sm:$0xf]
    %v2940 = vld [vmem:[#allocation3 + $0x18] sm:$0xf]
    %v2941 = vld [vmem:[#allocation3 + $0x20] sm:$0xf]
    %v2942 = vld [vmem:[#allocation3 + $0x28] sm:$0xf]
    %v2943 = vld [vmem:[#allocation3 + $0x30] sm:$0xf]
    %v2944 = vld [vmem:[#allocation3 + $0x38] sm:$0xf]
    %v2945 = vld [vmem:[#allocation3 + $0x50] sm:$0xf]
    %v2946 = vld [vmem:[#allocation3 + $0x58] sm:$0xf]
    %v2947 = vld [vmem:[#allocation3 + $0x60] sm:$0xf]
    %v2948 = vld [vmem:[#allocation3 + $0x68] sm:$0xf]
    %v2949 = vld [vmem:[#allocation3 + $0x70] sm:$0xf]
    %v2950 = vld [vmem:[#allocation3 + $0x78] sm:$0xf]
    %v2951 = vld [vmem:[#allocation3 + $0x80] sm:$0xf]
    %v2952 = vld [vmem:[#allocation3 + $0x88] sm:$0xf]
    %v2969 = vunpack.c.l.b16 %v2937
    %v2970 = vunpack.c.l.b16 %v2938
    %v2971 = vunpack.c.l.b16 %v2939
    %v2972 = vunpack.c.l.b16 %v2940
    %v2973 = vunpack.c.l.b16 %v2941
    %v2974 = vunpack.c.l.b16 %v2942
    %v2975 = vunpack.c.l.b16 %v2943
    %v2976 = vunpack.c.l.b16 %v2944
    %v2977 = vunpack.c.l.b16 %v2945
    %v2978 = vunpack.c.l.b16 %v2946
    %v2979 = vunpack.c.l.b16 %v2947
    %v2980 = vunpack.c.l.b16 %v2948
    %v2981 = vunpack.c.l.b16 %v2949
    %v2982 = vunpack.c.l.b16 %v2950
    %v2983 = vunpack.c.l.b16 %v2951
    %v2984 = vunpack.c.l.b16 %v2952
    %v2985 = vpack.c.b16 %v2970, %v2969
    %v2986 = vpack.c.b16 %v2972, %v2971
    %v2987 = vpack.c.b16 %v2974, %v2973
    %v2988 = vpack.c.b16 %v2976, %v2975
    %v2989 = vpack.c.b16 %v2978, %v2977
    %v2990 = vpack.c.b16 %v2980, %v2979
    %v2991 = vpack.c.b16 %v2982, %v2981
    %v2992 = vpack.c.b16 %v2984, %v2983
    %3001 = vst [vmem:[#allocation2] sm:$0xff] %v2985
    %3002 = vst [vmem:[#allocation2 + $0x48] sm:$0xff] %v2986
    %3003 = vst [vmem:[#allocation2 + $0x90] sm:$0xff] %v2987
    %3004 = vst [vmem:[#allocation2 + $0xd8] sm:$0xff] %v2988
    %3005 = vst [vmem:[#allocation2 + $0x120] sm:$0xff] %v2989
    %3006 = vst [vmem:[#allocation2 + $0x168] sm:$0xff] %v2990
    %3007 = vst [vmem:[#allocation2 + $0x1b0] sm:$0xff] %v2991
    %3008 = vst [vmem:[#allocation2 + $0x1f8] sm:$0xff] %v2992
    %v3009 = vld [vmem:[#allocation3] sm:$0xf]
    %v3010 = vld [vmem:[#allocation3 + $0x4] sm:$0x1]
    %v3011 = vld [vmem:[#allocation3 + $0x8] sm:$0xf]
    %v3012 = vld [vmem:[#allocation3 + $0xc] sm:$0x1]
    %v3013 = vld [vmem:[#allocation3 + $0x10] sm:$0xf]
    %v3014 = vld [vmem:[#allocation3 + $0x14] sm:$0x1]
    %v3015 = vld [vmem:[#allocation3 + $0x18] sm:$0xf]
    %v3016 = vld [vmem:[#allocation3 + $0x1c] sm:$0x1]
    %v3017 = vld [vmem:[#allocation3 + $0x20] sm:$0xf]
    %v3018 = vld [vmem:[#allocation3 + $0x24] sm:$0x1]
    %v3019 = vld [vmem:[#allocation3 + $0x28] sm:$0xf]
    %v3020 = vld [vmem:[#allocation3 + $0x2c] sm:$0x1]
    %v3021 = vld [vmem:[#allocation3 + $0x30] sm:$0xf]
    %v3022 = vld [vmem:[#allocation3 + $0x34] sm:$0x1]
    %v3023 = vld [vmem:[#allocation3 + $0x38] sm:$0xf]
    %v3024 = vld [vmem:[#allocation3 + $0x3c] sm:$0x1]
    %v3025 = vld [vmem:[#allocation3 + $0x50] sm:$0xf]
    %v3026 = vld [vmem:[#allocation3 + $0x54] sm:$0x1]
    %v3027 = vld [vmem:[#allocation3 + $0x58] sm:$0xf]
    %v3028 = vld [vmem:[#allocation3 + $0x5c] sm:$0x1]
    %v3029 = vld [vmem:[#allocation3 + $0x60] sm:$0xf]
    %v3030 = vld [vmem:[#allocation3 + $0x64] sm:$0x1]
    %v3031 = vld [vmem:[#allocation3 + $0x68] sm:$0xf]
    %v3032 = vld [vmem:[#allocation3 + $0x6c] sm:$0x1]
    %v3033 = vld [vmem:[#allocation3 + $0x70] sm:$0xf]
    %v3034 = vld [vmem:[#allocation3 + $0x74] sm:$0x1]
    %v3035 = vld [vmem:[#allocation3 + $0x78] sm:$0xf]
    %v3036 = vld [vmem:[#allocation3 + $0x7c] sm:$0x1]
    %v3037 = vld [vmem:[#allocation3 + $0x80] sm:$0xf]
    %v3038 = vld [vmem:[#allocation3 + $0x84] sm:$0x1]
    %v3039 = vld [vmem:[#allocation3 + $0x88] sm:$0xf]
    %v3040 = vld [vmem:[#allocation3 + $0x8c] sm:$0x1]
    %v3042 = vshrl.u32 %v3009, 16
    %v3044 = vrot.slane %v3042, 4
    %v3045 = vshll.u32 %v3009, 16
    %v3047 = vrot.slane %v3045, 5
    %v3048 = vor.u32 %v3044, %v3047
    %v3049 = vrot.slane %v3048, 4
    %v3051 = vshll.u32 %v3010, 16
    %v3053 = vrot.slane %v3051, 5
    %v3054 = vsel %vm215, %v3049, %v3053
    %v3056 = vshrl.u32 %v3011, 16
    %v3058 = vrot.slane %v3056, 4
    %v3059 = vshll.u32 %v3011, 16
    %v3061 = vrot.slane %v3059, 5
    %v3062 = vor.u32 %v3058, %v3061
    %v3063 = vrot.slane %v3062, 4
    %v3065 = vshll.u32 %v3012, 16
    %v3067 = vrot.slane %v3065, 5
    %v3068 = vsel %vm215, %v3063, %v3067
    %v3070 = vshrl.u32 %v3013, 16
    %v3072 = vrot.slane %v3070, 4
    %v3073 = vshll.u32 %v3013, 16
    %v3075 = vrot.slane %v3073, 5
    %v3076 = vor.u32 %v3072, %v3075
    %v3077 = vrot.slane %v3076, 4
    %v3079 = vshll.u32 %v3014, 16
    %v3081 = vrot.slane %v3079, 5
    %v3082 = vsel %vm215, %v3077, %v3081
    %v3084 = vshrl.u32 %v3015, 16
    %v3086 = vrot.slane %v3084, 4
    %v3087 = vshll.u32 %v3015, 16
    %v3089 = vrot.slane %v3087, 5
    %v3090 = vor.u32 %v3086, %v3089
    %v3091 = vrot.slane %v3090, 4
    %v3093 = vshll.u32 %v3016, 16
    %v3095 = vrot.slane %v3093, 5
    %v3096 = vsel %vm215, %v3091, %v3095
    %v3098 = vshrl.u32 %v3017, 16
    %v3100 = vrot.slane %v3098, 4
    %v3101 = vshll.u32 %v3017, 16
    %v3103 = vrot.slane %v3101, 5
    %v3104 = vor.u32 %v3100, %v3103
    %v3105 = vrot.slane %v3104, 4
    %v3107 = vshll.u32 %v3018, 16
    %v3109 = vrot.slane %v3107, 5
    %v3110 = vsel %vm215, %v3105, %v3109
    %v3112 = vshrl.u32 %v3019, 16
    %v3114 = vrot.slane %v3112, 4
    %v3115 = vshll.u32 %v3019, 16
    %v3117 = vrot.slane %v3115, 5
    %v3118 = vor.u32 %v3114, %v3117
    %v3119 = vrot.slane %v3118, 4
    %v3121 = vshll.u32 %v3020, 16
    %v3123 = vrot.slane %v3121, 5
    %v3124 = vsel %vm215, %v3119, %v3123
    %v3126 = vshrl.u32 %v3021, 16
    %v3128 = vrot.slane %v3126, 4
    %v3129 = vshll.u32 %v3021, 16
    %v3131 = vrot.slane %v3129, 5
    %v3132 = vor.u32 %v3128, %v3131
    %v3133 = vrot.slane %v3132, 4
    %v3135 = vshll.u32 %v3022, 16
    %v3137 = vrot.slane %v3135, 5
    %v3138 = vsel %vm215, %v3133, %v3137
    %v3140 = vshrl.u32 %v3023, 16
    %v3142 = vrot.slane %v3140, 4
    %v3143 = vshll.u32 %v3023, 16
    %v3145 = vrot.slane %v3143, 5
    %v3146 = vor.u32 %v3142, %v3145
    %v3147 = vrot.slane %v3146, 4
    %v3149 = vshll.u32 %v3024, 16
    %v3151 = vrot.slane %v3149, 5
    %v3152 = vsel %vm215, %v3147, %v3151
    %v3154 = vshrl.u32 %v3025, 16
    %v3156 = vrot.slane %v3154, 4
    %v3157 = vshll.u32 %v3025, 16
    %v3159 = vrot.slane %v3157, 5
    %v3160 = vor.u32 %v3156, %v3159
    %v3161 = vrot.slane %v3160, 4
    %v3163 = vshll.u32 %v3026, 16
    %v3165 = vrot.slane %v3163, 5
    %v3166 = vsel %vm215, %v3161, %v3165
    %v3168 = vshrl.u32 %v3027, 16
    %v3170 = vrot.slane %v3168, 4
    %v3171 = vshll.u32 %v3027, 16
    %v3173 = vrot.slane %v3171, 5
    %v3174 = vor.u32 %v3170, %v3173
    %v3175 = vrot.slane %v3174, 4
    %v3177 = vshll.u32 %v3028, 16
    %v3179 = vrot.slane %v3177, 5
    %v3180 = vsel %vm215, %v3175, %v3179
    %v3182 = vshrl.u32 %v3029, 16
    %v3184 = vrot.slane %v3182, 4
    %v3185 = vshll.u32 %v3029, 16
    %v3187 = vrot.slane %v3185, 5
    %v3188 = vor.u32 %v3184, %v3187
    %v3189 = vrot.slane %v3188, 4
    %v3191 = vshll.u32 %v3030, 16
    %v3193 = vrot.slane %v3191, 5
    %v3194 = vsel %vm215, %v3189, %v3193
    %v3196 = vshrl.u32 %v3031, 16
    %v3198 = vrot.slane %v3196, 4
    %v3199 = vshll.u32 %v3031, 16
    %v3201 = vrot.slane %v3199, 5
    %v3202 = vor.u32 %v3198, %v3201
    %v3203 = vrot.slane %v3202, 4
    %v3205 = vshll.u32 %v3032, 16
    %v3207 = vrot.slane %v3205, 5
    %v3208 = vsel %vm215, %v3203, %v3207
    %v3210 = vshrl.u32 %v3033, 16
    %v3212 = vrot.slane %v3210, 4
    %v3213 = vshll.u32 %v3033, 16
    %v3215 = vrot.slane %v3213, 5
    %v3216 = vor.u32 %v3212, %v3215
    %v3217 = vrot.slane %v3216, 4
    %v3219 = vshll.u32 %v3034, 16
    %v3221 = vrot.slane %v3219, 5
    %v3222 = vsel %vm215, %v3217, %v3221
    %v3224 = vshrl.u32 %v3035, 16
    %v3226 = vrot.slane %v3224, 4
    %v3227 = vshll.u32 %v3035, 16
    %v3229 = vrot.slane %v3227, 5
    %v3230 = vor.u32 %v3226, %v3229
    %v3231 = vrot.slane %v3230, 4
    %v3233 = vshll.u32 %v3036, 16
    %v3235 = vrot.slane %v3233, 5
    %v3236 = vsel %vm215, %v3231, %v3235
    %v3238 = vshrl.u32 %v3037, 16
    %v3240 = vrot.slane %v3238, 4
    %v3241 = vshll.u32 %v3037, 16
    %v3243 = vrot.slane %v3241, 5
    %v3244 = vor.u32 %v3240, %v3243
    %v3245 = vrot.slane %v3244, 4
    %v3247 = vshll.u32 %v3038, 16
    %v3249 = vrot.slane %v3247, 5
    %v3250 = vsel %vm215, %v3245, %v3249
    %v3252 = vshrl.u32 %v3039, 16
    %v3254 = vrot.slane %v3252, 4
    %v3255 = vshll.u32 %v3039, 16
    %v3257 = vrot.slane %v3255, 5
    %v3258 = vor.u32 %v3254, %v3257
    %v3259 = vrot.slane %v3258, 4
    %v3261 = vshll.u32 %v3040, 16
    %v3263 = vrot.slane %v3261, 5
    %v3264 = vsel %vm215, %v3259, %v3263
    %v3265 = vunpack.c.l.b16 %v3054
    %v3266 = vunpack.c.l.b16 %v3068
    %v3267 = vunpack.c.l.b16 %v3082
    %v3268 = vunpack.c.l.b16 %v3096
    %v3269 = vunpack.c.l.b16 %v3110
    %v3270 = vunpack.c.l.b16 %v3124
    %v3271 = vunpack.c.l.b16 %v3138
    %v3272 = vunpack.c.l.b16 %v3152
    %v3273 = vunpack.c.l.b16 %v3166
    %v3274 = vunpack.c.l.b16 %v3180
    %v3275 = vunpack.c.l.b16 %v3194
    %v3276 = vunpack.c.l.b16 %v3208
    %v3277 = vunpack.c.l.b16 %v3222
    %v3278 = vunpack.c.l.b16 %v3236
    %v3279 = vunpack.c.l.b16 %v3250
    %v3280 = vunpack.c.l.b16 %v3264
    %v3281 = vpack.c.b16 %v3266, %v3265
    %v3282 = vpack.c.b16 %v3268, %v3267
    %v3283 = vpack.c.b16 %v3270, %v3269
    %v3284 = vpack.c.b16 %v3272, %v3271
    %v3285 = vpack.c.b16 %v3274, %v3273
    %v3286 = vpack.c.b16 %v3276, %v3275
    %v3287 = vpack.c.b16 %v3278, %v3277
    %v3288 = vpack.c.b16 %v3280, %v3279
    %3297 = vst [vmem:[#allocation2 + $0x8] sm:$0xff] %v3281
    %3298 = vst [vmem:[#allocation2 + $0x50] sm:$0xff] %v3282
    %3299 = vst [vmem:[#allocation2 + $0x98] sm:$0xff] %v3283
    %3300 = vst [vmem:[#allocation2 + $0xe0] sm:$0xff] %v3284
    %3301 = vst [vmem:[#allocation2 + $0x128] sm:$0xff] %v3285
    %3302 = vst [vmem:[#allocation2 + $0x170] sm:$0xff] %v3286
    %3303 = vst [vmem:[#allocation2 + $0x1b8] sm:$0xff] %v3287
    %3304 = vst [vmem:[#allocation2 + $0x200] sm:$0xff] %v3288
    %v3305 = vld [vmem:[#allocation3] sm:$0xe]
    %v3306 = vld [vmem:[#allocation3 + $0x4] sm:$0x1]
    %v3307 = vld [vmem:[#allocation3 + $0x8] sm:$0xe]
    %v3308 = vld [vmem:[#allocation3 + $0xc] sm:$0x1]
    %v3309 = vld [vmem:[#allocation3 + $0x10] sm:$0xe]
    %v3310 = vld [vmem:[#allocation3 + $0x14] sm:$0x1]
    %v3311 = vld [vmem:[#allocation3 + $0x18] sm:$0xe]
    %v3312 = vld [vmem:[#allocation3 + $0x1c] sm:$0x1]
    %v3313 = vld [vmem:[#allocation3 + $0x20] sm:$0xe]
    %v3314 = vld [vmem:[#allocation3 + $0x24] sm:$0x1]
    %v3315 = vld [vmem:[#allocation3 + $0x28] sm:$0xe]
    %v3316 = vld [vmem:[#allocation3 + $0x2c] sm:$0x1]
    %v3317 = vld [vmem:[#allocation3 + $0x30] sm:$0xe]
    %v3318 = vld [vmem:[#allocation3 + $0x34] sm:$0x1]
    %v3319 = vld [vmem:[#allocation3 + $0x38] sm:$0xe]
    %v3320 = vld [vmem:[#allocation3 + $0x3c] sm:$0x1]
    %v3321 = vld [vmem:[#allocation3 + $0x50] sm:$0xe]
    %v3322 = vld [vmem:[#allocation3 + $0x54] sm:$0x1]
    %v3323 = vld [vmem:[#allocation3 + $0x58] sm:$0xe]
    %v3324 = vld [vmem:[#allocation3 + $0x5c] sm:$0x1]
    %v3325 = vld [vmem:[#allocation3 + $0x60] sm:$0xe]
    %v3326 = vld [vmem:[#allocation3 + $0x64] sm:$0x1]
    %v3327 = vld [vmem:[#allocation3 + $0x68] sm:$0xe]
    %v3328 = vld [vmem:[#allocation3 + $0x6c] sm:$0x1]
    %v3329 = vld [vmem:[#allocation3 + $0x70] sm:$0xe]
    %v3330 = vld [vmem:[#allocation3 + $0x74] sm:$0x1]
    %v3331 = vld [vmem:[#allocation3 + $0x78] sm:$0xe]
    %v3332 = vld [vmem:[#allocation3 + $0x7c] sm:$0x1]
    %v3333 = vld [vmem:[#allocation3 + $0x80] sm:$0xe]
    %v3334 = vld [vmem:[#allocation3 + $0x84] sm:$0x1]
    %v3335 = vld [vmem:[#allocation3 + $0x88] sm:$0xe]
    %v3336 = vld [vmem:[#allocation3 + $0x8c] sm:$0x1]
    %vm3369 = vcmask 1042432
    %vm3370 = vcmask 1046532
    %vm3371 = vmor %vm3369, %vm3370
    %v3372 = vrot.slane %v3305, 5
    %v3373 = vrot.slane %v3372, 4
    %v3374 = vrot.slane %v3306, 5
    %v3375 = vsel %vm3371, %v3373, %v3374
    %v3376 = vrot.slane %v3307, 5
    %v3377 = vrot.slane %v3376, 4
    %v3378 = vrot.slane %v3308, 5
    %v3379 = vsel %vm3371, %v3377, %v3378
    %v3380 = vrot.slane %v3309, 5
    %v3381 = vrot.slane %v3380, 4
    %v3382 = vrot.slane %v3310, 5
    %v3383 = vsel %vm3371, %v3381, %v3382
    %v3384 = vrot.slane %v3311, 5
    %v3385 = vrot.slane %v3384, 4
    %v3386 = vrot.slane %v3312, 5
    %v3387 = vsel %vm3371, %v3385, %v3386
    %v3388 = vrot.slane %v3313, 5
    %v3389 = vrot.slane %v3388, 4
    %v3390 = vrot.slane %v3314, 5
    %v3391 = vsel %vm3371, %v3389, %v3390
    %v3392 = vrot.slane %v3315, 5
    %v3393 = vrot.slane %v3392, 4
    %v3394 = vrot.slane %v3316, 5
    %v3395 = vsel %vm3371, %v3393, %v3394
    %v3396 = vrot.slane %v3317, 5
    %v3397 = vrot.slane %v3396, 4
    %v3398 = vrot.slane %v3318, 5
    %v3399 = vsel %vm3371, %v3397, %v3398
    %v3400 = vrot.slane %v3319, 5
    %v3401 = vrot.slane %v3400, 4
    %v3402 = vrot.slane %v3320, 5
    %v3403 = vsel %vm3371, %v3401, %v3402
    %v3404 = vrot.slane %v3321, 5
    %v3405 = vrot.slane %v3404, 4
    %v3406 = vrot.slane %v3322, 5
    %v3407 = vsel %vm3371, %v3405, %v3406
    %v3408 = vrot.slane %v3323, 5
    %v3409 = vrot.slane %v3408, 4
    %v3410 = vrot.slane %v3324, 5
    %v3411 = vsel %vm3371, %v3409, %v3410
    %v3412 = vrot.slane %v3325, 5
    %v3413 = vrot.slane %v3412, 4
    %v3414 = vrot.slane %v3326, 5
    %v3415 = vsel %vm3371, %v3413, %v3414
    %v3416 = vrot.slane %v3327, 5
    %v3417 = vrot.slane %v3416, 4
    %v3418 = vrot.slane %v3328, 5
    %v3419 = vsel %vm3371, %v3417, %v3418
    %v3420 = vrot.slane %v3329, 5
    %v3421 = vrot.slane %v3420, 4
    %v3422 = vrot.slane %v3330, 5
    %v3423 = vsel %vm3371, %v3421, %v3422
    %v3424 = vrot.slane %v3331, 5
    %v3425 = vrot.slane %v3424, 4
    %v3426 = vrot.slane %v3332, 5
    %v3427 = vsel %vm3371, %v3425, %v3426
    %v3428 = vrot.slane %v3333, 5
    %v3429 = vrot.slane %v3428, 4
    %v3430 = vrot.slane %v3334, 5
    %v3431 = vsel %vm3371, %v3429, %v3430
    %v3432 = vrot.slane %v3335, 5
    %v3433 = vrot.slane %v3432, 4
    %v3434 = vrot.slane %v3336, 5
    %v3435 = vsel %vm3371, %v3433, %v3434
    %v3436 = vunpack.c.l.b16 %v3375
    %v3437 = vunpack.c.l.b16 %v3379
    %v3438 = vunpack.c.l.b16 %v3383
    %v3439 = vunpack.c.l.b16 %v3387
    %v3440 = vunpack.c.l.b16 %v3391
    %v3441 = vunpack.c.l.b16 %v3395
    %v3442 = vunpack.c.l.b16 %v3399
    %v3443 = vunpack.c.l.b16 %v3403
    %v3444 = vunpack.c.l.b16 %v3407
    %v3445 = vunpack.c.l.b16 %v3411
    %v3446 = vunpack.c.l.b16 %v3415
    %v3447 = vunpack.c.l.b16 %v3419
    %v3448 = vunpack.c.l.b16 %v3423
    %v3449 = vunpack.c.l.b16 %v3427
    %v3450 = vunpack.c.l.b16 %v3431
    %v3451 = vunpack.c.l.b16 %v3435
    %v3452 = vpack.c.b16 %v3437, %v3436
    %v3453 = vpack.c.b16 %v3439, %v3438
    %v3454 = vpack.c.b16 %v3441, %v3440
    %v3455 = vpack.c.b16 %v3443, %v3442
    %v3456 = vpack.c.b16 %v3445, %v3444
    %v3457 = vpack.c.b16 %v3447, %v3446
    %v3458 = vpack.c.b16 %v3449, %v3448
    %v3459 = vpack.c.b16 %v3451, %v3450
    %3468 = vst [vmem:[#allocation2 + $0x10] sm:$0xff] %v3452
    %3469 = vst [vmem:[#allocation2 + $0x58] sm:$0xff] %v3453
    %3470 = vst [vmem:[#allocation2 + $0xa0] sm:$0xff] %v3454
    %3471 = vst [vmem:[#allocation2 + $0xe8] sm:$0xff] %v3455
    %3472 = vst [vmem:[#allocation2 + $0x130] sm:$0xff] %v3456
    %3473 = vst [vmem:[#allocation2 + $0x178] sm:$0xff] %v3457
    %3474 = vst [vmem:[#allocation2 + $0x1c0] sm:$0xff] %v3458
    %3475 = vst [vmem:[#allocation2 + $0x208] sm:$0xff] %v3459
    %v3476 = vld [vmem:[%s2537] sm:$0xf]
    %v3477 = vld [vmem:[%s2537 + $0x8] sm:$0xf]
    %v3478 = vld [vmem:[%s2537 + $0x10] sm:$0xf]
    %v3479 = vld [vmem:[%s2537 + $0x18] sm:$0xf]
    %v3480 = vld [vmem:[%s2537 + $0x20] sm:$0xf]
    %v3481 = vld [vmem:[%s2537 + $0x28] sm:$0xf]
    %v3482 = vld [vmem:[%s2537 + $0x30] sm:$0xf]
    %v3483 = vld [vmem:[%s2537 + $0x38] sm:$0xf]
    %v3484 = vld [vmem:[%s2537 + $0x50] sm:$0xf]
    %v3485 = vld [vmem:[%s2537 + $0x58] sm:$0xf]
    %v3486 = vld [vmem:[%s2537 + $0x60] sm:$0xf]
    %v3487 = vld [vmem:[%s2537 + $0x68] sm:$0xf]
    %v3488 = vld [vmem:[%s2537 + $0x70] sm:$0xf]
    %v3489 = vld [vmem:[%s2537 + $0x78] sm:$0xf]
    %v3490 = vld [vmem:[%s2537 + $0x80] sm:$0xf]
    %v3491 = vld [vmem:[%s2537 + $0x88] sm:$0xf]
    %v3508 = vunpack.c.l.b16 %v3476
    %v3509 = vunpack.c.l.b16 %v3477
    %v3510 = vunpack.c.l.b16 %v3478
    %v3511 = vunpack.c.l.b16 %v3479
    %v3512 = vunpack.c.l.b16 %v3480
    %v3513 = vunpack.c.l.b16 %v3481
    %v3514 = vunpack.c.l.b16 %v3482
    %v3515 = vunpack.c.l.b16 %v3483
    %v3516 = vunpack.c.l.b16 %v3484
    %v3517 = vunpack.c.l.b16 %v3485
    %v3518 = vunpack.c.l.b16 %v3486
    %v3519 = vunpack.c.l.b16 %v3487
    %v3520 = vunpack.c.l.b16 %v3488
    %v3521 = vunpack.c.l.b16 %v3489
    %v3522 = vunpack.c.l.b16 %v3490
    %v3523 = vunpack.c.l.b16 %v3491
    %v3524 = vpack.c.b16 %v3509, %v3508
    %v3525 = vpack.c.b16 %v3511, %v3510
    %v3526 = vpack.c.b16 %v3513, %v3512
    %v3527 = vpack.c.b16 %v3515, %v3514
    %v3528 = vpack.c.b16 %v3517, %v3516
    %v3529 = vpack.c.b16 %v3519, %v3518
    %v3530 = vpack.c.b16 %v3521, %v3520
    %v3531 = vpack.c.b16 %v3523, %v3522
    %3540 = vst [vmem:[#allocation2 + $0x18] sm:$0xff] %v3524
    %3541 = vst [vmem:[#allocation2 + $0x60] sm:$0xff] %v3525
    %3542 = vst [vmem:[#allocation2 + $0xa8] sm:$0xff] %v3526
    %3543 = vst [vmem:[#allocation2 + $0xf0] sm:$0xff] %v3527
    %3544 = vst [vmem:[#allocation2 + $0x138] sm:$0xff] %v3528
    %3545 = vst [vmem:[#allocation2 + $0x180] sm:$0xff] %v3529
    %3546 = vst [vmem:[#allocation2 + $0x1c8] sm:$0xff] %v3530
    %3547 = vst [vmem:[#allocation2 + $0x210] sm:$0xff] %v3531
    %v3548 = vld [vmem:[%s2537] sm:$0xf]
    %v3549 = vld [vmem:[%s2537 + $0x4] sm:$0x1]
    %v3550 = vld [vmem:[%s2537 + $0x8] sm:$0xf]
    %v3551 = vld [vmem:[%s2537 + $0xc] sm:$0x1]
    %v3552 = vld [vmem:[%s2537 + $0x10] sm:$0xf]
    %v3553 = vld [vmem:[%s2537 + $0x14] sm:$0x1]
    %v3554 = vld [vmem:[%s2537 + $0x18] sm:$0xf]
    %v3555 = vld [vmem:[%s2537 + $0x1c] sm:$0x1]
    %v3556 = vld [vmem:[%s2537 + $0x20] sm:$0xf]
    %v3557 = vld [vmem:[%s2537 + $0x24] sm:$0x1]
    %v3558 = vld [vmem:[%s2537 + $0x28] sm:$0xf]
    %v3559 = vld [vmem:[%s2537 + $0x2c] sm:$0x1]
    %v3560 = vld [vmem:[%s2537 + $0x30] sm:$0xf]
    %v3561 = vld [vmem:[%s2537 + $0x34] sm:$0x1]
    %v3562 = vld [vmem:[%s2537 + $0x38] sm:$0xf]
    %v3563 = vld [vmem:[%s2537 + $0x3c] sm:$0x1]
    %v3564 = vld [vmem:[%s2537 + $0x50] sm:$0xf]
    %v3565 = vld [vmem:[%s2537 + $0x54] sm:$0x1]
    %v3566 = vld [vmem:[%s2537 + $0x58] sm:$0xf]
    %v3567 = vld [vmem:[%s2537 + $0x5c] sm:$0x1]
    %v3568 = vld [vmem:[%s2537 + $0x60] sm:$0xf]
    %v3569 = vld [vmem:[%s2537 + $0x64] sm:$0x1]
    %v3570 = vld [vmem:[%s2537 + $0x68] sm:$0xf]
    %v3571 = vld [vmem:[%s2537 + $0x6c] sm:$0x1]
    %v3572 = vld [vmem:[%s2537 + $0x70] sm:$0xf]
    %v3573 = vld [vmem:[%s2537 + $0x74] sm:$0x1]
    %v3574 = vld [vmem:[%s2537 + $0x78] sm:$0xf]
    %v3575 = vld [vmem:[%s2537 + $0x7c] sm:$0x1]
    %v3576 = vld [vmem:[%s2537 + $0x80] sm:$0xf]
    %v3577 = vld [vmem:[%s2537 + $0x84] sm:$0x1]
    %v3578 = vld [vmem:[%s2537 + $0x88] sm:$0xf]
    %v3579 = vld [vmem:[%s2537 + $0x8c] sm:$0x1]
    %v3581 = vshrl.u32 %v3548, 16
    %v3583 = vrot.slane %v3581, 4
    %v3584 = vshll.u32 %v3548, 16
    %v3586 = vrot.slane %v3584, 5
    %v3587 = vor.u32 %v3583, %v3586
    %v3588 = vrot.slane %v3587, 4
    %v3590 = vshll.u32 %v3549, 16
    %v3592 = vrot.slane %v3590, 5
    %v3593 = vsel %vm215, %v3588, %v3592
    %v3595 = vshrl.u32 %v3550, 16
    %v3597 = vrot.slane %v3595, 4
    %v3598 = vshll.u32 %v3550, 16
    %v3600 = vrot.slane %v3598, 5
    %v3601 = vor.u32 %v3597, %v3600
    %v3602 = vrot.slane %v3601, 4
    %v3604 = vshll.u32 %v3551, 16
    %v3606 = vrot.slane %v3604, 5
    %v3607 = vsel %vm215, %v3602, %v3606
    %v3609 = vshrl.u32 %v3552, 16
    %v3611 = vrot.slane %v3609, 4
    %v3612 = vshll.u32 %v3552, 16
    %v3614 = vrot.slane %v3612, 5
    %v3615 = vor.u32 %v3611, %v3614
    %v3616 = vrot.slane %v3615, 4
    %v3618 = vshll.u32 %v3553, 16
    %v3620 = vrot.slane %v3618, 5
    %v3621 = vsel %vm215, %v3616, %v3620
    %v3623 = vshrl.u32 %v3554, 16
    %v3625 = vrot.slane %v3623, 4
    %v3626 = vshll.u32 %v3554, 16
    %v3628 = vrot.slane %v3626, 5
    %v3629 = vor.u32 %v3625, %v3628
    %v3630 = vrot.slane %v3629, 4
    %v3632 = vshll.u32 %v3555, 16
    %v3634 = vrot.slane %v3632, 5
    %v3635 = vsel %vm215, %v3630, %v3634
    %v3637 = vshrl.u32 %v3556, 16
    %v3639 = vrot.slane %v3637, 4
    %v3640 = vshll.u32 %v3556, 16
    %v3642 = vrot.slane %v3640, 5
    %v3643 = vor.u32 %v3639, %v3642
    %v3644 = vrot.slane %v3643, 4
    %v3646 = vshll.u32 %v3557, 16
    %v3648 = vrot.slane %v3646, 5
    %v3649 = vsel %vm215, %v3644, %v3648
    %v3651 = vshrl.u32 %v3558, 16
    %v3653 = vrot.slane %v3651, 4
    %v3654 = vshll.u32 %v3558, 16
    %v3656 = vrot.slane %v3654, 5
    %v3657 = vor.u32 %v3653, %v3656
    %v3658 = vrot.slane %v3657, 4
    %v3660 = vshll.u32 %v3559, 16
    %v3662 = vrot.slane %v3660, 5
    %v3663 = vsel %vm215, %v3658, %v3662
    %v3665 = vshrl.u32 %v3560, 16
    %v3667 = vrot.slane %v3665, 4
    %v3668 = vshll.u32 %v3560, 16
    %v3670 = vrot.slane %v3668, 5
    %v3671 = vor.u32 %v3667, %v3670
    %v3672 = vrot.slane %v3671, 4
    %v3674 = vshll.u32 %v3561, 16
    %v3676 = vrot.slane %v3674, 5
    %v3677 = vsel %vm215, %v3672, %v3676
    %v3679 = vshrl.u32 %v3562, 16
    %v3681 = vrot.slane %v3679, 4
    %v3682 = vshll.u32 %v3562, 16
    %v3684 = vrot.slane %v3682, 5
    %v3685 = vor.u32 %v3681, %v3684
    %v3686 = vrot.slane %v3685, 4
    %v3688 = vshll.u32 %v3563, 16
    %v3690 = vrot.slane %v3688, 5
    %v3691 = vsel %vm215, %v3686, %v3690
    %v3693 = vshrl.u32 %v3564, 16
    %v3695 = vrot.slane %v3693, 4
    %v3696 = vshll.u32 %v3564, 16
    %v3698 = vrot.slane %v3696, 5
    %v3699 = vor.u32 %v3695, %v3698
    %v3700 = vrot.slane %v3699, 4
    %v3702 = vshll.u32 %v3565, 16
    %v3704 = vrot.slane %v3702, 5
    %v3705 = vsel %vm215, %v3700, %v3704
    %v3707 = vshrl.u32 %v3566, 16
    %v3709 = vrot.slane %v3707, 4
    %v3710 = vshll.u32 %v3566, 16
    %v3712 = vrot.slane %v3710, 5
    %v3713 = vor.u32 %v3709, %v3712
    %v3714 = vrot.slane %v3713, 4
    %v3716 = vshll.u32 %v3567, 16
    %v3718 = vrot.slane %v3716, 5
    %v3719 = vsel %vm215, %v3714, %v3718
    %v3721 = vshrl.u32 %v3568, 16
    %v3723 = vrot.slane %v3721, 4
    %v3724 = vshll.u32 %v3568, 16
    %v3726 = vrot.slane %v3724, 5
    %v3727 = vor.u32 %v3723, %v3726
    %v3728 = vrot.slane %v3727, 4
    %v3730 = vshll.u32 %v3569, 16
    %v3732 = vrot.slane %v3730, 5
    %v3733 = vsel %vm215, %v3728, %v3732
    %v3735 = vshrl.u32 %v3570, 16
    %v3737 = vrot.slane %v3735, 4
    %v3738 = vshll.u32 %v3570, 16
    %v3740 = vrot.slane %v3738, 5
    %v3741 = vor.u32 %v3737, %v3740
    %v3742 = vrot.slane %v3741, 4
    %v3744 = vshll.u32 %v3571, 16
    %v3746 = vrot.slane %v3744, 5
    %v3747 = vsel %vm215, %v3742, %v3746
    %v3749 = vshrl.u32 %v3572, 16
    %v3751 = vrot.slane %v3749, 4
    %v3752 = vshll.u32 %v3572, 16
    %v3754 = vrot.slane %v3752, 5
    %v3755 = vor.u32 %v3751, %v3754
    %v3756 = vrot.slane %v3755, 4
    %v3758 = vshll.u32 %v3573, 16
    %v3760 = vrot.slane %v3758, 5
    %v3761 = vsel %vm215, %v3756, %v3760
    %v3763 = vshrl.u32 %v3574, 16
    %v3765 = vrot.slane %v3763, 4
    %v3766 = vshll.u32 %v3574, 16
    %v3768 = vrot.slane %v3766, 5
    %v3769 = vor.u32 %v3765, %v3768
    %v3770 = vrot.slane %v3769, 4
    %v3772 = vshll.u32 %v3575, 16
    %v3774 = vrot.slane %v3772, 5
    %v3775 = vsel %vm215, %v3770, %v3774
    %v3777 = vshrl.u32 %v3576, 16
    %v3779 = vrot.slane %v3777, 4
    %v3780 = vshll.u32 %v3576, 16
    %v3782 = vrot.slane %v3780, 5
    %v3783 = vor.u32 %v3779, %v3782
    %v3784 = vrot.slane %v3783, 4
    %v3786 = vshll.u32 %v3577, 16
    %v3788 = vrot.slane %v3786, 5
    %v3789 = vsel %vm215, %v3784, %v3788
    %v3791 = vshrl.u32 %v3578, 16
    %v3793 = vrot.slane %v3791, 4
    %v3794 = vshll.u32 %v3578, 16
    %v3796 = vrot.slane %v3794, 5
    %v3797 = vor.u32 %v3793, %v3796
    %v3798 = vrot.slane %v3797, 4
    %v3800 = vshll.u32 %v3579, 16
    %v3802 = vrot.slane %v3800, 5
    %v3803 = vsel %vm215, %v3798, %v3802
    %v3804 = vunpack.c.l.b16 %v3593
    %v3805 = vunpack.c.l.b16 %v3607
    %v3806 = vunpack.c.l.b16 %v3621
    %v3807 = vunpack.c.l.b16 %v3635
    %v3808 = vunpack.c.l.b16 %v3649
    %v3809 = vunpack.c.l.b16 %v3663
    %v3810 = vunpack.c.l.b16 %v3677
    %v3811 = vunpack.c.l.b16 %v3691
    %v3812 = vunpack.c.l.b16 %v3705
    %v3813 = vunpack.c.l.b16 %v3719
    %v3814 = vunpack.c.l.b16 %v3733
    %v3815 = vunpack.c.l.b16 %v3747
    %v3816 = vunpack.c.l.b16 %v3761
    %v3817 = vunpack.c.l.b16 %v3775
    %v3818 = vunpack.c.l.b16 %v3789
    %v3819 = vunpack.c.l.b16 %v3803
    %v3820 = vpack.c.b16 %v3805, %v3804
    %v3821 = vpack.c.b16 %v3807, %v3806
    %v3822 = vpack.c.b16 %v3809, %v3808
    %v3823 = vpack.c.b16 %v3811, %v3810
    %v3824 = vpack.c.b16 %v3813, %v3812
    %v3825 = vpack.c.b16 %v3815, %v3814
    %v3826 = vpack.c.b16 %v3817, %v3816
    %v3827 = vpack.c.b16 %v3819, %v3818
    %3836 = vst [vmem:[#allocation2 + $0x20] sm:$0xff] %v3820
    %3837 = vst [vmem:[#allocation2 + $0x68] sm:$0xff] %v3821
    %3838 = vst [vmem:[#allocation2 + $0xb0] sm:$0xff] %v3822
    %3839 = vst [vmem:[#allocation2 + $0xf8] sm:$0xff] %v3823
    %3840 = vst [vmem:[#allocation2 + $0x140] sm:$0xff] %v3824
    %3841 = vst [vmem:[#allocation2 + $0x188] sm:$0xff] %v3825
    %3842 = vst [vmem:[#allocation2 + $0x1d0] sm:$0xff] %v3826
    %3843 = vst [vmem:[#allocation2 + $0x218] sm:$0xff] %v3827
    %v3844 = vld [vmem:[%s2537] sm:$0xe]
    %v3845 = vld [vmem:[%s2537 + $0x4] sm:$0x1]
    %v3846 = vld [vmem:[%s2537 + $0x8] sm:$0xe]
    %v3847 = vld [vmem:[%s2537 + $0xc] sm:$0x1]
    %v3848 = vld [vmem:[%s2537 + $0x10] sm:$0xe]
    %v3849 = vld [vmem:[%s2537 + $0x14] sm:$0x1]
    %v3850 = vld [vmem:[%s2537 + $0x18] sm:$0xe]
    %v3851 = vld [vmem:[%s2537 + $0x1c] sm:$0x1]
    %v3852 = vld [vmem:[%s2537 + $0x20] sm:$0xe]
    %v3853 = vld [vmem:[%s2537 + $0x24] sm:$0x1]
    %v3854 = vld [vmem:[%s2537 + $0x28] sm:$0xe]
    %v3855 = vld [vmem:[%s2537 + $0x2c] sm:$0x1]
    %v3856 = vld [vmem:[%s2537 + $0x30] sm:$0xe]
    %v3857 = vld [vmem:[%s2537 + $0x34] sm:$0x1]
    %v3858 = vld [vmem:[%s2537 + $0x38] sm:$0xe]
    %v3859 = vld [vmem:[%s2537 + $0x3c] sm:$0x1]
    %v3860 = vld [vmem:[%s2537 + $0x50] sm:$0xe]
    %v3861 = vld [vmem:[%s2537 + $0x54] sm:$0x1]
    %v3862 = vld [vmem:[%s2537 + $0x58] sm:$0xe]
    %v3863 = vld [vmem:[%s2537 + $0x5c] sm:$0x1]
    %v3864 = vld [vmem:[%s2537 + $0x60] sm:$0xe]
    %v3865 = vld [vmem:[%s2537 + $0x64] sm:$0x1]
    %v3866 = vld [vmem:[%s2537 + $0x68] sm:$0xe]
    %v3867 = vld [vmem:[%s2537 + $0x6c] sm:$0x1]
    %v3868 = vld [vmem:[%s2537 + $0x70] sm:$0xe]
    %v3869 = vld [vmem:[%s2537 + $0x74] sm:$0x1]
    %v3870 = vld [vmem:[%s2537 + $0x78] sm:$0xe]
    %v3871 = vld [vmem:[%s2537 + $0x7c] sm:$0x1]
    %v3872 = vld [vmem:[%s2537 + $0x80] sm:$0xe]
    %v3873 = vld [vmem:[%s2537 + $0x84] sm:$0x1]
    %v3874 = vld [vmem:[%s2537 + $0x88] sm:$0xe]
    %v3875 = vld [vmem:[%s2537 + $0x8c] sm:$0x1]
    %v3908 = vrot.slane %v3844, 5
    %v3909 = vrot.slane %v3908, 4
    %v3910 = vrot.slane %v3845, 5
    %v3911 = vsel %vm3371, %v3909, %v3910
    %v3912 = vrot.slane %v3846, 5
    %v3913 = vrot.slane %v3912, 4
    %v3914 = vrot.slane %v3847, 5
    %v3915 = vsel %vm3371, %v3913, %v3914
    %v3916 = vrot.slane %v3848, 5
    %v3917 = vrot.slane %v3916, 4
    %v3918 = vrot.slane %v3849, 5
    %v3919 = vsel %vm3371, %v3917, %v3918
    %v3920 = vrot.slane %v3850, 5
    %v3921 = vrot.slane %v3920, 4
    %v3922 = vrot.slane %v3851, 5
    %v3923 = vsel %vm3371, %v3921, %v3922
    %v3924 = vrot.slane %v3852, 5
    %v3925 = vrot.slane %v3924, 4
    %v3926 = vrot.slane %v3853, 5
    %v3927 = vsel %vm3371, %v3925, %v3926
    %v3928 = vrot.slane %v3854, 5
    %v3929 = vrot.slane %v3928, 4
    %v3930 = vrot.slane %v3855, 5
    %v3931 = vsel %vm3371, %v3929, %v3930
    %v3932 = vrot.slane %v3856, 5
    %v3933 = vrot.slane %v3932, 4
    %v3934 = vrot.slane %v3857, 5
    %v3935 = vsel %vm3371, %v3933, %v3934
    %v3936 = vrot.slane %v3858, 5
    %v3937 = vrot.slane %v3936, 4
    %v3938 = vrot.slane %v3859, 5
    %v3939 = vsel %vm3371, %v3937, %v3938
    %v3940 = vrot.slane %v3860, 5
    %v3941 = vrot.slane %v3940, 4
    %v3942 = vrot.slane %v3861, 5
    %v3943 = vsel %vm3371, %v3941, %v3942
    %v3944 = vrot.slane %v3862, 5
    %v3945 = vrot.slane %v3944, 4
    %v3946 = vrot.slane %v3863, 5
    %v3947 = vsel %vm3371, %v3945, %v3946
    %v3948 = vrot.slane %v3864, 5
    %v3949 = vrot.slane %v3948, 4
    %v3950 = vrot.slane %v3865, 5
    %v3951 = vsel %vm3371, %v3949, %v3950
    %v3952 = vrot.slane %v3866, 5
    %v3953 = vrot.slane %v3952, 4
    %v3954 = vrot.slane %v3867, 5
    %v3955 = vsel %vm3371, %v3953, %v3954
    %v3956 = vrot.slane %v3868, 5
    %v3957 = vrot.slane %v3956, 4
    %v3958 = vrot.slane %v3869, 5
    %v3959 = vsel %vm3371, %v3957, %v3958
    %v3960 = vrot.slane %v3870, 5
    %v3961 = vrot.slane %v3960, 4
    %v3962 = vrot.slane %v3871, 5
    %v3963 = vsel %vm3371, %v3961, %v3962
    %v3964 = vrot.slane %v3872, 5
    %v3965 = vrot.slane %v3964, 4
    %v3966 = vrot.slane %v3873, 5
    %v3967 = vsel %vm3371, %v3965, %v3966
    %v3968 = vrot.slane %v3874, 5
    %v3969 = vrot.slane %v3968, 4
    %v3970 = vrot.slane %v3875, 5
    %v3971 = vsel %vm3371, %v3969, %v3970
    %v3972 = vunpack.c.l.b16 %v3911
    %v3973 = vunpack.c.l.b16 %v3915
    %v3974 = vunpack.c.l.b16 %v3919
    %v3975 = vunpack.c.l.b16 %v3923
    %v3976 = vunpack.c.l.b16 %v3927
    %v3977 = vunpack.c.l.b16 %v3931
    %v3978 = vunpack.c.l.b16 %v3935
    %v3979 = vunpack.c.l.b16 %v3939
    %v3980 = vunpack.c.l.b16 %v3943
    %v3981 = vunpack.c.l.b16 %v3947
    %v3982 = vunpack.c.l.b16 %v3951
    %v3983 = vunpack.c.l.b16 %v3955
    %v3984 = vunpack.c.l.b16 %v3959
    %v3985 = vunpack.c.l.b16 %v3963
    %v3986 = vunpack.c.l.b16 %v3967
    %v3987 = vunpack.c.l.b16 %v3971
    %v3988 = vpack.c.b16 %v3973, %v3972
    %v3989 = vpack.c.b16 %v3975, %v3974
    %v3990 = vpack.c.b16 %v3977, %v3976
    %v3991 = vpack.c.b16 %v3979, %v3978
    %v3992 = vpack.c.b16 %v3981, %v3980
    %v3993 = vpack.c.b16 %v3983, %v3982
    %v3994 = vpack.c.b16 %v3985, %v3984
    %v3995 = vpack.c.b16 %v3987, %v3986
    %4004 = vst [vmem:[#allocation2 + $0x28] sm:$0xff] %v3988
    %4005 = vst [vmem:[#allocation2 + $0x70] sm:$0xff] %v3989
    %4006 = vst [vmem:[#allocation2 + $0xb8] sm:$0xff] %v3990
    %4007 = vst [vmem:[#allocation2 + $0x100] sm:$0xff] %v3991
    %4008 = vst [vmem:[#allocation2 + $0x148] sm:$0xff] %v3992
    %4009 = vst [vmem:[#allocation2 + $0x190] sm:$0xff] %v3993
    %4010 = vst [vmem:[#allocation2 + $0x1d8] sm:$0xff] %v3994
    %4011 = vst [vmem:[#allocation2 + $0x220] sm:$0xff] %v3995
    %s4012 = scalar_lea.vmem [#allocation3], 16
    %v4013 = vld [vmem:[%s4012] sm:$0xf]
    %v4014 = vld [vmem:[%s4012 + $0x8] sm:$0xf]
    %v4015 = vld [vmem:[%s4012 + $0x10] sm:$0xf]
    %v4016 = vld [vmem:[%s4012 + $0x18] sm:$0xf]
    %v4017 = vld [vmem:[%s4012 + $0x20] sm:$0xf]
    %v4018 = vld [vmem:[%s4012 + $0x28] sm:$0xf]
    %v4019 = vld [vmem:[%s4012 + $0x30] sm:$0xf]
    %v4020 = vld [vmem:[%s4012 + $0x38] sm:$0xf]
    %v4021 = vld [vmem:[%s4012 + $0x50] sm:$0xf]
    %v4022 = vld [vmem:[%s4012 + $0x58] sm:$0xf]
    %v4023 = vld [vmem:[%s4012 + $0x60] sm:$0xf]
    %v4024 = vld [vmem:[%s4012 + $0x68] sm:$0xf]
    %v4025 = vld [vmem:[%s4012 + $0x70] sm:$0xf]
    %v4026 = vld [vmem:[%s4012 + $0x78] sm:$0xf]
    %v4027 = vld [vmem:[%s4012 + $0x80] sm:$0xf]
    %v4028 = vld [vmem:[%s4012 + $0x88] sm:$0xf]
    %v4045 = vunpack.c.l.b16 %v4013
    %v4046 = vunpack.c.l.b16 %v4014
    %v4047 = vunpack.c.l.b16 %v4015
    %v4048 = vunpack.c.l.b16 %v4016
    %v4049 = vunpack.c.l.b16 %v4017
    %v4050 = vunpack.c.l.b16 %v4018
    %v4051 = vunpack.c.l.b16 %v4019
    %v4052 = vunpack.c.l.b16 %v4020
    %v4053 = vunpack.c.l.b16 %v4021
    %v4054 = vunpack.c.l.b16 %v4022
    %v4055 = vunpack.c.l.b16 %v4023
    %v4056 = vunpack.c.l.b16 %v4024
    %v4057 = vunpack.c.l.b16 %v4025
    %v4058 = vunpack.c.l.b16 %v4026
    %v4059 = vunpack.c.l.b16 %v4027
    %v4060 = vunpack.c.l.b16 %v4028
    %v4061 = vpack.c.b16 %v4046, %v4045
    %v4062 = vpack.c.b16 %v4048, %v4047
    %v4063 = vpack.c.b16 %v4050, %v4049
    %v4064 = vpack.c.b16 %v4052, %v4051
    %v4065 = vpack.c.b16 %v4054, %v4053
    %v4066 = vpack.c.b16 %v4056, %v4055
    %v4067 = vpack.c.b16 %v4058, %v4057
    %v4068 = vpack.c.b16 %v4060, %v4059
    %4077 = vst [vmem:[#allocation2 + $0x30] sm:$0xff] %v4061
    %4078 = vst [vmem:[#allocation2 + $0x78] sm:$0xff] %v4062
    %4079 = vst [vmem:[#allocation2 + $0xc0] sm:$0xff] %v4063
    %4080 = vst [vmem:[#allocation2 + $0x108] sm:$0xff] %v4064
    %4081 = vst [vmem:[#allocation2 + $0x150] sm:$0xff] %v4065
    %4082 = vst [vmem:[#allocation2 + $0x198] sm:$0xff] %v4066
    %4083 = vst [vmem:[#allocation2 + $0x1e0] sm:$0xff] %v4067
    %4084 = vst [vmem:[#allocation2 + $0x228] sm:$0xff] %v4068
    %v4085 = vld [vmem:[%s4012] sm:$0xf]
    %v4086 = vld [vmem:[%s4012 + $0x4] sm:$0x1]
    %v4087 = vld [vmem:[%s4012 + $0x8] sm:$0xf]
    %v4088 = vld [vmem:[%s4012 + $0xc] sm:$0x1]
    %v4089 = vld [vmem:[%s4012 + $0x10] sm:$0xf]
    %v4090 = vld [vmem:[%s4012 + $0x14] sm:$0x1]
    %v4091 = vld [vmem:[%s4012 + $0x18] sm:$0xf]
    %v4092 = vld [vmem:[%s4012 + $0x1c] sm:$0x1]
    %v4093 = vld [vmem:[%s4012 + $0x20] sm:$0xf]
    %v4094 = vld [vmem:[%s4012 + $0x24] sm:$0x1]
    %v4095 = vld [vmem:[%s4012 + $0x28] sm:$0xf]
    %v4096 = vld [vmem:[%s4012 + $0x2c] sm:$0x1]
    %v4097 = vld [vmem:[%s4012 + $0x30] sm:$0xf]
    %v4098 = vld [vmem:[%s4012 + $0x34] sm:$0x1]
    %v4099 = vld [vmem:[%s4012 + $0x38] sm:$0xf]
    %v4100 = vld [vmem:[%s4012 + $0x3c] sm:$0x1]
    %v4101 = vld [vmem:[%s4012 + $0x50] sm:$0xf]
    %v4102 = vld [vmem:[%s4012 + $0x54] sm:$0x1]
    %v4103 = vld [vmem:[%s4012 + $0x58] sm:$0xf]
    %v4104 = vld [vmem:[%s4012 + $0x5c] sm:$0x1]
    %v4105 = vld [vmem:[%s4012 + $0x60] sm:$0xf]
    %v4106 = vld [vmem:[%s4012 + $0x64] sm:$0x1]
    %v4107 = vld [vmem:[%s4012 + $0x68] sm:$0xf]
    %v4108 = vld [vmem:[%s4012 + $0x6c] sm:$0x1]
    %v4109 = vld [vmem:[%s4012 + $0x70] sm:$0xf]
    %v4110 = vld [vmem:[%s4012 + $0x74] sm:$0x1]
    %v4111 = vld [vmem:[%s4012 + $0x78] sm:$0xf]
    %v4112 = vld [vmem:[%s4012 + $0x7c] sm:$0x1]
    %v4113 = vld [vmem:[%s4012 + $0x80] sm:$0xf]
    %v4114 = vld [vmem:[%s4012 + $0x84] sm:$0x1]
    %v4115 = vld [vmem:[%s4012 + $0x88] sm:$0xf]
    %v4116 = vld [vmem:[%s4012 + $0x8c] sm:$0x1]
    %v4118 = vshrl.u32 %v4085, 16
    %v4120 = vrot.slane %v4118, 4
    %v4121 = vshll.u32 %v4085, 16
    %v4123 = vrot.slane %v4121, 5
    %v4124 = vor.u32 %v4120, %v4123
    %v4125 = vrot.slane %v4124, 4
    %v4127 = vshll.u32 %v4086, 16
    %v4129 = vrot.slane %v4127, 5
    %v4130 = vsel %vm215, %v4125, %v4129
    %v4132 = vshrl.u32 %v4087, 16
    %v4134 = vrot.slane %v4132, 4
    %v4135 = vshll.u32 %v4087, 16
    %v4137 = vrot.slane %v4135, 5
    %v4138 = vor.u32 %v4134, %v4137
    %v4139 = vrot.slane %v4138, 4
    %v4141 = vshll.u32 %v4088, 16
    %v4143 = vrot.slane %v4141, 5
    %v4144 = vsel %vm215, %v4139, %v4143
    %v4146 = vshrl.u32 %v4089, 16
    %v4148 = vrot.slane %v4146, 4
    %v4149 = vshll.u32 %v4089, 16
    %v4151 = vrot.slane %v4149, 5
    %v4152 = vor.u32 %v4148, %v4151
    %v4153 = vrot.slane %v4152, 4
    %v4155 = vshll.u32 %v4090, 16
    %v4157 = vrot.slane %v4155, 5
    %v4158 = vsel %vm215, %v4153, %v4157
    %v4160 = vshrl.u32 %v4091, 16
    %v4162 = vrot.slane %v4160, 4
    %v4163 = vshll.u32 %v4091, 16
    %v4165 = vrot.slane %v4163, 5
    %v4166 = vor.u32 %v4162, %v4165
    %v4167 = vrot.slane %v4166, 4
    %v4169 = vshll.u32 %v4092, 16
    %v4171 = vrot.slane %v4169, 5
    %v4172 = vsel %vm215, %v4167, %v4171
    %v4174 = vshrl.u32 %v4093, 16
    %v4176 = vrot.slane %v4174, 4
    %v4177 = vshll.u32 %v4093, 16
    %v4179 = vrot.slane %v4177, 5
    %v4180 = vor.u32 %v4176, %v4179
    %v4181 = vrot.slane %v4180, 4
    %v4183 = vshll.u32 %v4094, 16
    %v4185 = vrot.slane %v4183, 5
    %v4186 = vsel %vm215, %v4181, %v4185
    %v4188 = vshrl.u32 %v4095, 16
    %v4190 = vrot.slane %v4188, 4
    %v4191 = vshll.u32 %v4095, 16
    %v4193 = vrot.slane %v4191, 5
    %v4194 = vor.u32 %v4190, %v4193
    %v4195 = vrot.slane %v4194, 4
    %v4197 = vshll.u32 %v4096, 16
    %v4199 = vrot.slane %v4197, 5
    %v4200 = vsel %vm215, %v4195, %v4199
    %v4202 = vshrl.u32 %v4097, 16
    %v4204 = vrot.slane %v4202, 4
    %v4205 = vshll.u32 %v4097, 16
    %v4207 = vrot.slane %v4205, 5
    %v4208 = vor.u32 %v4204, %v4207
    %v4209 = vrot.slane %v4208, 4
    %v4211 = vshll.u32 %v4098, 16
    %v4213 = vrot.slane %v4211, 5
    %v4214 = vsel %vm215, %v4209, %v4213
    %v4216 = vshrl.u32 %v4099, 16
    %v4218 = vrot.slane %v4216, 4
    %v4219 = vshll.u32 %v4099, 16
    %v4221 = vrot.slane %v4219, 5
    %v4222 = vor.u32 %v4218, %v4221
    %v4223 = vrot.slane %v4222, 4
    %v4225 = vshll.u32 %v4100, 16
    %v4227 = vrot.slane %v4225, 5
    %v4228 = vsel %vm215, %v4223, %v4227
    %v4230 = vshrl.u32 %v4101, 16
    %v4232 = vrot.slane %v4230, 4
    %v4233 = vshll.u32 %v4101, 16
    %v4235 = vrot.slane %v4233, 5
    %v4236 = vor.u32 %v4232, %v4235
    %v4237 = vrot.slane %v4236, 4
    %v4239 = vshll.u32 %v4102, 16
    %v4241 = vrot.slane %v4239, 5
    %v4242 = vsel %vm215, %v4237, %v4241
    %v4244 = vshrl.u32 %v4103, 16
    %v4246 = vrot.slane %v4244, 4
    %v4247 = vshll.u32 %v4103, 16
    %v4249 = vrot.slane %v4247, 5
    %v4250 = vor.u32 %v4246, %v4249
    %v4251 = vrot.slane %v4250, 4
    %v4253 = vshll.u32 %v4104, 16
    %v4255 = vrot.slane %v4253, 5
    %v4256 = vsel %vm215, %v4251, %v4255
    %v4258 = vshrl.u32 %v4105, 16
    %v4260 = vrot.slane %v4258, 4
    %v4261 = vshll.u32 %v4105, 16
    %v4263 = vrot.slane %v4261, 5
    %v4264 = vor.u32 %v4260, %v4263
    %v4265 = vrot.slane %v4264, 4
    %v4267 = vshll.u32 %v4106, 16
    %v4269 = vrot.slane %v4267, 5
    %v4270 = vsel %vm215, %v4265, %v4269
    %v4272 = vshrl.u32 %v4107, 16
    %v4274 = vrot.slane %v4272, 4
    %v4275 = vshll.u32 %v4107, 16
    %v4277 = vrot.slane %v4275, 5
    %v4278 = vor.u32 %v4274, %v4277
    %v4279 = vrot.slane %v4278, 4
    %v4281 = vshll.u32 %v4108, 16
    %v4283 = vrot.slane %v4281, 5
    %v4284 = vsel %vm215, %v4279, %v4283
    %v4286 = vshrl.u32 %v4109, 16
    %v4288 = vrot.slane %v4286, 4
    %v4289 = vshll.u32 %v4109, 16
    %v4291 = vrot.slane %v4289, 5
    %v4292 = vor.u32 %v4288, %v4291
    %v4293 = vrot.slane %v4292, 4
    %v4295 = vshll.u32 %v4110, 16
    %v4297 = vrot.slane %v4295, 5
    %v4298 = vsel %vm215, %v4293, %v4297
    %v4300 = vshrl.u32 %v4111, 16
    %v4302 = vrot.slane %v4300, 4
    %v4303 = vshll.u32 %v4111, 16
    %v4305 = vrot.slane %v4303, 5
    %v4306 = vor.u32 %v4302, %v4305
    %v4307 = vrot.slane %v4306, 4
    %v4309 = vshll.u32 %v4112, 16
    %v4311 = vrot.slane %v4309, 5
    %v4312 = vsel %vm215, %v4307, %v4311
    %v4314 = vshrl.u32 %v4113, 16
    %v4316 = vrot.slane %v4314, 4
    %v4317 = vshll.u32 %v4113, 16
    %v4319 = vrot.slane %v4317, 5
    %v4320 = vor.u32 %v4316, %v4319
    %v4321 = vrot.slane %v4320, 4
    %v4323 = vshll.u32 %v4114, 16
    %v4325 = vrot.slane %v4323, 5
    %v4326 = vsel %vm215, %v4321, %v4325
    %v4328 = vshrl.u32 %v4115, 16
    %v4330 = vrot.slane %v4328, 4
    %v4331 = vshll.u32 %v4115, 16
    %v4333 = vrot.slane %v4331, 5
    %v4334 = vor.u32 %v4330, %v4333
    %v4335 = vrot.slane %v4334, 4
    %v4337 = vshll.u32 %v4116, 16
    %v4339 = vrot.slane %v4337, 5
    %v4340 = vsel %vm215, %v4335, %v4339
    %v4341 = vunpack.c.l.b16 %v4130
    %v4342 = vunpack.c.l.b16 %v4144
    %v4343 = vunpack.c.l.b16 %v4158
    %v4344 = vunpack.c.l.b16 %v4172
    %v4345 = vunpack.c.l.b16 %v4186
    %v4346 = vunpack.c.l.b16 %v4200
    %v4347 = vunpack.c.l.b16 %v4214
    %v4348 = vunpack.c.l.b16 %v4228
    %v4349 = vunpack.c.l.b16 %v4242
    %v4350 = vunpack.c.l.b16 %v4256
    %v4351 = vunpack.c.l.b16 %v4270
    %v4352 = vunpack.c.l.b16 %v4284
    %v4353 = vunpack.c.l.b16 %v4298
    %v4354 = vunpack.c.l.b16 %v4312
    %v4355 = vunpack.c.l.b16 %v4326
    %v4356 = vunpack.c.l.b16 %v4340
    %v4357 = vpack.c.b16 %v4342, %v4341
    %v4358 = vpack.c.b16 %v4344, %v4343
    %v4359 = vpack.c.b16 %v4346, %v4345
    %v4360 = vpack.c.b16 %v4348, %v4347
    %v4361 = vpack.c.b16 %v4350, %v4349
    %v4362 = vpack.c.b16 %v4352, %v4351
    %v4363 = vpack.c.b16 %v4354, %v4353
    %v4364 = vpack.c.b16 %v4356, %v4355
    %4373 = vst [vmem:[#allocation2 + $0x38] sm:$0xff] %v4357
    %4374 = vst [vmem:[#allocation2 + $0x80] sm:$0xff] %v4358
    %4375 = vst [vmem:[#allocation2 + $0xc8] sm:$0xff] %v4359
    %4376 = vst [vmem:[#allocation2 + $0x110] sm:$0xff] %v4360
    %4377 = vst [vmem:[#allocation2 + $0x158] sm:$0xff] %v4361
    %4378 = vst [vmem:[#allocation2 + $0x1a0] sm:$0xff] %v4362
    %4379 = vst [vmem:[#allocation2 + $0x1e8] sm:$0xff] %v4363
    %4380 = vst [vmem:[#allocation2 + $0x230] sm:$0xff] %v4364
    %v4381 = vld [vmem:[%s4012] sm:$0xe]
    %v4382 = vld [vmem:[%s4012 + $0x4] sm:$0x1]
    %v4383 = vld [vmem:[%s4012 + $0x8] sm:$0xe]
    %v4384 = vld [vmem:[%s4012 + $0xc] sm:$0x1]
    %v4385 = vld [vmem:[%s4012 + $0x10] sm:$0xe]
    %v4386 = vld [vmem:[%s4012 + $0x14] sm:$0x1]
    %v4387 = vld [vmem:[%s4012 + $0x18] sm:$0xe]
    %v4388 = vld [vmem:[%s4012 + $0x1c] sm:$0x1]
    %v4389 = vld [vmem:[%s4012 + $0x20] sm:$0xe]
    %v4390 = vld [vmem:[%s4012 + $0x24] sm:$0x1]
    %v4391 = vld [vmem:[%s4012 + $0x28] sm:$0xe]
    %v4392 = vld [vmem:[%s4012 + $0x2c] sm:$0x1]
    %v4393 = vld [vmem:[%s4012 + $0x30] sm:$0xe]
    %v4394 = vld [vmem:[%s4012 + $0x34] sm:$0x1]
    %v4395 = vld [vmem:[%s4012 + $0x38] sm:$0xe]
    %v4396 = vld [vmem:[%s4012 + $0x3c] sm:$0x1]
    %v4397 = vld [vmem:[%s4012 + $0x50] sm:$0xe]
    %v4398 = vld [vmem:[%s4012 + $0x54] sm:$0x1]
    %v4399 = vld [vmem:[%s4012 + $0x58] sm:$0xe]
    %v4400 = vld [vmem:[%s4012 + $0x5c] sm:$0x1]
    %v4401 = vld [vmem:[%s4012 + $0x60] sm:$0xe]
    %v4402 = vld [vmem:[%s4012 + $0x64] sm:$0x1]
    %v4403 = vld [vmem:[%s4012 + $0x68] sm:$0xe]
    %v4404 = vld [vmem:[%s4012 + $0x6c] sm:$0x1]
    %v4405 = vld [vmem:[%s4012 + $0x70] sm:$0xe]
    %v4406 = vld [vmem:[%s4012 + $0x74] sm:$0x1]
    %v4407 = vld [vmem:[%s4012 + $0x78] sm:$0xe]
    %v4408 = vld [vmem:[%s4012 + $0x7c] sm:$0x1]
    %v4409 = vld [vmem:[%s4012 + $0x80] sm:$0xe]
    %v4410 = vld [vmem:[%s4012 + $0x84] sm:$0x1]
    %v4411 = vld [vmem:[%s4012 + $0x88] sm:$0xe]
    %v4412 = vld [vmem:[%s4012 + $0x8c] sm:$0x1]
    %v4445 = vrot.slane %v4381, 5
    %v4446 = vrot.slane %v4445, 4
    %v4447 = vrot.slane %v4382, 5
    %v4448 = vsel %vm3371, %v4446, %v4447
    %v4449 = vrot.slane %v4383, 5
    %v4450 = vrot.slane %v4449, 4
    %v4451 = vrot.slane %v4384, 5
    %v4452 = vsel %vm3371, %v4450, %v4451
    %v4453 = vrot.slane %v4385, 5
    %v4454 = vrot.slane %v4453, 4
    %v4455 = vrot.slane %v4386, 5
    %v4456 = vsel %vm3371, %v4454, %v4455
    %v4457 = vrot.slane %v4387, 5
    %v4458 = vrot.slane %v4457, 4
    %v4459 = vrot.slane %v4388, 5
    %v4460 = vsel %vm3371, %v4458, %v4459
    %v4461 = vrot.slane %v4389, 5
    %v4462 = vrot.slane %v4461, 4
    %v4463 = vrot.slane %v4390, 5
    %v4464 = vsel %vm3371, %v4462, %v4463
    %v4465 = vrot.slane %v4391, 5
    %v4466 = vrot.slane %v4465, 4
    %v4467 = vrot.slane %v4392, 5
    %v4468 = vsel %vm3371, %v4466, %v4467
    %v4469 = vrot.slane %v4393, 5
    %v4470 = vrot.slane %v4469, 4
    %v4471 = vrot.slane %v4394, 5
    %v4472 = vsel %vm3371, %v4470, %v4471
    %v4473 = vrot.slane %v4395, 5
    %v4474 = vrot.slane %v4473, 4
    %v4475 = vrot.slane %v4396, 5
    %v4476 = vsel %vm3371, %v4474, %v4475
    %v4477 = vrot.slane %v4397, 5
    %v4478 = vrot.slane %v4477, 4
    %v4479 = vrot.slane %v4398, 5
    %v4480 = vsel %vm3371, %v4478, %v4479
    %v4481 = vrot.slane %v4399, 5
    %v4482 = vrot.slane %v4481, 4
    %v4483 = vrot.slane %v4400, 5
    %v4484 = vsel %vm3371, %v4482, %v4483
    %v4485 = vrot.slane %v4401, 5
    %v4486 = vrot.slane %v4485, 4
    %v4487 = vrot.slane %v4402, 5
    %v4488 = vsel %vm3371, %v4486, %v4487
    %v4489 = vrot.slane %v4403, 5
    %v4490 = vrot.slane %v4489, 4
    %v4491 = vrot.slane %v4404, 5
    %v4492 = vsel %vm3371, %v4490, %v4491
    %v4493 = vrot.slane %v4405, 5
    %v4494 = vrot.slane %v4493, 4
    %v4495 = vrot.slane %v4406, 5
    %v4496 = vsel %vm3371, %v4494, %v4495
    %v4497 = vrot.slane %v4407, 5
    %v4498 = vrot.slane %v4497, 4
    %v4499 = vrot.slane %v4408, 5
    %v4500 = vsel %vm3371, %v4498, %v4499
    %v4501 = vrot.slane %v4409, 5
    %v4502 = vrot.slane %v4501, 4
    %v4503 = vrot.slane %v4410, 5
    %v4504 = vsel %vm3371, %v4502, %v4503
    %v4505 = vrot.slane %v4411, 5
    %v4506 = vrot.slane %v4505, 4
    %v4507 = vrot.slane %v4412, 5
    %v4508 = vsel %vm3371, %v4506, %v4507
    %v4509 = vunpack.c.l.b16 %v4448
    %v4510 = vunpack.c.l.b16 %v4452
    %v4511 = vunpack.c.l.b16 %v4456
    %v4512 = vunpack.c.l.b16 %v4460
    %v4513 = vunpack.c.l.b16 %v4464
    %v4514 = vunpack.c.l.b16 %v4468
    %v4515 = vunpack.c.l.b16 %v4472
    %v4516 = vunpack.c.l.b16 %v4476
    %v4517 = vunpack.c.l.b16 %v4480
    %v4518 = vunpack.c.l.b16 %v4484
    %v4519 = vunpack.c.l.b16 %v4488
    %v4520 = vunpack.c.l.b16 %v4492
    %v4521 = vunpack.c.l.b16 %v4496
    %v4522 = vunpack.c.l.b16 %v4500
    %v4523 = vunpack.c.l.b16 %v4504
    %v4524 = vunpack.c.l.b16 %v4508
    %v4525 = vpack.c.b16 %v4510, %v4509
    %v4526 = vpack.c.b16 %v4512, %v4511
    %v4527 = vpack.c.b16 %v4514, %v4513
    %v4528 = vpack.c.b16 %v4516, %v4515
    %v4529 = vpack.c.b16 %v4518, %v4517
    %v4530 = vpack.c.b16 %v4520, %v4519
    %v4531 = vpack.c.b16 %v4522, %v4521
    %v4532 = vpack.c.b16 %v4524, %v4523
    %4541 = vst [vmem:[#allocation2 + $0x40] sm:$0xff] %v4525
    %4542 = vst [vmem:[#allocation2 + $0x88] sm:$0xff] %v4526
    %4543 = vst [vmem:[#allocation2 + $0xd0] sm:$0xff] %v4527
    %4544 = vst [vmem:[#allocation2 + $0x118] sm:$0xff] %v4528
    %4545 = vst [vmem:[#allocation2 + $0x160] sm:$0xff] %v4529
    %4546 = vst [vmem:[#allocation2 + $0x1a8] sm:$0xff] %v4530
    %4547 = vst [vmem:[#allocation2 + $0x1f0] sm:$0xff] %v4531
    %4548 = vst [vmem:[#allocation2 + $0x238] sm:$0xff] %v4532
    %v4549 = vld [vmem:[#allocation2] sm:$0xff]
    %v4550 = vld [vmem:[#allocation2 + $0x8] sm:$0xff]
    %v4551 = vld [vmem:[#allocation2 + $0x10] sm:$0xff]
    %v4552 = vld [vmem:[#allocation2 + $0x18] sm:$0xff]
    %v4553 = vld [vmem:[#allocation2 + $0x20] sm:$0xff]
    %v4554 = vld [vmem:[#allocation2 + $0x28] sm:$0xff]
    %v4555 = vld [vmem:[#allocation2 + $0x30] sm:$0xff]
    %v4556 = vld [vmem:[#allocation2 + $0x38] sm:$0xff]
    %v4557 = vld [vmem:[#allocation2 + $0x40] sm:$0xff]
    %v4558 = vld [vmem:[#allocation2 + $0x48] sm:$0xff]
    %v4559 = vld [vmem:[#allocation2 + $0x50] sm:$0xff]
    %v4560 = vld [vmem:[#allocation2 + $0x58] sm:$0xff]
    %v4561 = vld [vmem:[#allocation2 + $0x60] sm:$0xff]
    %v4562 = vld [vmem:[#allocation2 + $0x68] sm:$0xff]
    %v4563 = vld [vmem:[#allocation2 + $0x70] sm:$0xff]
    %v4564 = vld [vmem:[#allocation2 + $0x78] sm:$0xff]
    %v4565 = vld [vmem:[#allocation2 + $0x80] sm:$0xff]
    %v4566 = vld [vmem:[#allocation2 + $0x88] sm:$0xff]
    %v4567 = vld [vmem:[#allocation2 + $0x90] sm:$0xff]
    %v4568 = vld [vmem:[#allocation2 + $0x98] sm:$0xff]
    %v4569 = vld [vmem:[#allocation2 + $0xa0] sm:$0xff]
    %v4570 = vld [vmem:[#allocation2 + $0xa8] sm:$0xff]
    %v4571 = vld [vmem:[#allocation2 + $0xb0] sm:$0xff]
    %v4572 = vld [vmem:[#allocation2 + $0xb8] sm:$0xff]
    %v4573 = vld [vmem:[#allocation2 + $0xc0] sm:$0xff]
    %v4574 = vld [vmem:[#allocation2 + $0xc8] sm:$0xff]
    %v4575 = vld [vmem:[#allocation2 + $0xd0] sm:$0xff]
    %v4576 = vld [vmem:[#allocation2 + $0xd8] sm:$0xff]
    %v4577 = vld [vmem:[#allocation2 + $0xe0] sm:$0xff]
    %v4578 = vld [vmem:[#allocation2 + $0xe8] sm:$0xff]
    %v4579 = vld [vmem:[#allocation2 + $0xf0] sm:$0xff]
    %v4580 = vld [vmem:[#allocation2 + $0xf8] sm:$0xff]
    %v4581 = vld [vmem:[#allocation2 + $0x100] sm:$0xff]
    %v4582 = vld [vmem:[#allocation2 + $0x108] sm:$0xff]
    %v4583 = vld [vmem:[#allocation2 + $0x110] sm:$0xff]
    %v4584 = vld [vmem:[#allocation2 + $0x118] sm:$0xff]
    %v4585 = vld [vmem:[#allocation2 + $0x120] sm:$0xff]
    %v4586 = vld [vmem:[#allocation2 + $0x128] sm:$0xff]
    %v4587 = vld [vmem:[#allocation2 + $0x130] sm:$0xff]
    %v4588 = vld [vmem:[#allocation2 + $0x138] sm:$0xff]
    %v4589 = vld [vmem:[#allocation2 + $0x140] sm:$0xff]
    %v4590 = vld [vmem:[#allocation2 + $0x148] sm:$0xff]
    %v4591 = vld [vmem:[#allocation2 + $0x150] sm:$0xff]
    %v4592 = vld [vmem:[#allocation2 + $0x158] sm:$0xff]
    %v4593 = vld [vmem:[#allocation2 + $0x160] sm:$0xff]
    %v4594 = vld [vmem:[#allocation2 + $0x168] sm:$0xff]
    %v4595 = vld [vmem:[#allocation2 + $0x170] sm:$0xff]
    %v4596 = vld [vmem:[#allocation2 + $0x178] sm:$0xff]
    %v4597 = vld [vmem:[#allocation2 + $0x180] sm:$0xff]
    %v4598 = vld [vmem:[#allocation2 + $0x188] sm:$0xff]
    %v4599 = vld [vmem:[#allocation2 + $0x190] sm:$0xff]
    %v4600 = vld [vmem:[#allocation2 + $0x198] sm:$0xff]
    %v4601 = vld [vmem:[#allocation2 + $0x1a0] sm:$0xff]
    %v4602 = vld [vmem:[#allocation2 + $0x1a8] sm:$0xff]
    %v4603 = vld [vmem:[#allocation2 + $0x1b0] sm:$0xff]
    %v4604 = vld [vmem:[#allocation2 + $0x1b8] sm:$0xff]
    %v4605 = vld [vmem:[#allocation2 + $0x1c0] sm:$0xff]
    %v4606 = vld [vmem:[#allocation2 + $0x1c8] sm:$0xff]
    %v4607 = vld [vmem:[#allocation2 + $0x1d0] sm:$0xff]
    %v4608 = vld [vmem:[#allocation2 + $0x1d8] sm:$0xff]
    %v4609 = vld [vmem:[#allocation2 + $0x1e0] sm:$0xff]
    %v4610 = vld [vmem:[#allocation2 + $0x1e8] sm:$0xff]
    %v4611 = vld [vmem:[#allocation2 + $0x1f0] sm:$0xff]
    %v4612 = vld [vmem:[#allocation2 + $0x1f8] sm:$0xff]
    %v4613 = vld [vmem:[#allocation2 + $0x200] sm:$0xff]
    %v4614 = vld [vmem:[#allocation2 + $0x208] sm:$0xff]
    %v4615 = vld [vmem:[#allocation2 + $0x210] sm:$0xff]
    %v4616 = vld [vmem:[#allocation2 + $0x218] sm:$0xff]
    %v4617 = vld [vmem:[#allocation2 + $0x220] sm:$0xff]
    %v4618 = vld [vmem:[#allocation2 + $0x228] sm:$0xff]
    %v4619 = vld [vmem:[#allocation2 + $0x230] sm:$0xff]
    %v4620 = vld [vmem:[#allocation2 + $0x238] sm:$0xff]
    %v4621 = vld [vmem:[#allocation4] sm:$0xf]
    %v4622 = vld [vmem:[#allocation4 + $0x4] sm:$0xf]
    %v4623 = vld [vmem:[#allocation4 + $0x8] sm:$0xf]
    %v4624 = vld [vmem:[#allocation4 + $0xc] sm:$0xf]
    %v4625 = vld [vmem:[#allocation4 + $0x10] sm:$0xf]
    %v4626 = vld [vmem:[#allocation4 + $0x14] sm:$0xf]
    %v4627 = vld [vmem:[#allocation4 + $0x18] sm:$0xf]
    %v4628 = vld [vmem:[#allocation4 + $0x1c] sm:$0xf]
    %v4629 = vld [vmem:[#allocation4 + $0x20] sm:$0xf]
    %v4630 = vld [vmem:[#allocation4 + $0x24] sm:$0xf]
    %v4631 = vld [vmem:[#allocation4 + $0x28] sm:$0xf]
    %v4632 = vld [vmem:[#allocation4 + $0x2c] sm:$0xf]
    %v4633 = vld [vmem:[#allocation4 + $0x30] sm:$0xf]
    %v4634 = vld [vmem:[#allocation4 + $0x34] sm:$0xf]
    %v4635 = vld [vmem:[#allocation4 + $0x38] sm:$0xf]
    %v4636 = vld [vmem:[#allocation4 + $0x3c] sm:$0xf]
    %v4637 = vld [vmem:[#allocation4 + $0x40] sm:$0xf]
    %v4638 = vld [vmem:[#allocation4 + $0x44] sm:$0xf]
    %v4639 = vld [vmem:[#allocation4 + $0x48] sm:$0xf]
    %v4640 = vld [vmem:[#allocation4 + $0x4c] sm:$0xf]
    %v4641 = vld [vmem:[#allocation4 + $0x50] sm:$0xf]
    %v4642 = vld [vmem:[#allocation4 + $0x54] sm:$0xf]
    %v4643 = vld [vmem:[#allocation4 + $0x58] sm:$0xf]
    %v4644 = vld [vmem:[#allocation4 + $0x5c] sm:$0xf]
    %v4645 = vld [vmem:[#allocation4 + $0x60] sm:$0xf]
    %v4646 = vld [vmem:[#allocation4 + $0x64] sm:$0xf]
    %v4647 = vld [vmem:[#allocation4 + $0x68] sm:$0xf]
    %v4648 = vld [vmem:[#allocation4 + $0x6c] sm:$0xf]
    %v4649 = vld [vmem:[#allocation4 + $0x70] sm:$0xf]
    %v4650 = vld [vmem:[#allocation4 + $0x74] sm:$0xf]
    %v4651 = vld [vmem:[#allocation4 + $0x78] sm:$0xf]
    %v4652 = vld [vmem:[#allocation4 + $0x7c] sm:$0xf]
    %v4653 = vld [vmem:[#allocation4 + $0x80] sm:$0xf]
    %v4654 = vld [vmem:[#allocation4 + $0x84] sm:$0xf]
    %v4655 = vld [vmem:[#allocation4 + $0x88] sm:$0xf]
    %v4656 = vld [vmem:[#allocation4 + $0x8c] sm:$0xf]
    %v4657 = vld [vmem:[#allocation4 + $0x90] sm:$0xf]
    %v4658 = vld [vmem:[#allocation4 + $0x94] sm:$0xf]
    %v4659 = vld [vmem:[#allocation4 + $0x98] sm:$0xf]
    %v4660 = vld [vmem:[#allocation4 + $0x9c] sm:$0xf]
    %v4661 = vld [vmem:[#allocation4 + $0xa0] sm:$0xf]
    %v4662 = vld [vmem:[#allocation4 + $0xa4] sm:$0xf]
    %v4663 = vld [vmem:[#allocation4 + $0xa8] sm:$0xf]
    %v4664 = vld [vmem:[#allocation4 + $0xac] sm:$0xf]
    %v4665 = vld [vmem:[#allocation4 + $0xb0] sm:$0xf]
    %v4666 = vld [vmem:[#allocation4 + $0xb4] sm:$0xf]
    %v4667 = vld [vmem:[#allocation4 + $0xb8] sm:$0xf]
    %v4668 = vld [vmem:[#allocation4 + $0xbc] sm:$0xf]
    %v4669 = vld [vmem:[#allocation4 + $0xc0] sm:$0xf]
    %v4670 = vld [vmem:[#allocation4 + $0xc4] sm:$0xf]
    %v4671 = vld [vmem:[#allocation4 + $0xc8] sm:$0xf]
    %v4672 = vld [vmem:[#allocation4 + $0xcc] sm:$0xf]
    %v4673 = vld [vmem:[#allocation4 + $0xd0] sm:$0xf]
    %v4674 = vld [vmem:[#allocation4 + $0xd4] sm:$0xf]
    %v4675 = vld [vmem:[#allocation4 + $0xd8] sm:$0xf]
    %v4676 = vld [vmem:[#allocation4 + $0xdc] sm:$0xf]
    %v4677 = vld [vmem:[#allocation4 + $0xe0] sm:$0xf]
    %v4678 = vld [vmem:[#allocation4 + $0xe4] sm:$0xf]
    %v4679 = vld [vmem:[#allocation4 + $0xe8] sm:$0xf]
    %v4680 = vld [vmem:[#allocation4 + $0xec] sm:$0xf]
    %v4681 = vld [vmem:[#allocation4 + $0xf0] sm:$0xf]
    %v4682 = vld [vmem:[#allocation4 + $0xf4] sm:$0xf]
    %v4683 = vld [vmem:[#allocation4 + $0xf8] sm:$0xf]
    %v4684 = vld [vmem:[#allocation4 + $0xfc] sm:$0xf]
    %v4685 = vld [vmem:[#allocation4 + $0x100] sm:$0xf]
    %v4686 = vld [vmem:[#allocation4 + $0x104] sm:$0xf]
    %v4687 = vld [vmem:[#allocation4 + $0x108] sm:$0xf]
    %v4688 = vld [vmem:[#allocation4 + $0x10c] sm:$0xf]
    %v4689 = vld [vmem:[#allocation4 + $0x110] sm:$0xf]
    %v4690 = vld [vmem:[#allocation4 + $0x114] sm:$0xf]
    %v4691 = vld [vmem:[#allocation4 + $0x118] sm:$0xf]
    %v4692 = vld [vmem:[#allocation4 + $0x11c] sm:$0xf]
    %v4693 = vld [vmem:[#allocation4 + $0x120] sm:$0xf]
    %v4694 = vld [vmem:[#allocation4 + $0x124] sm:$0xf]
    %v4695 = vld [vmem:[#allocation4 + $0x128] sm:$0xf]
    %v4696 = vld [vmem:[#allocation4 + $0x12c] sm:$0xf]
    %v4697 = vld [vmem:[#allocation4 + $0x130] sm:$0xf]
    %v4698 = vld [vmem:[#allocation4 + $0x134] sm:$0xf]
    %v4699 = vld [vmem:[#allocation4 + $0x138] sm:$0xf]
    %v4700 = vld [vmem:[#allocation4 + $0x13c] sm:$0xf]
    %v4701 = vld [vmem:[#allocation4 + $0x140] sm:$0xf]
    %v4702 = vld [vmem:[#allocation4 + $0x144] sm:$0xf]
    %v4703 = vld [vmem:[#allocation4 + $0x148] sm:$0xf]
    %v4704 = vld [vmem:[#allocation4 + $0x14c] sm:$0xf]
    %v4705 = vld [vmem:[#allocation4 + $0x150] sm:$0xf]
    %v4706 = vld [vmem:[#allocation4 + $0x154] sm:$0xf]
    %v4707 = vld [vmem:[#allocation4 + $0x158] sm:$0xf]
    %v4708 = vld [vmem:[#allocation4 + $0x15c] sm:$0xf]
    %v4709 = vld [vmem:[#allocation4 + $0x160] sm:$0xf]
    %v4710 = vld [vmem:[#allocation4 + $0x164] sm:$0xf]
    %v4711 = vld [vmem:[#allocation4 + $0x168] sm:$0xf]
    %v4712 = vld [vmem:[#allocation4 + $0x16c] sm:$0xf]
    %v4713 = vld [vmem:[#allocation4 + $0x170] sm:$0xf]
    %v4714 = vld [vmem:[#allocation4 + $0x174] sm:$0xf]
    %v4715 = vld [vmem:[#allocation4 + $0x178] sm:$0xf]
    %v4716 = vld [vmem:[#allocation4 + $0x17c] sm:$0xf]
    %v4717 = vld [vmem:[#allocation4 + $0x180] sm:$0xf]
    %v4718 = vld [vmem:[#allocation4 + $0x184] sm:$0xf]
    %v4719 = vld [vmem:[#allocation4 + $0x188] sm:$0xf]
    %v4720 = vld [vmem:[#allocation4 + $0x18c] sm:$0xf]
    %v4721 = vld [vmem:[#allocation4 + $0x190] sm:$0xf]
    %v4722 = vld [vmem:[#allocation4 + $0x194] sm:$0xf]
    %v4723 = vld [vmem:[#allocation4 + $0x198] sm:$0xf]
    %v4724 = vld [vmem:[#allocation4 + $0x19c] sm:$0xf]
    %v4725 = vld [vmem:[#allocation4 + $0x1a0] sm:$0xf]
    %v4726 = vld [vmem:[#allocation4 + $0x1a4] sm:$0xf]
    %v4727 = vld [vmem:[#allocation4 + $0x1a8] sm:$0xf]
    %v4728 = vld [vmem:[#allocation4 + $0x1ac] sm:$0xf]
    %v4729 = vld [vmem:[#allocation4 + $0x1b0] sm:$0xf]
    %v4730 = vld [vmem:[#allocation4 + $0x1b4] sm:$0xf]
    %v4731 = vld [vmem:[#allocation4 + $0x1b8] sm:$0xf]
    %v4732 = vld [vmem:[#allocation4 + $0x1bc] sm:$0xf]
    %v4733 = vld [vmem:[#allocation4 + $0x1c0] sm:$0xf]
    %v4734 = vld [vmem:[#allocation4 + $0x1c4] sm:$0xf]
    %v4735 = vld [vmem:[#allocation4 + $0x1c8] sm:$0xf]
    %v4736 = vld [vmem:[#allocation4 + $0x1cc] sm:$0xf]
    %v4737 = vld [vmem:[#allocation4 + $0x1d0] sm:$0xf]
    %v4738 = vld [vmem:[#allocation4 + $0x1d4] sm:$0xf]
    %v4739 = vld [vmem:[#allocation4 + $0x1d8] sm:$0xf]
    %v4740 = vld [vmem:[#allocation4 + $0x1dc] sm:$0xf]
    %v4741 = vld [vmem:[#allocation4 + $0x1e0] sm:$0xf]
    %v4742 = vld [vmem:[#allocation4 + $0x1e4] sm:$0xf]
    %v4743 = vld [vmem:[#allocation4 + $0x1e8] sm:$0xf]
    %v4744 = vld [vmem:[#allocation4 + $0x1ec] sm:$0xf]
    %v4745 = vld [vmem:[#allocation4 + $0x1f0] sm:$0xf]
    %v4746 = vld [vmem:[#allocation4 + $0x1f4] sm:$0xf]
    %v4747 = vld [vmem:[#allocation4 + $0x1f8] sm:$0xf]
    %v4748 = vld [vmem:[#allocation4 + $0x1fc] sm:$0xf]
    %v4749 = vld [vmem:[#allocation4 + $0x200] sm:$0xf]
    %v4750 = vld [vmem:[#allocation4 + $0x204] sm:$0xf]
    %v4751 = vld [vmem:[#allocation4 + $0x208] sm:$0xf]
    %v4752 = vld [vmem:[#allocation4 + $0x20c] sm:$0xf]
    %v4753 = vld [vmem:[#allocation4 + $0x210] sm:$0xf]
    %v4754 = vld [vmem:[#allocation4 + $0x214] sm:$0xf]
    %v4755 = vld [vmem:[#allocation4 + $0x218] sm:$0xf]
    %v4756 = vld [vmem:[#allocation4 + $0x21c] sm:$0xf]
    %v4757 = vld [vmem:[#allocation4 + $0x220] sm:$0xf]
    %v4758 = vld [vmem:[#allocation4 + $0x224] sm:$0xf]
    %v4759 = vld [vmem:[#allocation4 + $0x228] sm:$0xf]
    %v4760 = vld [vmem:[#allocation4 + $0x22c] sm:$0xf]
    %v4761 = vld [vmem:[#allocation4 + $0x230] sm:$0xf]
    %v4762 = vld [vmem:[#allocation4 + $0x234] sm:$0xf]
    %v4763 = vld [vmem:[#allocation4 + $0x238] sm:$0xf]
    %v4764 = vld [vmem:[#allocation4 + $0x23c] sm:$0xf]
    %v4765 = vld [vmem:[%s4] sm:$0x1]
    %v4767 = vlaneseq
    %v4768 = vshrl.u32 %v4767, 7
    %v4769 = vsub.s32 0, %v4768
    %v4770 = vrot.slane %v4765, %v4769
    %v4916 = vunpack.c.l.b16 %v4621
    %v4917 = vunpack.c.l.b16 %v4622
    %v4918 = vunpack.c.l.b16 %v4623
    %v4919 = vunpack.c.l.b16 %v4624
    %v4920 = vunpack.c.l.b16 %v4625
    %v4921 = vunpack.c.l.b16 %v4626
    %v4922 = vunpack.c.l.b16 %v4627
    %v4923 = vunpack.c.l.b16 %v4628
    %v4924 = vunpack.c.l.b16 %v4629
    %v4925 = vunpack.c.l.b16 %v4630
    %v4926 = vunpack.c.l.b16 %v4631
    %v4927 = vunpack.c.l.b16 %v4632
    %v4928 = vunpack.c.l.b16 %v4633
    %v4929 = vunpack.c.l.b16 %v4634
    %v4930 = vunpack.c.l.b16 %v4635
    %v4931 = vunpack.c.l.b16 %v4636
    %v4932 = vunpack.c.l.b16 %v4637
    %v4933 = vunpack.c.l.b16 %v4638
    %v4934 = vunpack.c.l.b16 %v4639
    %v4935 = vunpack.c.l.b16 %v4640
    %v4936 = vunpack.c.l.b16 %v4641
    %v4937 = vunpack.c.l.b16 %v4642
    %v4938 = vunpack.c.l.b16 %v4643
    %v4939 = vunpack.c.l.b16 %v4644
    %v4940 = vunpack.c.l.b16 %v4645
    %v4941 = vunpack.c.l.b16 %v4646
    %v4942 = vunpack.c.l.b16 %v4647
    %v4943 = vunpack.c.l.b16 %v4648
    %v4944 = vunpack.c.l.b16 %v4649
    %v4945 = vunpack.c.l.b16 %v4650
    %v4946 = vunpack.c.l.b16 %v4651
    %v4947 = vunpack.c.l.b16 %v4652
    %v4948 = vunpack.c.l.b16 %v4653
    %v4949 = vunpack.c.l.b16 %v4654
    %v4950 = vunpack.c.l.b16 %v4655
    %v4951 = vunpack.c.l.b16 %v4656
    %v4952 = vunpack.c.l.b16 %v4657
    %v4953 = vunpack.c.l.b16 %v4658
    %v4954 = vunpack.c.l.b16 %v4659
    %v4955 = vunpack.c.l.b16 %v4660
    %v4956 = vunpack.c.l.b16 %v4661
    %v4957 = vunpack.c.l.b16 %v4662
    %v4958 = vunpack.c.l.b16 %v4663
    %v4959 = vunpack.c.l.b16 %v4664
    %v4960 = vunpack.c.l.b16 %v4665
    %v4961 = vunpack.c.l.b16 %v4666
    %v4962 = vunpack.c.l.b16 %v4667
    %v4963 = vunpack.c.l.b16 %v4668
    %v4964 = vunpack.c.l.b16 %v4669
    %v4965 = vunpack.c.l.b16 %v4670
    %v4966 = vunpack.c.l.b16 %v4671
    %v4967 = vunpack.c.l.b16 %v4672
    %v4968 = vunpack.c.l.b16 %v4673
    %v4969 = vunpack.c.l.b16 %v4674
    %v4970 = vunpack.c.l.b16 %v4675
    %v4971 = vunpack.c.l.b16 %v4676
    %v4972 = vunpack.c.l.b16 %v4677
    %v4973 = vunpack.c.l.b16 %v4678
    %v4974 = vunpack.c.l.b16 %v4679
    %v4975 = vunpack.c.l.b16 %v4680
    %v4976 = vunpack.c.l.b16 %v4681
    %v4977 = vunpack.c.l.b16 %v4682
    %v4978 = vunpack.c.l.b16 %v4683
    %v4979 = vunpack.c.l.b16 %v4684
    %v4980 = vunpack.c.l.b16 %v4685
    %v4981 = vunpack.c.l.b16 %v4686
    %v4982 = vunpack.c.l.b16 %v4687
    %v4983 = vunpack.c.l.b16 %v4688
    %v4984 = vunpack.c.l.b16 %v4689
    %v4985 = vunpack.c.l.b16 %v4690
    %v4986 = vunpack.c.l.b16 %v4691
    %v4987 = vunpack.c.l.b16 %v4692
    %v4988 = vunpack.c.l.b16 %v4693
    %v4989 = vunpack.c.l.b16 %v4694
    %v4990 = vunpack.c.l.b16 %v4695
    %v4991 = vunpack.c.l.b16 %v4696
    %v4992 = vunpack.c.l.b16 %v4697
    %v4993 = vunpack.c.l.b16 %v4698
    %v4994 = vunpack.c.l.b16 %v4699
    %v4995 = vunpack.c.l.b16 %v4700
    %v4996 = vunpack.c.l.b16 %v4701
    %v4997 = vunpack.c.l.b16 %v4702
    %v4998 = vunpack.c.l.b16 %v4703
    %v4999 = vunpack.c.l.b16 %v4704
    %v5000 = vunpack.c.l.b16 %v4705
    %v5001 = vunpack.c.l.b16 %v4706
    %v5002 = vunpack.c.l.b16 %v4707
    %v5003 = vunpack.c.l.b16 %v4708
    %v5004 = vunpack.c.l.b16 %v4709
    %v5005 = vunpack.c.l.b16 %v4710
    %v5006 = vunpack.c.l.b16 %v4711
    %v5007 = vunpack.c.l.b16 %v4712
    %v5008 = vunpack.c.l.b16 %v4713
    %v5009 = vunpack.c.l.b16 %v4714
    %v5010 = vunpack.c.l.b16 %v4715
    %v5011 = vunpack.c.l.b16 %v4716
    %v5012 = vunpack.c.l.b16 %v4717
    %v5013 = vunpack.c.l.b16 %v4718
    %v5014 = vunpack.c.l.b16 %v4719
    %v5015 = vunpack.c.l.b16 %v4720
    %v5016 = vunpack.c.l.b16 %v4721
    %v5017 = vunpack.c.l.b16 %v4722
    %v5018 = vunpack.c.l.b16 %v4723
    %v5019 = vunpack.c.l.b16 %v4724
    %v5020 = vunpack.c.l.b16 %v4725
    %v5021 = vunpack.c.l.b16 %v4726
    %v5022 = vunpack.c.l.b16 %v4727
    %v5023 = vunpack.c.l.b16 %v4728
    %v5024 = vunpack.c.l.b16 %v4729
    %v5025 = vunpack.c.l.b16 %v4730
    %v5026 = vunpack.c.l.b16 %v4731
    %v5027 = vunpack.c.l.b16 %v4732
    %v5028 = vunpack.c.l.b16 %v4733
    %v5029 = vunpack.c.l.b16 %v4734
    %v5030 = vunpack.c.l.b16 %v4735
    %v5031 = vunpack.c.l.b16 %v4736
    %v5032 = vunpack.c.l.b16 %v4737
    %v5033 = vunpack.c.l.b16 %v4738
    %v5034 = vunpack.c.l.b16 %v4739
    %v5035 = vunpack.c.l.b16 %v4740
    %v5036 = vunpack.c.l.b16 %v4741
    %v5037 = vunpack.c.l.b16 %v4742
    %v5038 = vunpack.c.l.b16 %v4743
    %v5039 = vunpack.c.l.b16 %v4744
    %v5040 = vunpack.c.l.b16 %v4745
    %v5041 = vunpack.c.l.b16 %v4746
    %v5042 = vunpack.c.l.b16 %v4747
    %v5043 = vunpack.c.l.b16 %v4748
    %v5044 = vunpack.c.l.b16 %v4749
    %v5045 = vunpack.c.l.b16 %v4750
    %v5046 = vunpack.c.l.b16 %v4751
    %v5047 = vunpack.c.l.b16 %v4752
    %v5048 = vunpack.c.l.b16 %v4753
    %v5049 = vunpack.c.l.b16 %v4754
    %v5050 = vunpack.c.l.b16 %v4755
    %v5051 = vunpack.c.l.b16 %v4756
    %v5052 = vunpack.c.l.b16 %v4757
    %v5053 = vunpack.c.l.b16 %v4758
    %v5054 = vunpack.c.l.b16 %v4759
    %v5055 = vunpack.c.l.b16 %v4760
    %v5056 = vunpack.c.l.b16 %v4761
    %v5057 = vunpack.c.l.b16 %v4762
    %v5058 = vunpack.c.l.b16 %v4763
    %v5059 = vunpack.c.l.b16 %v4764
    %v5060 = vpack.c.b16 %v4917, %v4916
    %v5061 = vpack.c.b16 %v4919, %v4918
    %v5062 = vpack.c.b16 %v4921, %v4920
    %v5063 = vpack.c.b16 %v4923, %v4922
    %v5064 = vpack.c.b16 %v4925, %v4924
    %v5065 = vpack.c.b16 %v4927, %v4926
    %v5066 = vpack.c.b16 %v4929, %v4928
    %v5067 = vpack.c.b16 %v4931, %v4930
    %v5068 = vpack.c.b16 %v4933, %v4932
    %v5069 = vpack.c.b16 %v4935, %v4934
    %v5070 = vpack.c.b16 %v4937, %v4936
    %v5071 = vpack.c.b16 %v4939, %v4938
    %v5072 = vpack.c.b16 %v4941, %v4940
    %v5073 = vpack.c.b16 %v4943, %v4942
    %v5074 = vpack.c.b16 %v4945, %v4944
    %v5075 = vpack.c.b16 %v4947, %v4946
    %v5076 = vpack.c.b16 %v4949, %v4948
    %v5077 = vpack.c.b16 %v4951, %v4950
    %v5078 = vpack.c.b16 %v4953, %v4952
    %v5079 = vpack.c.b16 %v4955, %v4954
    %v5080 = vpack.c.b16 %v4957, %v4956
    %v5081 = vpack.c.b16 %v4959, %v4958
    %v5082 = vpack.c.b16 %v4961, %v4960
    %v5083 = vpack.c.b16 %v4963, %v4962
    %v5084 = vpack.c.b16 %v4965, %v4964
    %v5085 = vpack.c.b16 %v4967, %v4966
    %v5086 = vpack.c.b16 %v4969, %v4968
    %v5087 = vpack.c.b16 %v4971, %v4970
    %v5088 = vpack.c.b16 %v4973, %v4972
    %v5089 = vpack.c.b16 %v4975, %v4974
    %v5090 = vpack.c.b16 %v4977, %v4976
    %v5091 = vpack.c.b16 %v4979, %v4978
    %v5092 = vpack.c.b16 %v4981, %v4980
    %v5093 = vpack.c.b16 %v4983, %v4982
    %v5094 = vpack.c.b16 %v4985, %v4984
    %v5095 = vpack.c.b16 %v4987, %v4986
    %v5096 = vpack.c.b16 %v4989, %v4988
    %v5097 = vpack.c.b16 %v4991, %v4990
    %v5098 = vpack.c.b16 %v4993, %v4992
    %v5099 = vpack.c.b16 %v4995, %v4994
    %v5100 = vpack.c.b16 %v4997, %v4996
    %v5101 = vpack.c.b16 %v4999, %v4998
    %v5102 = vpack.c.b16 %v5001, %v5000
    %v5103 = vpack.c.b16 %v5003, %v5002
    %v5104 = vpack.c.b16 %v5005, %v5004
    %v5105 = vpack.c.b16 %v5007, %v5006
    %v5106 = vpack.c.b16 %v5009, %v5008
    %v5107 = vpack.c.b16 %v5011, %v5010
    %v5108 = vpack.c.b16 %v5013, %v5012
    %v5109 = vpack.c.b16 %v5015, %v5014
    %v5110 = vpack.c.b16 %v5017, %v5016
    %v5111 = vpack.c.b16 %v5019, %v5018
    %v5112 = vpack.c.b16 %v5021, %v5020
    %v5113 = vpack.c.b16 %v5023, %v5022
    %v5114 = vpack.c.b16 %v5025, %v5024
    %v5115 = vpack.c.b16 %v5027, %v5026
    %v5116 = vpack.c.b16 %v5029, %v5028
    %v5117 = vpack.c.b16 %v5031, %v5030
    %v5118 = vpack.c.b16 %v5033, %v5032
    %v5119 = vpack.c.b16 %v5035, %v5034
    %v5120 = vpack.c.b16 %v5037, %v5036
    %v5121 = vpack.c.b16 %v5039, %v5038
    %v5122 = vpack.c.b16 %v5041, %v5040
    %v5123 = vpack.c.b16 %v5043, %v5042
    %v5124 = vpack.c.b16 %v5045, %v5044
    %v5125 = vpack.c.b16 %v5047, %v5046
    %v5126 = vpack.c.b16 %v5049, %v5048
    %v5127 = vpack.c.b16 %v5051, %v5050
    %v5128 = vpack.c.b16 %v5053, %v5052
    %v5129 = vpack.c.b16 %v5055, %v5054
    %v5130 = vpack.c.b16 %v5057, %v5056
    %v5131 = vpack.c.b16 %v5059, %v5058
    %5204 = vmatprep.subr.bf16.mxu0 0
    %5205 = vmatpush1.bf16.msra.mxu0 %v5060
    %5206 = vmatprep.subr.bf16.mxu0 0
    %5207 = vmatpush1.bf16.msra.mxu0 %v5061
    %5208 = vmatprep.subr.bf16.mxu0 0
    %5209 = vmatpush1.bf16.msra.mxu0 %v5062
    %5210 = vmatprep.subr.bf16.mxu0 0
    %5211 = vmatpush1.bf16.msra.mxu0 %v5063
    %5212 = vmatprep.subr.bf16.mxu0 0
    %5213 = vmatpush1.bf16.msra.mxu0 %v5064
    %5214 = vmatprep.subr.bf16.mxu0 0
    %5215 = vmatpush1.bf16.msra.mxu0 %v5065
    %5216 = vmatprep.subr.bf16.mxu0 0
    %5217 = vmatpush1.bf16.msra.mxu0 %v5066
    %5218 = vmatprep.subr.bf16.mxu0 0
    %5219 = vmatpush1.bf16.msra.mxu0 %v5067
    %5220 = vmatprep.subr.bf16.mxu0 0
    %5221 = vmatpush1.bf16.msra.mxu0 %v5068
    %5222 = vmatprep.subr.bf16.mxu0 0
    %5223 = vmatpush1.bf16.msra.mxu0 %v5069
    %5224 = vmatprep.subr.bf16.mxu0 0
    %5225 = vmatpush1.bf16.msra.mxu0 %v5070
    %5226 = vmatprep.subr.bf16.mxu0 0
    %5227 = vmatpush1.bf16.msra.mxu0 %v5071
    %5228 = vmatprep.subr.bf16.mxu0 0
    %5229 = vmatpush1.bf16.msra.mxu0 %v5072
    %5230 = vmatprep.subr.bf16.mxu0 0
    %5231 = vmatpush1.bf16.msra.mxu0 %v5073
    %5232 = vmatprep.subr.bf16.mxu0 0
    %5233 = vmatpush1.bf16.msra.mxu0 %v5074
    %5234 = vmatprep.subr.bf16.mxu0 0
    %5235 = vmatpush1.bf16.msra.mxu0 %v5075
    %5236 = vmatprep.mubr.bf16.mxu0 %v4550
    %5237 = vmatmul.mubr.bf16.gmra.mrb[0].mxu0 %v4549
    %v5238 = vpop.f32.mrb[0].mxu0
    %v5239 = vadd.f32 %v4770, %v5238
    %v5240 = vpop.f32.mrb[0].mxu0
    %v5241 = vpop.f32.mrb[0].mxu0
    %v5242 = vadd.f32 %v4770, %v5241
    %v5243 = vpop.f32.mrb[0].mxu0
    %5244 = vmatprep.mubr.bf16.mxu0 %v4559
    %5245 = vmatmul.mubr.bf16.gmra.mrb[0].mxu0 %v4558
    %v5246 = vpop.f32.mrb[0].mxu0
    %v5247 = vadd.f32 %v4770, %v5246
    %v5248 = vpop.f32.mrb[0].mxu0
    %v5249 = vpop.f32.mrb[0].mxu0
    %v5250 = vadd.f32 %v4770, %v5249
    %v5251 = vpop.f32.mrb[0].mxu0
    %5252 = vmatprep.mubr.bf16.mxu0 %v4568
    %5253 = vmatmul.mubr.bf16.gmra.mrb[0].mxu0 %v4567
    %v5254 = vpop.f32.mrb[0].mxu0
    %v5255 = vadd.f32 %v4770, %v5254
    %v5256 = vpop.f32.mrb[0].mxu0
    %v5257 = vpop.f32.mrb[0].mxu0
    %v5258 = vadd.f32 %v4770, %v5257
    %v5259 = vpop.f32.mrb[0].mxu0
    %5260 = vmatprep.mubr.bf16.mxu0 %v4577
    %5261 = vmatmul.mubr.bf16.gmra.mrb[0].mxu0 %v4576
    %v5262 = vpop.f32.mrb[0].mxu0
    %v5263 = vadd.f32 %v4770, %v5262
    %v5264 = vpop.f32.mrb[0].mxu0
    %v5265 = vpop.f32.mrb[0].mxu0
    %v5266 = vadd.f32 %v4770, %v5265
    %v5267 = vpop.f32.mrb[0].mxu0
    %5268 = vmatprep.mubr.bf16.mxu0 %v4586
    %5269 = vmatmul.mubr.bf16.gmra.mrb[0].mxu0 %v4585
    %v5270 = vpop.f32.mrb[0].mxu0
    %v5271 = vadd.f32 %v4770, %v5270
    %v5272 = vpop.f32.mrb[0].mxu0
    %v5273 = vpop.f32.mrb[0].mxu0
    %v5274 = vadd.f32 %v4770, %v5273
    %v5275 = vpop.f32.mrb[0].mxu0
    %5276 = vmatprep.mubr.bf16.mxu0 %v4595
    %5277 = vmatmul.mubr.bf16.gmra.mrb[0].mxu0 %v4594
    %v5278 = vpop.f32.mrb[0].mxu0
    %v5279 = vadd.f32 %v4770, %v5278
    %v5280 = vpop.f32.mrb[0].mxu0
    %v5281 = vpop.f32.mrb[0].mxu0
    %v5282 = vadd.f32 %v4770, %v5281
    %v5283 = vpop.f32.mrb[0].mxu0
    %5284 = vmatprep.mubr.bf16.mxu0 %v4604
    %5285 = vmatmul.mubr.bf16.gmra.mrb[0].mxu0 %v4603
    %v5286 = vpop.f32.mrb[0].mxu0
    %v5287 = vadd.f32 %v4770, %v5286
    %v5288 = vpop.f32.mrb[0].mxu0
    %v5289 = vpop.f32.mrb[0].mxu0
    %v5290 = vadd.f32 %v4770, %v5289
    %v5291 = vpop.f32.mrb[0].mxu0
    %5292 = vmatprep.mubr.bf16.mxu0 %v4613
    %5293 = vmatmul.mubr.bf16.gmra.mrb[0].mxu0 %v4612
    %v5294 = vpop.f32.mrb[0].mxu0
    %v5295 = vadd.f32 %v4770, %v5294
    %v5296 = vpop.f32.mrb[0].mxu0
    %v5297 = vpop.f32.mrb[0].mxu0
    %v5298 = vadd.f32 %v4770, %v5297
    %v5299 = vpop.f32.mrb[0].mxu0
    %5300 = vdwg.mxu0
    %5301 = vmatprep.subr.bf16.mxu0 0
    %5302 = vmatpush1.bf16.msra.mxu0 %v5076
    %5303 = vmatprep.subr.bf16.mxu0 0
    %5304 = vmatpush1.bf16.msra.mxu0 %v5077
    %5305 = vmatprep.subr.bf16.mxu0 0
    %5306 = vmatpush1.bf16.msra.mxu0 %v5078
    %5307 = vmatprep.subr.bf16.mxu0 0
    %5308 = vmatpush1.bf16.msra.mxu0 %v5079
    %5309 = vmatprep.subr.bf16.mxu0 0
    %5310 = vmatpush1.bf16.msra.mxu0 %v5080
    %5311 = vmatprep.subr.bf16.mxu0 0
    %5312 = vmatpush1.bf16.msra.mxu0 %v5081
    %5313 = vmatprep.subr.bf16.mxu0 0
    %5314 = vmatpush1.bf16.msra.mxu0 %v5082
    %5315 = vmatprep.subr.bf16.mxu0 0
    %5316 = vmatpush1.bf16.msra.mxu0 %v5083
    %5317 = vmatprep.subr.bf16.mxu0 0
    %5318 = vmatpush1.bf16.msra.mxu0 %v5084
    %5319 = vmatprep.subr.bf16.mxu0 0
    %5320 = vmatpush1.bf16.msra.mxu0 %v5085
    %5321 = vmatprep.subr.bf16.mxu0 0
    %5322 = vmatpush1.bf16.msra.mxu0 %v5086
    %5323 = vmatprep.subr.bf16.mxu0 0
    %5324 = vmatpush1.bf16.msra.mxu0 %v5087
    %5325 = vmatprep.subr.bf16.mxu0 0
    %5326 = vmatpush1.bf16.msra.mxu0 %v5088
    %5327 = vmatprep.subr.bf16.mxu0 0
    %5328 = vmatpush1.bf16.msra.mxu0 %v5089
    %5329 = vmatprep.subr.bf16.mxu0 0
    %5330 = vmatpush1.bf16.msra.mxu0 %v5090
    %5331 = vmatprep.subr.bf16.mxu0 0
    %5332 = vmatpush1.bf16.msra.mxu0 %v5091
    %5333 = vmatprep.mubr.bf16.mxu0 %v4552
    %5334 = vmatmul.mubr.bf16.gmra.mrb[0].mxu0 %v4551
    %v5335 = vpop.f32.mrb[0].mxu0
    %v5336 = vadd.f32 %v5239, %v5335
    %v5337 = vpop.f32.mrb[0].mxu0
    %v5338 = vpop.f32.mrb[0].mxu0
    %v5339 = vadd.f32 %v5242, %v5338
    %v5340 = vpop.f32.mrb[0].mxu0
    %5341 = vmatprep.mubr.bf16.mxu0 %v4561
    %5342 = vmatmul.mubr.bf16.gmra.mrb[0].mxu0 %v4560
    %v5343 = vpop.f32.mrb[0].mxu0
    %v5344 = vadd.f32 %v5247, %v5343
    %v5345 = vpop.f32.mrb[0].mxu0
    %v5346 = vpop.f32.mrb[0].mxu0
    %v5347 = vadd.f32 %v5250, %v5346
    %v5348 = vpop.f32.mrb[0].mxu0
    %5349 = vmatprep.mubr.bf16.mxu0 %v4570
    %5350 = vmatmul.mubr.bf16.gmra.mrb[0].mxu0 %v4569
    %v5351 = vpop.f32.mrb[0].mxu0
    %v5352 = vadd.f32 %v5255, %v5351
    %v5353 = vpop.f32.mrb[0].mxu0
    %v5354 = vpop.f32.mrb[0].mxu0
    %v5355 = vadd.f32 %v5258, %v5354
    %v5356 = vpop.f32.mrb[0].mxu0
    %5357 = vmatprep.mubr.bf16.mxu0 %v4579
    %5358 = vmatmul.mubr.bf16.gmra.mrb[0].mxu0 %v4578
    %v5359 = vpop.f32.mrb[0].mxu0
    %v5360 = vadd.f32 %v5263, %v5359
    %v5361 = vpop.f32.mrb[0].mxu0
    %v5362 = vpop.f32.mrb[0].mxu0
    %v5363 = vadd.f32 %v5266, %v5362
    %v5364 = vpop.f32.mrb[0].mxu0
    %5365 = vmatprep.mubr.bf16.mxu0 %v4588
    %5366 = vmatmul.mubr.bf16.gmra.mrb[0].mxu0 %v4587
    %v5367 = vpop.f32.mrb[0].mxu0
    %v5368 = vadd.f32 %v5271, %v5367
    %v5369 = vpop.f32.mrb[0].mxu0
    %v5370 = vpop.f32.mrb[0].mxu0
    %v5371 = vadd.f32 %v5274, %v5370
    %v5372 = vpop.f32.mrb[0].mxu0
    %5373 = vmatprep.mubr.bf16.mxu0 %v4597
    %5374 = vmatmul.mubr.bf16.gmra.mrb[0].mxu0 %v4596
    %v5375 = vpop.f32.mrb[0].mxu0
    %v5376 = vadd.f32 %v5279, %v5375
    %v5377 = vpop.f32.mrb[0].mxu0
    %v5378 = vpop.f32.mrb[0].mxu0
    %v5379 = vadd.f32 %v5282, %v5378
    %v5380 = vpop.f32.mrb[0].mxu0
    %5381 = vmatprep.mubr.bf16.mxu0 %v4606
    %5382 = vmatmul.mubr.bf16.gmra.mrb[0].mxu0 %v4605
    %v5383 = vpop.f32.mrb[0].mxu0
    %v5384 = vadd.f32 %v5287, %v5383
    %v5385 = vpop.f32.mrb[0].mxu0
    %v5386 = vpop.f32.mrb[0].mxu0
    %v5387 = vadd.f32 %v5290, %v5386
    %v5388 = vpop.f32.mrb[0].mxu0
    %5389 = vmatprep.mubr.bf16.mxu0 %v4615
    %5390 = vmatmul.mubr.bf16.gmra.mrb[0].mxu0 %v4614
    %v5391 = vpop.f32.mrb[0].mxu0
    %v5392 = vadd.f32 %v5295, %v5391
    %v5393 = vpop.f32.mrb[0].mxu0
    %v5394 = vpop.f32.mrb[0].mxu0
    %v5395 = vadd.f32 %v5298, %v5394
    %v5396 = vpop.f32.mrb[0].mxu0
    %5397 = vdwg.mxu0
    %5398 = vmatprep.subr.bf16.mxu0 0
    %5399 = vmatpush1.bf16.msra.mxu0 %v5092
    %5400 = vmatprep.subr.bf16.mxu0 0
    %5401 = vmatpush1.bf16.msra.mxu0 %v5093
    %5402 = vmatprep.subr.bf16.mxu0 0
    %5403 = vmatpush1.bf16.msra.mxu0 %v5094
    %5404 = vmatprep.subr.bf16.mxu0 0
    %5405 = vmatpush1.bf16.msra.mxu0 %v5095
    %5406 = vmatprep.subr.bf16.mxu0 0
    %5407 = vmatpush1.bf16.msra.mxu0 %v5096
    %5408 = vmatprep.subr.bf16.mxu0 0
    %5409 = vmatpush1.bf16.msra.mxu0 %v5097
    %5410 = vmatprep.subr.bf16.mxu0 0
    %5411 = vmatpush1.bf16.msra.mxu0 %v5098
    %5412 = vmatprep.subr.bf16.mxu0 0
    %5413 = vmatpush1.bf16.msra.mxu0 %v5099
    %5414 = vmatprep.subr.bf16.mxu0 0
    %5415 = vmatpush1.bf16.msra.mxu0 %v5100
    %5416 = vmatprep.subr.bf16.mxu0 0
    %5417 = vmatpush1.bf16.msra.mxu0 %v5101
    %5418 = vmatprep.subr.bf16.mxu0 0
    %5419 = vmatpush1.bf16.msra.mxu0 %v5102
    %5420 = vmatprep.subr.bf16.mxu0 0
    %5421 = vmatpush1.bf16.msra.mxu0 %v5103
    %5422 = vmatprep.subr.bf16.mxu0 0
    %5423 = vmatpush1.bf16.msra.mxu0 %v5104
    %5424 = vmatprep.subr.bf16.mxu0 0
    %5425 = vmatpush1.bf16.msra.mxu0 %v5105
    %5426 = vmatprep.subr.bf16.mxu0 0
    %5427 = vmatpush1.bf16.msra.mxu0 %v5106
    %5428 = vmatprep.subr.bf16.mxu0 0
    %5429 = vmatpush1.bf16.msra.mxu0 %v5107
    %5430 = vmatprep.mubr.bf16.mxu0 %v4554
    %5431 = vmatmul.mubr.bf16.gmra.mrb[0].mxu0 %v4553
    %v5432 = vpop.f32.mrb[0].mxu0
    %v5433 = vadd.f32 %v5336, %v5432
    %v5434 = vpop.f32.mrb[0].mxu0
    %v5435 = vpop.f32.mrb[0].mxu0
    %v5436 = vadd.f32 %v5339, %v5435
    %v5437 = vpop.f32.mrb[0].mxu0
    %5438 = vmatprep.mubr.bf16.mxu0 %v4563
    %5439 = vmatmul.mubr.bf16.gmra.mrb[0].mxu0 %v4562
    %v5440 = vpop.f32.mrb[0].mxu0
    %v5441 = vadd.f32 %v5344, %v5440
    %v5442 = vpop.f32.mrb[0].mxu0
    %v5443 = vpop.f32.mrb[0].mxu0
    %v5444 = vadd.f32 %v5347, %v5443
    %v5445 = vpop.f32.mrb[0].mxu0
    %5446 = vmatprep.mubr.bf16.mxu0 %v4572
    %5447 = vmatmul.mubr.bf16.gmra.mrb[0].mxu0 %v4571
    %v5448 = vpop.f32.mrb[0].mxu0
    %v5449 = vadd.f32 %v5352, %v5448
    %v5450 = vpop.f32.mrb[0].mxu0
    %v5451 = vpop.f32.mrb[0].mxu0
    %v5452 = vadd.f32 %v5355, %v5451
    %v5453 = vpop.f32.mrb[0].mxu0
    %5454 = vmatprep.mubr.bf16.mxu0 %v4581
    %5455 = vmatmul.mubr.bf16.gmra.mrb[0].mxu0 %v4580
    %v5456 = vpop.f32.mrb[0].mxu0
    %v5457 = vadd.f32 %v5360, %v5456
    %v5458 = vpop.f32.mrb[0].mxu0
    %v5459 = vpop.f32.mrb[0].mxu0
    %v5460 = vadd.f32 %v5363, %v5459
    %v5461 = vpop.f32.mrb[0].mxu0
    %5462 = vmatprep.mubr.bf16.mxu0 %v4590
    %5463 = vmatmul.mubr.bf16.gmra.mrb[0].mxu0 %v4589
    %v5464 = vpop.f32.mrb[0].mxu0
    %v5465 = vadd.f32 %v5368, %v5464
    %v5466 = vpop.f32.mrb[0].mxu0
    %v5467 = vpop.f32.mrb[0].mxu0
    %v5468 = vadd.f32 %v5371, %v5467
    %v5469 = vpop.f32.mrb[0].mxu0
    %5470 = vmatprep.mubr.bf16.mxu0 %v4599
    %5471 = vmatmul.mubr.bf16.gmra.mrb[0].mxu0 %v4598
    %v5472 = vpop.f32.mrb[0].mxu0
    %v5473 = vadd.f32 %v5376, %v5472
    %v5474 = vpop.f32.mrb[0].mxu0
    %v5475 = vpop.f32.mrb[0].mxu0
    %v5476 = vadd.f32 %v5379, %v5475
    %v5477 = vpop.f32.mrb[0].mxu0
    %5478 = vmatprep.mubr.bf16.mxu0 %v4608
    %5479 = vmatmul.mubr.bf16.gmra.mrb[0].mxu0 %v4607
    %v5480 = vpop.f32.mrb[0].mxu0
    %v5481 = vadd.f32 %v5384, %v5480
    %v5482 = vpop.f32.mrb[0].mxu0
    %v5483 = vpop.f32.mrb[0].mxu0
    %v5484 = vadd.f32 %v5387, %v5483
    %v5485 = vpop.f32.mrb[0].mxu0
    %5486 = vmatprep.mubr.bf16.mxu0 %v4617
    %5487 = vmatmul.mubr.bf16.gmra.mrb[0].mxu0 %v4616
    %v5488 = vpop.f32.mrb[0].mxu0
    %v5489 = vadd.f32 %v5392, %v5488
    %v5490 = vpop.f32.mrb[0].mxu0
    %v5491 = vpop.f32.mrb[0].mxu0
    %v5492 = vadd.f32 %v5395, %v5491
    %v5493 = vpop.f32.mrb[0].mxu0
    %5494 = vdwg.mxu0
    %5495 = vmatprep.subr.bf16.mxu0 0
    %5496 = vmatpush1.bf16.msra.mxu0 %v5108
    %5497 = vmatprep.subr.bf16.mxu0 0
    %5498 = vmatpush1.bf16.msra.mxu0 %v5109
    %5499 = vmatprep.subr.bf16.mxu0 0
    %5500 = vmatpush1.bf16.msra.mxu0 %v5110
    %5501 = vmatprep.subr.bf16.mxu0 0
    %5502 = vmatpush1.bf16.msra.mxu0 %v5111
    %5503 = vmatprep.subr.bf16.mxu0 0
    %5504 = vmatpush1.bf16.msra.mxu0 %v5112
    %5505 = vmatprep.subr.bf16.mxu0 0
    %5506 = vmatpush1.bf16.msra.mxu0 %v5113
    %5507 = vmatprep.subr.bf16.mxu0 0
    %5508 = vmatpush1.bf16.msra.mxu0 %v5114
    %5509 = vmatprep.subr.bf16.mxu0 0
    %5510 = vmatpush1.bf16.msra.mxu0 %v5115
    %5511 = vmatprep.subr.bf16.mxu0 0
    %5512 = vmatpush1.bf16.msra.mxu0 %v5116
    %5513 = vmatprep.subr.bf16.mxu0 0
    %5514 = vmatpush1.bf16.msra.mxu0 %v5117
    %5515 = vmatprep.subr.bf16.mxu0 0
    %5516 = vmatpush1.bf16.msra.mxu0 %v5118
    %5517 = vmatprep.subr.bf16.mxu0 0
    %5518 = vmatpush1.bf16.msra.mxu0 %v5119
    %5519 = vmatprep.subr.bf16.mxu0 0
    %5520 = vmatpush1.bf16.msra.mxu0 %v5120
    %5521 = vmatprep.subr.bf16.mxu0 0
    %5522 = vmatpush1.bf16.msra.mxu0 %v5121
    %5523 = vmatprep.subr.bf16.mxu0 0
    %5524 = vmatpush1.bf16.msra.mxu0 %v5122
    %5525 = vmatprep.subr.bf16.mxu0 0
    %5526 = vmatpush1.bf16.msra.mxu0 %v5123
    %5527 = vmatprep.mubr.bf16.mxu0 %v4556
    %5528 = vmatmul.mubr.bf16.gmra.mrb[0].mxu0 %v4555
    %v5529 = vpop.f32.mrb[0].mxu0
    %v5530 = vadd.f32 %v5433, %v5529
    %v5531 = vpop.f32.mrb[0].mxu0
    %v5532 = vpop.f32.mrb[0].mxu0
    %v5533 = vadd.f32 %v5436, %v5532
    %v5534 = vpop.f32.mrb[0].mxu0
    %5535 = vmatprep.mubr.bf16.mxu0 %v4565
    %5536 = vmatmul.mubr.bf16.gmra.mrb[0].mxu0 %v4564
    %v5537 = vpop.f32.mrb[0].mxu0
    %v5538 = vadd.f32 %v5441, %v5537
    %v5539 = vpop.f32.mrb[0].mxu0
    %v5540 = vpop.f32.mrb[0].mxu0
    %v5541 = vadd.f32 %v5444, %v5540
    %v5542 = vpop.f32.mrb[0].mxu0
    %5543 = vmatprep.mubr.bf16.mxu0 %v4574
    %5544 = vmatmul.mubr.bf16.gmra.mrb[0].mxu0 %v4573
    %v5545 = vpop.f32.mrb[0].mxu0
    %v5546 = vadd.f32 %v5449, %v5545
    %v5547 = vpop.f32.mrb[0].mxu0
    %v5548 = vpop.f32.mrb[0].mxu0
    %v5549 = vadd.f32 %v5452, %v5548
    %v5550 = vpop.f32.mrb[0].mxu0
    %5551 = vmatprep.mubr.bf16.mxu0 %v4583
    %5552 = vmatmul.mubr.bf16.gmra.mrb[0].mxu0 %v4582
    %v5553 = vpop.f32.mrb[0].mxu0
    %v5554 = vadd.f32 %v5457, %v5553
    %v5555 = vpop.f32.mrb[0].mxu0
    %v5556 = vpop.f32.mrb[0].mxu0
    %v5557 = vadd.f32 %v5460, %v5556
    %v5558 = vpop.f32.mrb[0].mxu0
    %5559 = vmatprep.mubr.bf16.mxu0 %v4592
    %5560 = vmatmul.mubr.bf16.gmra.mrb[0].mxu0 %v4591
    %v5561 = vpop.f32.mrb[0].mxu0
    %v5562 = vadd.f32 %v5465, %v5561
    %v5563 = vpop.f32.mrb[0].mxu0
    %v5564 = vpop.f32.mrb[0].mxu0
    %v5565 = vadd.f32 %v5468, %v5564
    %v5566 = vpop.f32.mrb[0].mxu0
    %5567 = vmatprep.mubr.bf16.mxu0 %v4601
    %5568 = vmatmul.mubr.bf16.gmra.mrb[0].mxu0 %v4600
    %v5569 = vpop.f32.mrb[0].mxu0
    %v5570 = vadd.f32 %v5473, %v5569
    %v5571 = vpop.f32.mrb[0].mxu0
    %v5572 = vpop.f32.mrb[0].mxu0
    %v5573 = vadd.f32 %v5476, %v5572
    %v5574 = vpop.f32.mrb[0].mxu0
    %5575 = vmatprep.mubr.bf16.mxu0 %v4610
    %5576 = vmatmul.mubr.bf16.gmra.mrb[0].mxu0 %v4609
    %v5577 = vpop.f32.mrb[0].mxu0
    %v5578 = vadd.f32 %v5481, %v5577
    %v5579 = vpop.f32.mrb[0].mxu0
    %v5580 = vpop.f32.mrb[0].mxu0
    %v5581 = vadd.f32 %v5484, %v5580
    %v5582 = vpop.f32.mrb[0].mxu0
    %5583 = vmatprep.mubr.bf16.mxu0 %v4619
    %5584 = vmatmul.mubr.bf16.gmra.mrb[0].mxu0 %v4618
    %v5585 = vpop.f32.mrb[0].mxu0
    %v5586 = vadd.f32 %v5489, %v5585
    %v5587 = vpop.f32.mrb[0].mxu0
    %v5588 = vpop.f32.mrb[0].mxu0
    %v5589 = vadd.f32 %v5492, %v5588
    %v5590 = vpop.f32.mrb[0].mxu0
    %5591 = vdwg.mxu0
    %5592 = vmatprep.subr.bf16.mxu0 0
    %5593 = vmatpush1.bf16.msra.mxu0 %v5124
    %5594 = vmatprep.subr.bf16.mxu0 0
    %5595 = vmatpush1.bf16.msra.mxu0 %v5125
    %5596 = vmatprep.subr.bf16.mxu0 0
    %5597 = vmatpush1.bf16.msra.mxu0 %v5126
    %5598 = vmatprep.subr.bf16.mxu0 0
    %5599 = vmatpush1.bf16.msra.mxu0 %v5127
    %5600 = vmatprep.subr.bf16.mxu0 0
    %5601 = vmatpush1.bf16.msra.mxu0 %v5128
    %5602 = vmatprep.subr.bf16.mxu0 0
    %5603 = vmatpush1.bf16.msra.mxu0 %v5129
    %5604 = vmatprep.subr.bf16.mxu0 0
    %5605 = vmatpush1.bf16.msra.mxu0 %v5130
    %5606 = vmatprep.subr.bf16.mxu0 0
    %5607 = vmatpush1.bf16.msra.mxu0 %v5131
    %5608 = vmatprep.subr.bf16.mxu0 0
    %5609 = vmatpush1.bf16.msra.mxu0 0
    %5610 = vmatprep.subr.bf16.mxu0 0
    %5611 = vmatpush1.bf16.msra.mxu0 0
    %5612 = vmatprep.subr.bf16.mxu0 0
    %5613 = vmatpush1.bf16.msra.mxu0 0
    %5614 = vmatprep.subr.bf16.mxu0 0
    %5615 = vmatpush1.bf16.msra.mxu0 0
    %5616 = vmatprep.subr.bf16.mxu0 0
    %5617 = vmatpush1.bf16.msra.mxu0 0
    %5618 = vmatprep.subr.bf16.mxu0 0
    %5619 = vmatpush1.bf16.msra.mxu0 0
    %5620 = vmatprep.subr.bf16.mxu0 0
    %5621 = vmatpush1.bf16.msra.mxu0 0
    %5622 = vmatprep.subr.bf16.mxu0 0
    %5623 = vmatpush1.bf16.msra.mxu0 0
    %5624 = vmatprep.mubr.bf16.mxu0 0
    %5625 = vmatmul.mubr.bf16.gmra.mrb[0].mxu0 %v4557
    %v5626 = vpop.f32.mrb[0].mxu0
    %v5627 = vadd.f32 %v5530, %v5626
    %v5628 = vpop.f32.mrb[0].mxu0
    %v5629 = vpop.f32.mrb[0].mxu0
    %v5630 = vadd.f32 %v5533, %v5629
    %v5631 = vpop.f32.mrb[0].mxu0
    %5632 = vmatprep.mubr.bf16.mxu0 0
    %5633 = vmatmul.mubr.bf16.gmra.mrb[0].mxu0 %v4566
    %v5634 = vpop.f32.mrb[0].mxu0
    %v5635 = vadd.f32 %v5538, %v5634
    %v5636 = vpop.f32.mrb[0].mxu0
    %v5637 = vpop.f32.mrb[0].mxu0
    %v5638 = vadd.f32 %v5541, %v5637
    %v5639 = vpop.f32.mrb[0].mxu0
    %5640 = vmatprep.mubr.bf16.mxu0 0
    %5641 = vmatmul.mubr.bf16.gmra.mrb[0].mxu0 %v4575
    %v5642 = vpop.f32.mrb[0].mxu0
    %v5643 = vadd.f32 %v5546, %v5642
    %v5644 = vpop.f32.mrb[0].mxu0
    %v5645 = vpop.f32.mrb[0].mxu0
    %v5646 = vadd.f32 %v5549, %v5645
    %v5647 = vpop.f32.mrb[0].mxu0
    %5648 = vmatprep.mubr.bf16.mxu0 0
    %5649 = vmatmul.mubr.bf16.gmra.mrb[0].mxu0 %v4584
    %v5650 = vpop.f32.mrb[0].mxu0
    %v5651 = vadd.f32 %v5554, %v5650
    %v5652 = vpop.f32.mrb[0].mxu0
    %v5653 = vpop.f32.mrb[0].mxu0
    %v5654 = vadd.f32 %v5557, %v5653
    %v5655 = vpop.f32.mrb[0].mxu0
    %5656 = vmatprep.mubr.bf16.mxu0 0
    %5657 = vmatmul.mubr.bf16.gmra.mrb[0].mxu0 %v4593
    %v5658 = vpop.f32.mrb[0].mxu0
    %v5659 = vadd.f32 %v5562, %v5658
    %v5660 = vpop.f32.mrb[0].mxu0
    %v5661 = vpop.f32.mrb[0].mxu0
    %v5662 = vadd.f32 %v5565, %v5661
    %v5663 = vpop.f32.mrb[0].mxu0
    %5664 = vmatprep.mubr.bf16.mxu0 0
    %5665 = vmatmul.mubr.bf16.gmra.mrb[0].mxu0 %v4602
    %v5666 = vpop.f32.mrb[0].mxu0
    %v5667 = vadd.f32 %v5570, %v5666
    %v5668 = vpop.f32.mrb[0].mxu0
    %v5669 = vpop.f32.mrb[0].mxu0
    %v5670 = vadd.f32 %v5573, %v5669
    %v5671 = vpop.f32.mrb[0].mxu0
    %5672 = vmatprep.mubr.bf16.mxu0 0
    %5673 = vmatmul.mubr.bf16.gmra.mrb[0].mxu0 %v4611
    %v5674 = vpop.f32.mrb[0].mxu0
    %v5675 = vadd.f32 %v5578, %v5674
    %v5676 = vpop.f32.mrb[0].mxu0
    %v5677 = vpop.f32.mrb[0].mxu0
    %v5678 = vadd.f32 %v5581, %v5677
    %v5679 = vpop.f32.mrb[0].mxu0
    %5680 = vmatprep.mubr.bf16.mxu0 0
    %5681 = vmatmul.mubr.bf16.gmra.mrb[0].mxu0 %v4620
    %v5682 = vpop.f32.mrb[0].mxu0
    %v5683 = vadd.f32 %v5586, %v5682
    %v5684 = vpop.f32.mrb[0].mxu0
    %v5685 = vpop.f32.mrb[0].mxu0
    %v5686 = vadd.f32 %v5589, %v5685
    %v5687 = vpop.f32.mrb[0].mxu0
    %5688 = vdwg.mxu0
    %v5689 = vld [vmem:[%s0] sm:$0xf]
    %v5690 = vld [vmem:[%s0 + $0x8] sm:$0xf]
    %v5691 = vld [vmem:[%s0 + $0x10] sm:$0xf]
    %v5692 = vld [vmem:[%s0 + $0x18] sm:$0xf]
    %v5693 = vld [vmem:[%s0 + $0x20] sm:$0xf]
    %v5694 = vld [vmem:[%s0 + $0x28] sm:$0xf]
    %v5695 = vld [vmem:[%s0 + $0x30] sm:$0xf]
    %v5696 = vld [vmem:[%s0 + $0x38] sm:$0xf]
    %v5697 = vld [vmem:[%s0 + $0x120] sm:$0xf]
    %v5698 = vld [vmem:[%s0 + $0x128] sm:$0xf]
    %v5699 = vld [vmem:[%s0 + $0x130] sm:$0xf]
    %v5700 = vld [vmem:[%s0 + $0x138] sm:$0xf]
    %v5701 = vld [vmem:[%s0 + $0x140] sm:$0xf]
    %v5702 = vld [vmem:[%s0 + $0x148] sm:$0xf]
    %v5703 = vld [vmem:[%s0 + $0x150] sm:$0xf]
    %v5704 = vld [vmem:[%s0 + $0x158] sm:$0xf]
    %v5705 = vld [vmem:[%s108] sm:$0xf]
    %v5706 = vld [vmem:[%s108 + $0x8] sm:$0xf]
    %v5707 = vld [vmem:[%s108 + $0x10] sm:$0xf]
    %v5708 = vld [vmem:[%s108 + $0x18] sm:$0xf]
    %v5709 = vld [vmem:[%s108 + $0x20] sm:$0xf]
    %v5710 = vld [vmem:[%s108 + $0x28] sm:$0xf]
    %v5711 = vld [vmem:[%s108 + $0x30] sm:$0xf]
    %v5712 = vld [vmem:[%s108 + $0x38] sm:$0xf]
    %v5713 = vld [vmem:[%s108 + $0x120] sm:$0xf]
    %v5714 = vld [vmem:[%s108 + $0x128] sm:$0xf]
    %v5715 = vld [vmem:[%s108 + $0x130] sm:$0xf]
    %v5716 = vld [vmem:[%s108 + $0x138] sm:$0xf]
    %v5717 = vld [vmem:[%s108 + $0x140] sm:$0xf]
    %v5718 = vld [vmem:[%s108 + $0x148] sm:$0xf]
    %v5719 = vld [vmem:[%s108 + $0x150] sm:$0xf]
    %v5720 = vld [vmem:[%s108 + $0x158] sm:$0xf]
    %v5721 = vmax.bf16 %v5689, %v5705
    %v5722 = vmax.bf16 %v5690, %v5706
    %v5723 = vmax.bf16 %v5691, %v5707
    %v5724 = vmax.bf16 %v5692, %v5708
    %v5725 = vmax.bf16 %v5693, %v5709
    %v5726 = vmax.bf16 %v5694, %v5710
    %v5727 = vmax.bf16 %v5695, %v5711
    %v5728 = vmax.bf16 %v5696, %v5712
    %v5729 = vmax.bf16 %v5697, %v5713
    %v5730 = vmax.bf16 %v5698, %v5714
    %v5731 = vmax.bf16 %v5699, %v5715
    %v5732 = vmax.bf16 %v5700, %v5716
    %v5733 = vmax.bf16 %v5701, %v5717
    %v5734 = vmax.bf16 %v5702, %v5718
    %v5735 = vmax.bf16 %v5703, %v5719
    %v5736 = vmax.bf16 %v5704, %v5720
    %v5737 = vld [vmem:[%s0 + $0x4] sm:$0x1]
    %v5738 = vld [vmem:[%s0 + $0xc] sm:$0x1]
    %v5739 = vld [vmem:[%s0 + $0x14] sm:$0x1]
    %v5740 = vld [vmem:[%s0 + $0x1c] sm:$0x1]
    %v5741 = vld [vmem:[%s0 + $0x24] sm:$0x1]
    %v5742 = vld [vmem:[%s0 + $0x2c] sm:$0x1]
    %v5743 = vld [vmem:[%s0 + $0x34] sm:$0x1]
    %v5744 = vld [vmem:[%s0 + $0x3c] sm:$0x1]
    %v5745 = vld [vmem:[%s0 + $0x124] sm:$0x1]
    %v5746 = vld [vmem:[%s0 + $0x12c] sm:$0x1]
    %v5747 = vld [vmem:[%s0 + $0x134] sm:$0x1]
    %v5748 = vld [vmem:[%s0 + $0x13c] sm:$0x1]
    %v5749 = vld [vmem:[%s0 + $0x144] sm:$0x1]
    %v5750 = vld [vmem:[%s0 + $0x14c] sm:$0x1]
    %v5751 = vld [vmem:[%s0 + $0x154] sm:$0x1]
    %v5752 = vld [vmem:[%s0 + $0x15c] sm:$0x1]
    %v5754 = vshrl.u32 %v5689, 16
    %v5756 = vrot.slane %v5754, 4
    %v5757 = vshll.u32 %v5689, 16
    %v5759 = vrot.slane %v5757, 5
    %v5760 = vor.u32 %v5756, %v5759
    %v5761 = vrot.slane %v5760, 4
    %v5763 = vshll.u32 %v5737, 16
    %v5765 = vrot.slane %v5763, 5
    %v5766 = vsel %vm215, %v5761, %v5765
    %v5768 = vshrl.u32 %v5690, 16
    %v5770 = vrot.slane %v5768, 4
    %v5771 = vshll.u32 %v5690, 16
    %v5773 = vrot.slane %v5771, 5
    %v5774 = vor.u32 %v5770, %v5773
    %v5775 = vrot.slane %v5774, 4
    %v5777 = vshll.u32 %v5738, 16
    %v5779 = vrot.slane %v5777, 5
    %v5780 = vsel %vm215, %v5775, %v5779
    %v5782 = vshrl.u32 %v5691, 16
    %v5784 = vrot.slane %v5782, 4
    %v5785 = vshll.u32 %v5691, 16
    %v5787 = vrot.slane %v5785, 5
    %v5788 = vor.u32 %v5784, %v5787
    %v5789 = vrot.slane %v5788, 4
    %v5791 = vshll.u32 %v5739, 16
    %v5793 = vrot.slane %v5791, 5
    %v5794 = vsel %vm215, %v5789, %v5793
    %v5796 = vshrl.u32 %v5692, 16
    %v5798 = vrot.slane %v5796, 4
    %v5799 = vshll.u32 %v5692, 16
    %v5801 = vrot.slane %v5799, 5
    %v5802 = vor.u32 %v5798, %v5801
    %v5803 = vrot.slane %v5802, 4
    %v5805 = vshll.u32 %v5740, 16
    %v5807 = vrot.slane %v5805, 5
    %v5808 = vsel %vm215, %v5803, %v5807
    %v5810 = vshrl.u32 %v5693, 16
    %v5812 = vrot.slane %v5810, 4
    %v5813 = vshll.u32 %v5693, 16
    %v5815 = vrot.slane %v5813, 5
    %v5816 = vor.u32 %v5812, %v5815
    %v5817 = vrot.slane %v5816, 4
    %v5819 = vshll.u32 %v5741, 16
    %v5821 = vrot.slane %v5819, 5
    %v5822 = vsel %vm215, %v5817, %v5821
    %v5824 = vshrl.u32 %v5694, 16
    %v5826 = vrot.slane %v5824, 4
    %v5827 = vshll.u32 %v5694, 16
    %v5829 = vrot.slane %v5827, 5
    %v5830 = vor.u32 %v5826, %v5829
    %v5831 = vrot.slane %v5830, 4
    %v5833 = vshll.u32 %v5742, 16
    %v5835 = vrot.slane %v5833, 5
    %v5836 = vsel %vm215, %v5831, %v5835
    %v5838 = vshrl.u32 %v5695, 16
    %v5840 = vrot.slane %v5838, 4
    %v5841 = vshll.u32 %v5695, 16
    %v5843 = vrot.slane %v5841, 5
    %v5844 = vor.u32 %v5840, %v5843
    %v5845 = vrot.slane %v5844, 4
    %v5847 = vshll.u32 %v5743, 16
    %v5849 = vrot.slane %v5847, 5
    %v5850 = vsel %vm215, %v5845, %v5849
    %v5852 = vshrl.u32 %v5696, 16
    %v5854 = vrot.slane %v5852, 4
    %v5855 = vshll.u32 %v5696, 16
    %v5857 = vrot.slane %v5855, 5
    %v5858 = vor.u32 %v5854, %v5857
    %v5859 = vrot.slane %v5858, 4
    %v5861 = vshll.u32 %v5744, 16
    %v5863 = vrot.slane %v5861, 5
    %v5864 = vsel %vm215, %v5859, %v5863
    %v5866 = vshrl.u32 %v5697, 16
    %v5868 = vrot.slane %v5866, 4
    %v5869 = vshll.u32 %v5697, 16
    %v5871 = vrot.slane %v5869, 5
    %v5872 = vor.u32 %v5868, %v5871
    %v5873 = vrot.slane %v5872, 4
    %v5875 = vshll.u32 %v5745, 16
    %v5877 = vrot.slane %v5875, 5
    %v5878 = vsel %vm215, %v5873, %v5877
    %v5880 = vshrl.u32 %v5698, 16
    %v5882 = vrot.slane %v5880, 4
    %v5883 = vshll.u32 %v5698, 16
    %v5885 = vrot.slane %v5883, 5
    %v5886 = vor.u32 %v5882, %v5885
    %v5887 = vrot.slane %v5886, 4
    %v5889 = vshll.u32 %v5746, 16
    %v5891 = vrot.slane %v5889, 5
    %v5892 = vsel %vm215, %v5887, %v5891
    %v5894 = vshrl.u32 %v5699, 16
    %v5896 = vrot.slane %v5894, 4
    %v5897 = vshll.u32 %v5699, 16
    %v5899 = vrot.slane %v5897, 5
    %v5900 = vor.u32 %v5896, %v5899
    %v5901 = vrot.slane %v5900, 4
    %v5903 = vshll.u32 %v5747, 16
    %v5905 = vrot.slane %v5903, 5
    %v5906 = vsel %vm215, %v5901, %v5905
    %v5908 = vshrl.u32 %v5700, 16
    %v5910 = vrot.slane %v5908, 4
    %v5911 = vshll.u32 %v5700, 16
    %v5913 = vrot.slane %v5911, 5
    %v5914 = vor.u32 %v5910, %v5913
    %v5915 = vrot.slane %v5914, 4
    %v5917 = vshll.u32 %v5748, 16
    %v5919 = vrot.slane %v5917, 5
    %v5920 = vsel %vm215, %v5915, %v5919
    %v5922 = vshrl.u32 %v5701, 16
    %v5924 = vrot.slane %v5922, 4
    %v5925 = vshll.u32 %v5701, 16
    %v5927 = vrot.slane %v5925, 5
    %v5928 = vor.u32 %v5924, %v5927
    %v5929 = vrot.slane %v5928, 4
    %v5931 = vshll.u32 %v5749, 16
    %v5933 = vrot.slane %v5931, 5
    %v5934 = vsel %vm215, %v5929, %v5933
    %v5936 = vshrl.u32 %v5702, 16
    %v5938 = vrot.slane %v5936, 4
    %v5939 = vshll.u32 %v5702, 16
    %v5941 = vrot.slane %v5939, 5
    %v5942 = vor.u32 %v5938, %v5941
    %v5943 = vrot.slane %v5942, 4
    %v5945 = vshll.u32 %v5750, 16
    %v5947 = vrot.slane %v5945, 5
    %v5948 = vsel %vm215, %v5943, %v5947
    %v5950 = vshrl.u32 %v5703, 16
    %v5952 = vrot.slane %v5950, 4
    %v5953 = vshll.u32 %v5703, 16
    %v5955 = vrot.slane %v5953, 5
    %v5956 = vor.u32 %v5952, %v5955
    %v5957 = vrot.slane %v5956, 4
    %v5959 = vshll.u32 %v5751, 16
    %v5961 = vrot.slane %v5959, 5
    %v5962 = vsel %vm215, %v5957, %v5961
    %v5964 = vshrl.u32 %v5704, 16
    %v5966 = vrot.slane %v5964, 4
    %v5967 = vshll.u32 %v5704, 16
    %v5969 = vrot.slane %v5967, 5
    %v5970 = vor.u32 %v5966, %v5969
    %v5971 = vrot.slane %v5970, 4
    %v5973 = vshll.u32 %v5752, 16
    %v5975 = vrot.slane %v5973, 5
    %v5976 = vsel %vm215, %v5971, %v5975
    %v5993 = vmax.bf16 %v5721, %v5766
    %v5994 = vmax.bf16 %v5722, %v5780
    %v5995 = vmax.bf16 %v5723, %v5794
    %v5996 = vmax.bf16 %v5724, %v5808
    %v5997 = vmax.bf16 %v5725, %v5822
    %v5998 = vmax.bf16 %v5726, %v5836
    %v5999 = vmax.bf16 %v5727, %v5850
    %v6000 = vmax.bf16 %v5728, %v5864
    %v6001 = vmax.bf16 %v5729, %v5878
    %v6002 = vmax.bf16 %v5730, %v5892
    %v6003 = vmax.bf16 %v5731, %v5906
    %v6004 = vmax.bf16 %v5732, %v5920
    %v6005 = vmax.bf16 %v5733, %v5934
    %v6006 = vmax.bf16 %v5734, %v5948
    %v6007 = vmax.bf16 %v5735, %v5962
    %v6008 = vmax.bf16 %v5736, %v5976
    %v6009 = vld [vmem:[%s480] sm:$0xf]
    %v6010 = vld [vmem:[%s480 + $0x8] sm:$0xf]
    %v6011 = vld [vmem:[%s480 + $0x10] sm:$0xf]
    %v6012 = vld [vmem:[%s480 + $0x18] sm:$0xf]
    %v6013 = vld [vmem:[%s480 + $0x20] sm:$0xf]
    %v6014 = vld [vmem:[%s480 + $0x28] sm:$0xf]
    %v6015 = vld [vmem:[%s480 + $0x30] sm:$0xf]
    %v6016 = vld [vmem:[%s480 + $0x38] sm:$0xf]
    %v6017 = vld [vmem:[%s480 + $0x120] sm:$0xf]
    %v6018 = vld [vmem:[%s480 + $0x128] sm:$0xf]
    %v6019 = vld [vmem:[%s480 + $0x130] sm:$0xf]
    %v6020 = vld [vmem:[%s480 + $0x138] sm:$0xf]
    %v6021 = vld [vmem:[%s480 + $0x140] sm:$0xf]
    %v6022 = vld [vmem:[%s480 + $0x148] sm:$0xf]
    %v6023 = vld [vmem:[%s480 + $0x150] sm:$0xf]
    %v6024 = vld [vmem:[%s480 + $0x158] sm:$0xf]
    %v6025 = vmax.bf16 %v5993, %v6009
    %v6026 = vmax.bf16 %v5994, %v6010
    %v6027 = vmax.bf16 %v5995, %v6011
    %v6028 = vmax.bf16 %v5996, %v6012
    %v6029 = vmax.bf16 %v5997, %v6013
    %v6030 = vmax.bf16 %v5998, %v6014
    %v6031 = vmax.bf16 %v5999, %v6015
    %v6032 = vmax.bf16 %v6000, %v6016
    %v6033 = vmax.bf16 %v6001, %v6017
    %v6034 = vmax.bf16 %v6002, %v6018
    %v6035 = vmax.bf16 %v6003, %v6019
    %v6036 = vmax.bf16 %v6004, %v6020
    %v6037 = vmax.bf16 %v6005, %v6021
    %v6038 = vmax.bf16 %v6006, %v6022
    %v6039 = vmax.bf16 %v6007, %v6023
    %v6040 = vmax.bf16 %v6008, %v6024
    %v6041 = vld [vmem:[%s553] sm:$0xf]
    %v6042 = vld [vmem:[%s553 + $0x8] sm:$0xf]
    %v6043 = vld [vmem:[%s553 + $0x10] sm:$0xf]
    %v6044 = vld [vmem:[%s553 + $0x18] sm:$0xf]
    %v6045 = vld [vmem:[%s553 + $0x20] sm:$0xf]
    %v6046 = vld [vmem:[%s553 + $0x28] sm:$0xf]
    %v6047 = vld [vmem:[%s553 + $0x30] sm:$0xf]
    %v6048 = vld [vmem:[%s553 + $0x38] sm:$0xf]
    %v6049 = vld [vmem:[%s553 + $0x120] sm:$0xf]
    %v6050 = vld [vmem:[%s553 + $0x128] sm:$0xf]
    %v6051 = vld [vmem:[%s553 + $0x130] sm:$0xf]
    %v6052 = vld [vmem:[%s553 + $0x138] sm:$0xf]
    %v6053 = vld [vmem:[%s553 + $0x140] sm:$0xf]
    %v6054 = vld [vmem:[%s553 + $0x148] sm:$0xf]
    %v6055 = vld [vmem:[%s553 + $0x150] sm:$0xf]
    %v6056 = vld [vmem:[%s553 + $0x158] sm:$0xf]
    %v6057 = vmax.bf16 %v6025, %v6041
    %v6058 = vmax.bf16 %v6026, %v6042
    %v6059 = vmax.bf16 %v6027, %v6043
    %v6060 = vmax.bf16 %v6028, %v6044
    %v6061 = vmax.bf16 %v6029, %v6045
    %v6062 = vmax.bf16 %v6030, %v6046
    %v6063 = vmax.bf16 %v6031, %v6047
    %v6064 = vmax.bf16 %v6032, %v6048
    %v6065 = vmax.bf16 %v6033, %v6049
    %v6066 = vmax.bf16 %v6034, %v6050
    %v6067 = vmax.bf16 %v6035, %v6051
    %v6068 = vmax.bf16 %v6036, %v6052
    %v6069 = vmax.bf16 %v6037, %v6053
    %v6070 = vmax.bf16 %v6038, %v6054
    %v6071 = vmax.bf16 %v6039, %v6055
    %v6072 = vmax.bf16 %v6040, %v6056
    %v6073 = vld [vmem:[%s480 + $0x4] sm:$0x1]
    %v6074 = vld [vmem:[%s480 + $0xc] sm:$0x1]
    %v6075 = vld [vmem:[%s480 + $0x14] sm:$0x1]
    %v6076 = vld [vmem:[%s480 + $0x1c] sm:$0x1]
    %v6077 = vld [vmem:[%s480 + $0x24] sm:$0x1]
    %v6078 = vld [vmem:[%s480 + $0x2c] sm:$0x1]
    %v6079 = vld [vmem:[%s480 + $0x34] sm:$0x1]
    %v6080 = vld [vmem:[%s480 + $0x3c] sm:$0x1]
    %v6081 = vld [vmem:[%s480 + $0x124] sm:$0x1]
    %v6082 = vld [vmem:[%s480 + $0x12c] sm:$0x1]
    %v6083 = vld [vmem:[%s480 + $0x134] sm:$0x1]
    %v6084 = vld [vmem:[%s480 + $0x13c] sm:$0x1]
    %v6085 = vld [vmem:[%s480 + $0x144] sm:$0x1]
    %v6086 = vld [vmem:[%s480 + $0x14c] sm:$0x1]
    %v6087 = vld [vmem:[%s480 + $0x154] sm:$0x1]
    %v6088 = vld [vmem:[%s480 + $0x15c] sm:$0x1]
    %v6090 = vshrl.u32 %v6009, 16
    %v6092 = vrot.slane %v6090, 4
    %v6093 = vshll.u32 %v6009, 16
    %v6095 = vrot.slane %v6093, 5
    %v6096 = vor.u32 %v6092, %v6095
    %v6097 = vrot.slane %v6096, 4
    %v6099 = vshll.u32 %v6073, 16
    %v6101 = vrot.slane %v6099, 5
    %v6102 = vsel %vm215, %v6097, %v6101
    %v6104 = vshrl.u32 %v6010, 16
    %v6106 = vrot.slane %v6104, 4
    %v6107 = vshll.u32 %v6010, 16
    %v6109 = vrot.slane %v6107, 5
    %v6110 = vor.u32 %v6106, %v6109
    %v6111 = vrot.slane %v6110, 4
    %v6113 = vshll.u32 %v6074, 16
    %v6115 = vrot.slane %v6113, 5
    %v6116 = vsel %vm215, %v6111, %v6115
    %v6118 = vshrl.u32 %v6011, 16
    %v6120 = vrot.slane %v6118, 4
    %v6121 = vshll.u32 %v6011, 16
    %v6123 = vrot.slane %v6121, 5
    %v6124 = vor.u32 %v6120, %v6123
    %v6125 = vrot.slane %v6124, 4
    %v6127 = vshll.u32 %v6075, 16
    %v6129 = vrot.slane %v6127, 5
    %v6130 = vsel %vm215, %v6125, %v6129
    %v6132 = vshrl.u32 %v6012, 16
    %v6134 = vrot.slane %v6132, 4
    %v6135 = vshll.u32 %v6012, 16
    %v6137 = vrot.slane %v6135, 5
    %v6138 = vor.u32 %v6134, %v6137
    %v6139 = vrot.slane %v6138, 4
    %v6141 = vshll.u32 %v6076, 16
    %v6143 = vrot.slane %v6141, 5
    %v6144 = vsel %vm215, %v6139, %v6143
    %v6146 = vshrl.u32 %v6013, 16
    %v6148 = vrot.slane %v6146, 4
    %v6149 = vshll.u32 %v6013, 16
    %v6151 = vrot.slane %v6149, 5
    %v6152 = vor.u32 %v6148, %v6151
    %v6153 = vrot.slane %v6152, 4
    %v6155 = vshll.u32 %v6077, 16
    %v6157 = vrot.slane %v6155, 5
    %v6158 = vsel %vm215, %v6153, %v6157
    %v6160 = vshrl.u32 %v6014, 16
    %v6162 = vrot.slane %v6160, 4
    %v6163 = vshll.u32 %v6014, 16
    %v6165 = vrot.slane %v6163, 5
    %v6166 = vor.u32 %v6162, %v6165
    %v6167 = vrot.slane %v6166, 4
    %v6169 = vshll.u32 %v6078, 16
    %v6171 = vrot.slane %v6169, 5
    %v6172 = vsel %vm215, %v6167, %v6171
    %v6174 = vshrl.u32 %v6015, 16
    %v6176 = vrot.slane %v6174, 4
    %v6177 = vshll.u32 %v6015, 16
    %v6179 = vrot.slane %v6177, 5
    %v6180 = vor.u32 %v6176, %v6179
    %v6181 = vrot.slane %v6180, 4
    %v6183 = vshll.u32 %v6079, 16
    %v6185 = vrot.slane %v6183, 5
    %v6186 = vsel %vm215, %v6181, %v6185
    %v6188 = vshrl.u32 %v6016, 16
    %v6190 = vrot.slane %v6188, 4
    %v6191 = vshll.u32 %v6016, 16
    %v6193 = vrot.slane %v6191, 5
    %v6194 = vor.u32 %v6190, %v6193
    %v6195 = vrot.slane %v6194, 4
    %v6197 = vshll.u32 %v6080, 16
    %v6199 = vrot.slane %v6197, 5
    %v6200 = vsel %vm215, %v6195, %v6199
    %v6202 = vshrl.u32 %v6017, 16
    %v6204 = vrot.slane %v6202, 4
    %v6205 = vshll.u32 %v6017, 16
    %v6207 = vrot.slane %v6205, 5
    %v6208 = vor.u32 %v6204, %v6207
    %v6209 = vrot.slane %v6208, 4
    %v6211 = vshll.u32 %v6081, 16
    %v6213 = vrot.slane %v6211, 5
    %v6214 = vsel %vm215, %v6209, %v6213
    %v6216 = vshrl.u32 %v6018, 16
    %v6218 = vrot.slane %v6216, 4
    %v6219 = vshll.u32 %v6018, 16
    %v6221 = vrot.slane %v6219, 5
    %v6222 = vor.u32 %v6218, %v6221
    %v6223 = vrot.slane %v6222, 4
    %v6225 = vshll.u32 %v6082, 16
    %v6227 = vrot.slane %v6225, 5
    %v6228 = vsel %vm215, %v6223, %v6227
    %v6230 = vshrl.u32 %v6019, 16
    %v6232 = vrot.slane %v6230, 4
    %v6233 = vshll.u32 %v6019, 16
    %v6235 = vrot.slane %v6233, 5
    %v6236 = vor.u32 %v6232, %v6235
    %v6237 = vrot.slane %v6236, 4
    %v6239 = vshll.u32 %v6083, 16
    %v6241 = vrot.slane %v6239, 5
    %v6242 = vsel %vm215, %v6237, %v6241
    %v6244 = vshrl.u32 %v6020, 16
    %v6246 = vrot.slane %v6244, 4
    %v6247 = vshll.u32 %v6020, 16
    %v6249 = vrot.slane %v6247, 5
    %v6250 = vor.u32 %v6246, %v6249
    %v6251 = vrot.slane %v6250, 4
    %v6253 = vshll.u32 %v6084, 16
    %v6255 = vrot.slane %v6253, 5
    %v6256 = vsel %vm215, %v6251, %v6255
    %v6258 = vshrl.u32 %v6021, 16
    %v6260 = vrot.slane %v6258, 4
    %v6261 = vshll.u32 %v6021, 16
    %v6263 = vrot.slane %v6261, 5
    %v6264 = vor.u32 %v6260, %v6263
    %v6265 = vrot.slane %v6264, 4
    %v6267 = vshll.u32 %v6085, 16
    %v6269 = vrot.slane %v6267, 5
    %v6270 = vsel %vm215, %v6265, %v6269
    %v6272 = vshrl.u32 %v6022, 16
    %v6274 = vrot.slane %v6272, 4
    %v6275 = vshll.u32 %v6022, 16
    %v6277 = vrot.slane %v6275, 5
    %v6278 = vor.u32 %v6274, %v6277
    %v6279 = vrot.slane %v6278, 4
    %v6281 = vshll.u32 %v6086, 16
    %v6283 = vrot.slane %v6281, 5
    %v6284 = vsel %vm215, %v6279, %v6283
    %v6286 = vshrl.u32 %v6023, 16
    %v6288 = vrot.slane %v6286, 4
    %v6289 = vshll.u32 %v6023, 16
    %v6291 = vrot.slane %v6289, 5
    %v6292 = vor.u32 %v6288, %v6291
    %v6293 = vrot.slane %v6292, 4
    %v6295 = vshll.u32 %v6087, 16
    %v6297 = vrot.slane %v6295, 5
    %v6298 = vsel %vm215, %v6293, %v6297
    %v6300 = vshrl.u32 %v6024, 16
    %v6302 = vrot.slane %v6300, 4
    %v6303 = vshll.u32 %v6024, 16
    %v6305 = vrot.slane %v6303, 5
    %v6306 = vor.u32 %v6302, %v6305
    %v6307 = vrot.slane %v6306, 4
    %v6309 = vshll.u32 %v6088, 16
    %v6311 = vrot.slane %v6309, 5
    %v6312 = vsel %vm215, %v6307, %v6311
    %v6329 = vmax.bf16 %v6057, %v6102
    %v6330 = vmax.bf16 %v6058, %v6116
    %v6331 = vmax.bf16 %v6059, %v6130
    %v6332 = vmax.bf16 %v6060, %v6144
    %v6333 = vmax.bf16 %v6061, %v6158
    %v6334 = vmax.bf16 %v6062, %v6172
    %v6335 = vmax.bf16 %v6063, %v6186
    %v6336 = vmax.bf16 %v6064, %v6200
    %v6337 = vmax.bf16 %v6065, %v6214
    %v6338 = vmax.bf16 %v6066, %v6228
    %v6339 = vmax.bf16 %v6067, %v6242
    %v6340 = vmax.bf16 %v6068, %v6256
    %v6341 = vmax.bf16 %v6069, %v6270
    %v6342 = vmax.bf16 %v6070, %v6284
    %v6343 = vmax.bf16 %v6071, %v6298
    %v6344 = vmax.bf16 %v6072, %v6312
    %v6345 = vld [vmem:[%s922] sm:$0xf]
    %v6346 = vld [vmem:[%s922 + $0x8] sm:$0xf]
    %v6347 = vld [vmem:[%s922 + $0x10] sm:$0xf]
    %v6348 = vld [vmem:[%s922 + $0x18] sm:$0xf]
    %v6349 = vld [vmem:[%s922 + $0x20] sm:$0xf]
    %v6350 = vld [vmem:[%s922 + $0x28] sm:$0xf]
    %v6351 = vld [vmem:[%s922 + $0x30] sm:$0xf]
    %v6352 = vld [vmem:[%s922 + $0x38] sm:$0xf]
    %v6353 = vld [vmem:[%s922 + $0x120] sm:$0xf]
    %v6354 = vld [vmem:[%s922 + $0x128] sm:$0xf]
    %v6355 = vld [vmem:[%s922 + $0x130] sm:$0xf]
    %v6356 = vld [vmem:[%s922 + $0x138] sm:$0xf]
    %v6357 = vld [vmem:[%s922 + $0x140] sm:$0xf]
    %v6358 = vld [vmem:[%s922 + $0x148] sm:$0xf]
    %v6359 = vld [vmem:[%s922 + $0x150] sm:$0xf]
    %v6360 = vld [vmem:[%s922 + $0x158] sm:$0xf]
    %v6361 = vmax.bf16 %v6329, %v6345
    %v6362 = vmax.bf16 %v6330, %v6346
    %v6363 = vmax.bf16 %v6331, %v6347
    %v6364 = vmax.bf16 %v6332, %v6348
    %v6365 = vmax.bf16 %v6333, %v6349
    %v6366 = vmax.bf16 %v6334, %v6350
    %v6367 = vmax.bf16 %v6335, %v6351
    %v6368 = vmax.bf16 %v6336, %v6352
    %v6369 = vmax.bf16 %v6337, %v6353
    %v6370 = vmax.bf16 %v6338, %v6354
    %v6371 = vmax.bf16 %v6339, %v6355
    %v6372 = vmax.bf16 %v6340, %v6356
    %v6373 = vmax.bf16 %v6341, %v6357
    %v6374 = vmax.bf16 %v6342, %v6358
    %v6375 = vmax.bf16 %v6343, %v6359
    %v6376 = vmax.bf16 %v6344, %v6360
    %v6377 = vld [vmem:[%s995] sm:$0xf]
    %v6378 = vld [vmem:[%s995 + $0x8] sm:$0xf]
    %v6379 = vld [vmem:[%s995 + $0x10] sm:$0xf]
    %v6380 = vld [vmem:[%s995 + $0x18] sm:$0xf]
    %v6381 = vld [vmem:[%s995 + $0x20] sm:$0xf]
    %v6382 = vld [vmem:[%s995 + $0x28] sm:$0xf]
    %v6383 = vld [vmem:[%s995 + $0x30] sm:$0xf]
    %v6384 = vld [vmem:[%s995 + $0x38] sm:$0xf]
    %v6385 = vld [vmem:[%s995 + $0x120] sm:$0xf]
    %v6386 = vld [vmem:[%s995 + $0x128] sm:$0xf]
    %v6387 = vld [vmem:[%s995 + $0x130] sm:$0xf]
    %v6388 = vld [vmem:[%s995 + $0x138] sm:$0xf]
    %v6389 = vld [vmem:[%s995 + $0x140] sm:$0xf]
    %v6390 = vld [vmem:[%s995 + $0x148] sm:$0xf]
    %v6391 = vld [vmem:[%s995 + $0x150] sm:$0xf]
    %v6392 = vld [vmem:[%s995 + $0x158] sm:$0xf]
    %v6393 = vmax.bf16 %v6361, %v6377
    %v6394 = vmax.bf16 %v6362, %v6378
    %v6395 = vmax.bf16 %v6363, %v6379
    %v6396 = vmax.bf16 %v6364, %v6380
    %v6397 = vmax.bf16 %v6365, %v6381
    %v6398 = vmax.bf16 %v6366, %v6382
    %v6399 = vmax.bf16 %v6367, %v6383
    %v6400 = vmax.bf16 %v6368, %v6384
    %v6401 = vmax.bf16 %v6369, %v6385
    %v6402 = vmax.bf16 %v6370, %v6386
    %v6403 = vmax.bf16 %v6371, %v6387
    %v6404 = vmax.bf16 %v6372, %v6388
    %v6405 = vmax.bf16 %v6373, %v6389
    %v6406 = vmax.bf16 %v6374, %v6390
    %v6407 = vmax.bf16 %v6375, %v6391
    %v6408 = vmax.bf16 %v6376, %v6392
    %v6409 = vld [vmem:[%s922 + $0x4] sm:$0x1]
    %v6410 = vld [vmem:[%s922 + $0xc] sm:$0x1]
    %v6411 = vld [vmem:[%s922 + $0x14] sm:$0x1]
    %v6412 = vld [vmem:[%s922 + $0x1c] sm:$0x1]
    %v6413 = vld [vmem:[%s922 + $0x24] sm:$0x1]
    %v6414 = vld [vmem:[%s922 + $0x2c] sm:$0x1]
    %v6415 = vld [vmem:[%s922 + $0x34] sm:$0x1]
    %v6416 = vld [vmem:[%s922 + $0x3c] sm:$0x1]
    %v6417 = vld [vmem:[%s922 + $0x124] sm:$0x1]
    %v6418 = vld [vmem:[%s922 + $0x12c] sm:$0x1]
    %v6419 = vld [vmem:[%s922 + $0x134] sm:$0x1]
    %v6420 = vld [vmem:[%s922 + $0x13c] sm:$0x1]
    %v6421 = vld [vmem:[%s922 + $0x144] sm:$0x1]
    %v6422 = vld [vmem:[%s922 + $0x14c] sm:$0x1]
    %v6423 = vld [vmem:[%s922 + $0x154] sm:$0x1]
    %v6424 = vld [vmem:[%s922 + $0x15c] sm:$0x1]
    %v6426 = vshrl.u32 %v6345, 16
    %v6428 = vrot.slane %v6426, 4
    %v6429 = vshll.u32 %v6345, 16
    %v6431 = vrot.slane %v6429, 5
    %v6432 = vor.u32 %v6428, %v6431
    %v6433 = vrot.slane %v6432, 4
    %v6435 = vshll.u32 %v6409, 16
    %v6437 = vrot.slane %v6435, 5
    %v6438 = vsel %vm215, %v6433, %v6437
    %v6440 = vshrl.u32 %v6346, 16
    %v6442 = vrot.slane %v6440, 4
    %v6443 = vshll.u32 %v6346, 16
    %v6445 = vrot.slane %v6443, 5
    %v6446 = vor.u32 %v6442, %v6445
    %v6447 = vrot.slane %v6446, 4
    %v6449 = vshll.u32 %v6410, 16
    %v6451 = vrot.slane %v6449, 5
    %v6452 = vsel %vm215, %v6447, %v6451
    %v6454 = vshrl.u32 %v6347, 16
    %v6456 = vrot.slane %v6454, 4
    %v6457 = vshll.u32 %v6347, 16
    %v6459 = vrot.slane %v6457, 5
    %v6460 = vor.u32 %v6456, %v6459
    %v6461 = vrot.slane %v6460, 4
    %v6463 = vshll.u32 %v6411, 16
    %v6465 = vrot.slane %v6463, 5
    %v6466 = vsel %vm215, %v6461, %v6465
    %v6468 = vshrl.u32 %v6348, 16
    %v6470 = vrot.slane %v6468, 4
    %v6471 = vshll.u32 %v6348, 16
    %v6473 = vrot.slane %v6471, 5
    %v6474 = vor.u32 %v6470, %v6473
    %v6475 = vrot.slane %v6474, 4
    %v6477 = vshll.u32 %v6412, 16
    %v6479 = vrot.slane %v6477, 5
    %v6480 = vsel %vm215, %v6475, %v6479
    %v6482 = vshrl.u32 %v6349, 16
    %v6484 = vrot.slane %v6482, 4
    %v6485 = vshll.u32 %v6349, 16
    %v6487 = vrot.slane %v6485, 5
    %v6488 = vor.u32 %v6484, %v6487
    %v6489 = vrot.slane %v6488, 4
    %v6491 = vshll.u32 %v6413, 16
    %v6493 = vrot.slane %v6491, 5
    %v6494 = vsel %vm215, %v6489, %v6493
    %v6496 = vshrl.u32 %v6350, 16
    %v6498 = vrot.slane %v6496, 4
    %v6499 = vshll.u32 %v6350, 16
    %v6501 = vrot.slane %v6499, 5
    %v6502 = vor.u32 %v6498, %v6501
    %v6503 = vrot.slane %v6502, 4
    %v6505 = vshll.u32 %v6414, 16
    %v6507 = vrot.slane %v6505, 5
    %v6508 = vsel %vm215, %v6503, %v6507
    %v6510 = vshrl.u32 %v6351, 16
    %v6512 = vrot.slane %v6510, 4
    %v6513 = vshll.u32 %v6351, 16
    %v6515 = vrot.slane %v6513, 5
    %v6516 = vor.u32 %v6512, %v6515
    %v6517 = vrot.slane %v6516, 4
    %v6519 = vshll.u32 %v6415, 16
    %v6521 = vrot.slane %v6519, 5
    %v6522 = vsel %vm215, %v6517, %v6521
    %v6524 = vshrl.u32 %v6352, 16
    %v6526 = vrot.slane %v6524, 4
    %v6527 = vshll.u32 %v6352, 16
    %v6529 = vrot.slane %v6527, 5
    %v6530 = vor.u32 %v6526, %v6529
    %v6531 = vrot.slane %v6530, 4
    %v6533 = vshll.u32 %v6416, 16
    %v6535 = vrot.slane %v6533, 5
    %v6536 = vsel %vm215, %v6531, %v6535
    %v6538 = vshrl.u32 %v6353, 16
    %v6540 = vrot.slane %v6538, 4
    %v6541 = vshll.u32 %v6353, 16
    %v6543 = vrot.slane %v6541, 5
    %v6544 = vor.u32 %v6540, %v6543
    %v6545 = vrot.slane %v6544, 4
    %v6547 = vshll.u32 %v6417, 16
    %v6549 = vrot.slane %v6547, 5
    %v6550 = vsel %vm215, %v6545, %v6549
    %v6552 = vshrl.u32 %v6354, 16
    %v6554 = vrot.slane %v6552, 4
    %v6555 = vshll.u32 %v6354, 16
    %v6557 = vrot.slane %v6555, 5
    %v6558 = vor.u32 %v6554, %v6557
    %v6559 = vrot.slane %v6558, 4
    %v6561 = vshll.u32 %v6418, 16
    %v6563 = vrot.slane %v6561, 5
    %v6564 = vsel %vm215, %v6559, %v6563
    %v6566 = vshrl.u32 %v6355, 16
    %v6568 = vrot.slane %v6566, 4
    %v6569 = vshll.u32 %v6355, 16
    %v6571 = vrot.slane %v6569, 5
    %v6572 = vor.u32 %v6568, %v6571
    %v6573 = vrot.slane %v6572, 4
    %v6575 = vshll.u32 %v6419, 16
    %v6577 = vrot.slane %v6575, 5
    %v6578 = vsel %vm215, %v6573, %v6577
    %v6580 = vshrl.u32 %v6356, 16
    %v6582 = vrot.slane %v6580, 4
    %v6583 = vshll.u32 %v6356, 16
    %v6585 = vrot.slane %v6583, 5
    %v6586 = vor.u32 %v6582, %v6585
    %v6587 = vrot.slane %v6586, 4
    %v6589 = vshll.u32 %v6420, 16
    %v6591 = vrot.slane %v6589, 5
    %v6592 = vsel %vm215, %v6587, %v6591
    %v6594 = vshrl.u32 %v6357, 16
    %v6596 = vrot.slane %v6594, 4
    %v6597 = vshll.u32 %v6357, 16
    %v6599 = vrot.slane %v6597, 5
    %v6600 = vor.u32 %v6596, %v6599
    %v6601 = vrot.slane %v6600, 4
    %v6603 = vshll.u32 %v6421, 16
    %v6605 = vrot.slane %v6603, 5
    %v6606 = vsel %vm215, %v6601, %v6605
    %v6608 = vshrl.u32 %v6358, 16
    %v6610 = vrot.slane %v6608, 4
    %v6611 = vshll.u32 %v6358, 16
    %v6613 = vrot.slane %v6611, 5
    %v6614 = vor.u32 %v6610, %v6613
    %v6615 = vrot.slane %v6614, 4
    %v6617 = vshll.u32 %v6422, 16
    %v6619 = vrot.slane %v6617, 5
    %v6620 = vsel %vm215, %v6615, %v6619
    %v6622 = vshrl.u32 %v6359, 16
    %v6624 = vrot.slane %v6622, 4
    %v6625 = vshll.u32 %v6359, 16
    %v6627 = vrot.slane %v6625, 5
    %v6628 = vor.u32 %v6624, %v6627
    %v6629 = vrot.slane %v6628, 4
    %v6631 = vshll.u32 %v6423, 16
    %v6633 = vrot.slane %v6631, 5
    %v6634 = vsel %vm215, %v6629, %v6633
    %v6636 = vshrl.u32 %v6360, 16
    %v6638 = vrot.slane %v6636, 4
    %v6639 = vshll.u32 %v6360, 16
    %v6641 = vrot.slane %v6639, 5
    %v6642 = vor.u32 %v6638, %v6641
    %v6643 = vrot.slane %v6642, 4
    %v6645 = vshll.u32 %v6424, 16
    %v6647 = vrot.slane %v6645, 5
    %v6648 = vsel %vm215, %v6643, %v6647
    %v6665 = vmax.bf16 %v6393, %v6438
    %v6666 = vmax.bf16 %v6394, %v6452
    %v6667 = vmax.bf16 %v6395, %v6466
    %v6668 = vmax.bf16 %v6396, %v6480
    %v6669 = vmax.bf16 %v6397, %v6494
    %v6670 = vmax.bf16 %v6398, %v6508
    %v6671 = vmax.bf16 %v6399, %v6522
    %v6672 = vmax.bf16 %v6400, %v6536
    %v6673 = vmax.bf16 %v6401, %v6550
    %v6674 = vmax.bf16 %v6402, %v6564
    %v6675 = vmax.bf16 %v6403, %v6578
    %v6676 = vmax.bf16 %v6404, %v6592
    %v6677 = vmax.bf16 %v6405, %v6606
    %v6678 = vmax.bf16 %v6406, %v6620
    %v6679 = vmax.bf16 %v6407, %v6634
    %v6680 = vmax.bf16 %v6408, %v6648
    %v6681 = vunpack.c.l.bf16 %v6665
    %v6682 = vunpack.c.l.bf16 %v6666
    %v6683 = vunpack.c.l.bf16 %v6667
    %v6684 = vunpack.c.l.bf16 %v6668
    %v6685 = vunpack.c.l.bf16 %v6669
    %v6686 = vunpack.c.l.bf16 %v6670
    %v6687 = vunpack.c.l.bf16 %v6671
    %v6688 = vunpack.c.l.bf16 %v6672
    %v6689 = vunpack.c.l.bf16 %v6673
    %v6690 = vunpack.c.l.bf16 %v6674
    %v6691 = vunpack.c.l.bf16 %v6675
    %v6692 = vunpack.c.l.bf16 %v6676
    %v6693 = vunpack.c.l.bf16 %v6677
    %v6694 = vunpack.c.l.bf16 %v6678
    %v6695 = vunpack.c.l.bf16 %v6679
    %v6696 = vunpack.c.l.bf16 %v6680
    %v6697 = vadd.f32 %v5627, %v6681
    %v6698 = vadd.f32 %v5630, %v6682
    %v6699 = vadd.f32 %v5635, %v6683
    %v6700 = vadd.f32 %v5638, %v6684
    %v6701 = vadd.f32 %v5643, %v6685
    %v6702 = vadd.f32 %v5646, %v6686
    %v6703 = vadd.f32 %v5651, %v6687
    %v6704 = vadd.f32 %v5654, %v6688
    %v6705 = vadd.f32 %v5659, %v6689
    %v6706 = vadd.f32 %v5662, %v6690
    %v6707 = vadd.f32 %v5667, %v6691
    %v6708 = vadd.f32 %v5670, %v6692
    %v6709 = vadd.f32 %v5675, %v6693
    %v6710 = vadd.f32 %v5678, %v6694
    %v6711 = vadd.f32 %v5683, %v6695
    %v6712 = vadd.f32 %v5686, %v6696
    %v6713 = vmax.f32 %v6697, 0.0
    %v6714 = vmax.f32 %v6698, 0.0
    %v6715 = vmax.f32 %v6699, 0.0
    %v6716 = vmax.f32 %v6700, 0.0
    %v6717 = vmax.f32 %v6701, 0.0
    %v6718 = vmax.f32 %v6702, 0.0
    %v6719 = vmax.f32 %v6703, 0.0
    %v6720 = vmax.f32 %v6704, 0.0
    %v6721 = vmax.f32 %v6705, 0.0
    %v6722 = vmax.f32 %v6706, 0.0
    %v6723 = vmax.f32 %v6707, 0.0
    %v6724 = vmax.f32 %v6708, 0.0
    %v6725 = vmax.f32 %v6709, 0.0
    %v6726 = vmax.f32 %v6710, 0.0
    %v6727 = vmax.f32 %v6711, 0.0
    %v6728 = vmax.f32 %v6712, 0.0
    %v6729 = vpack.c.bf16 %v6713, %v6713
    %v6730 = vpack.c.bf16 %v6714, %v6714
    %v6731 = vpack.c.bf16 %v6715, %v6715
    %v6732 = vpack.c.bf16 %v6716, %v6716
    %v6733 = vpack.c.bf16 %v6717, %v6717
    %v6734 = vpack.c.bf16 %v6718, %v6718
    %v6735 = vpack.c.bf16 %v6719, %v6719
    %v6736 = vpack.c.bf16 %v6720, %v6720
    %v6737 = vpack.c.bf16 %v6721, %v6721
    %v6738 = vpack.c.bf16 %v6722, %v6722
    %v6739 = vpack.c.bf16 %v6723, %v6723
    %v6740 = vpack.c.bf16 %v6724, %v6724
    %v6741 = vpack.c.bf16 %v6725, %v6725
    %v6742 = vpack.c.bf16 %v6726, %v6726
    %v6743 = vpack.c.bf16 %v6727, %v6727
    %v6744 = vpack.c.bf16 %v6728, %v6728
    %6745 = vst [vmem:[#allocation7] sm:$0xf] %v6729
    %6746 = vst [vmem:[#allocation7 + $0x4] sm:$0xf] %v6730
    %6747 = vst [vmem:[#allocation7 + $0x8] sm:$0xf] %v6731
    %6748 = vst [vmem:[#allocation7 + $0xc] sm:$0xf] %v6732
    %6749 = vst [vmem:[#allocation7 + $0x10] sm:$0xf] %v6733
    %6750 = vst [vmem:[#allocation7 + $0x14] sm:$0xf] %v6734
    %6751 = vst [vmem:[#allocation7 + $0x18] sm:$0xf] %v6735
    %6752 = vst [vmem:[#allocation7 + $0x1c] sm:$0xf] %v6736
    %6753 = vst [vmem:[#allocation7 + $0x20] sm:$0xf] %v6737
    %6754 = vst [vmem:[#allocation7 + $0x24] sm:$0xf] %v6738
    %6755 = vst [vmem:[#allocation7 + $0x28] sm:$0xf] %v6739
    %6756 = vst [vmem:[#allocation7 + $0x2c] sm:$0xf] %v6740
    %6757 = vst [vmem:[#allocation7 + $0x30] sm:$0xf] %v6741
    %6758 = vst [vmem:[#allocation7 + $0x34] sm:$0xf] %v6742
    %6759 = vst [vmem:[#allocation7 + $0x38] sm:$0xf] %v6743
    %6760 = vst [vmem:[#allocation7 + $0x3c] sm:$0xf] %v6744
    // Predicated region
    $region26: #{tpu_custom_call.1} parent=1 // pred_check
      _
    $region27: #{tpu_custom_call.1} parent=1 // pred_check_branch
      %6762 = sbr.rel (0) target = $region29
    $region28: #{tpu_custom_call.1} parent=1 // pred_region
      %s6764 = ssub.s32 1024, 1024
      %6765 = vsyncadd [#allocation6], %s6764
      %s6766 = sshll.u32 [#allocation7], 4
      %s6767 = int_to_ptr.vmem [resolvable:$true] %s6766
      %6772 = dma.vmem_to_hbm [thread:$0]  %s6767, 1024, %s5, [#allocation6], 64, 64, 4
    $region29: #{tpu_custom_call.1} parent=1 // pred_fallthru
      _
    // Predicated region
    $region30: #{tpu_custom_call.1} parent=1 // pred_check
      _
    $region31: #{tpu_custom_call.1} parent=1 // pred_check_branch
      %6774 = sbr.rel (0) target = $region33
    $region32: #{tpu_custom_call.1} parent=1 // pred_region
      %6775 = dma.done [#allocation6], 1024
    $region33: #{tpu_custom_call.1} parent=1 // pred_fallthru
      _
    %6776 = vsyncpa [#allocation5], 1
    %6777 = vsyncpa [#allocation6], 1

</llo_original>
